<compile_context>
chip_gen: v7x
topology: tpu7x:2x2x1
jax: 0.10.0
libtpu: 0.0.40
codegen_flags: <defaults>
</compile_context>

<pallas_src>
import functools

import jax
import jax.numpy as jnp
from jax.experimental import pallas as pl
from jax.experimental.pallas import tpu as pltpu


# ---------------------------------------------------------------------------
# Helpers
# ---------------------------------------------------------------------------

def _round_up(x, m):
    return ((x + m - 1) // m) * m


def _resident_spec(block_shape, index_map, single_buffer):
    """Constant-index-map (VMEM-resident) BlockSpec; optionally single-buffered.

    Pallas double-buffers every input by default; for blocks whose index_map never
    changes the second buffer is pure VMEM waste, so once the weights get large we
    request pl.Buffered(1) (primarily for v7x's 64 MiB VMEM)."""
    if single_buffer:
        return pl.BlockSpec(block_shape, index_map, pipeline_mode=pl.Buffered(1))
    return pl.BlockSpec(block_shape, index_map)


def _mosaic_params(dimension_semantics, vmem_bytes_estimate):
    # Explicit scoped-VMEM limit: estimate + slack, floored at the 32 MiB default
    # (v5e default is only 16 MiB) and capped at 128 MiB.
    vmem_limit = min(max(int(vmem_bytes_estimate) + (4 << 20), 32 << 20), 128 << 20)
    return pltpu.CompilerParams(dimension_semantics=dimension_semantics,
                                vmem_limit_bytes=vmem_limit)


# ---------------------------------------------------------------------------
# Kernel 1: hoisted input projection  gi = x @ W_ih^T + b_ih   (no recurrence)
# ---------------------------------------------------------------------------

def input_proj_kernel(x_ref, w_ih_ref, b_ih_ref, gi_ref):
    # (T_BLOCK, H) @ (H, 3H) -> (T_BLOCK, 3H), f32 accumulation on the MXU.
    gi_ref[...] = (jnp.dot(x_ref[...], w_ih_ref[...],
                           preferred_element_type=jnp.float32)
                   + b_ih_ref[...].astype(jnp.float32))


# ---------------------------------------------------------------------------
# Kernel 2: the sequential GRU recurrence over T_BLOCK tokens per grid step
# ---------------------------------------------------------------------------

def gru_recurrence_kernel(gi_ref,        # (T_BLOCK, 3H) f32  precomputed x@W_ih + b_ih
                          h0_ref,        # (1, H)             initial hidden
                          w_hh_ref,      # (H, 3H)            resident recurrent weight
                          b_hh_ref,      # (1, 3H) f32        resident recurrent bias
                          out_ref,       # (T_BLOCK, H) f32   per-step hidden states
                          h_state,       # VMEM scratch (1, H) f32, carried across grid
                          *, hidden_size, t_block):
    H = hidden_size
    blk = pl.program_id(0)

    # Initialize the carried hidden state on the first time-block.
    @pl.when(blk == 0)
    def _():
        h_state[...] = h0_ref[...].astype(jnp.float32)

    w_dtype = w_hh_ref.dtype
    w_hh = w_hh_ref[...]
    b_hh = b_hh_ref[...].astype(jnp.float32)

    h = h_state[...]                                     # (1, H) f32
    # Unrolled at trace time (t_block is a small static constant), so every row
    # slice / store below is a static, lane-aligned access.
    for i in range(t_block):
        gi = gi_ref[i:i + 1, :]                          # (1, 3H), already has b_ih
        gh = jnp.dot(h.astype(w_dtype), w_hh,
                     preferred_element_type=jnp.float32) + b_hh
        r = jax.nn.sigmoid(gi[:, 0:H] + gh[:, 0:H])              # reset gate
        z = jax.nn.sigmoid(gi[:, H:2 * H] + gh[:, H:2 * H])      # update gate
        n = jnp.tanh(gi[:, 2 * H:3 * H] + r * gh[:, 2 * H:3 * H])  # new gate (b_hh_n inside r*)
        h = (1.0 - z) * n + z * h                                # PyTorch GRU blend
        out_ref[i:i + 1, :] = h.astype(out_ref.dtype)
    h_state[...] = h


# ---------------------------------------------------------------------------
# Wrappers
# ---------------------------------------------------------------------------

@functools.partial(jax.jit, static_argnames=("t_block",))
def _encoder_gru_sequence_jit(tokens, hidden0, params, *, t_block):
    emb = params["embedding"]
    w_ih = params["w_ih_t"]
    w_hh = params["w_hh_t"]
    b_ih = params["b_ih"]
    b_hh = params["b_hh"]

    H = emb.shape[1]
    assert H % 128 == 0, "hidden_size must be a multiple of 128 (lane-aligned gate slices)"
    T = tokens.shape[0]
    T_pad = _round_up(T, t_block)
    n_blocks = T_pad // t_block

    w_itemsize = jnp.dtype(w_hh.dtype).itemsize
    # Single-buffer resident weights once double-buffering them would eat a big
    # slice of VMEM (v7x: 64 MiB physical / 32 MiB default scoped).
    single_buffer = (2 * 2 * H * 3 * H * w_itemsize) > (24 << 20)
    n_buf_w = 1 if single_buffer else 2

    tokens_pad = jnp.pad(tokens.astype(jnp.int32), (0, T_pad - T))
    h0 = hidden0.reshape(1, H).astype(jnp.float32)

    # ---- Hoisted input projection (one dense, fully-pipelined matmul) -------
    x_all = jnp.take(emb, tokens_pad, axis=0)            # (T_pad, H) embedding gather (XLA)

    proj_vmem = (H * 3 * H * w_itemsize * n_buf_w         # W_ih resident
                 + 8 * 3 * H * 4 * n_buf_w                # b_ih (sublane-padded)
                 + t_block * H * w_itemsize * 2           # x blocks (double-buffered)
                 + t_block * 3 * H * 4 * 2)               # gi output blocks
    gi_all = pl.pallas_call(
        input_proj_kernel,
        out_shape=jax.ShapeDtypeStruct((T_pad, 3 * H), jnp.float32),
        grid_spec=pltpu.PrefetchScalarGridSpec(
            num_scalar_prefetch=0,
            grid=(n_blocks,),
            in_specs=[
                pl.BlockSpec((t_block, H), lambda i: (i, 0)),
                _resident_spec((H, 3 * H), lambda i: (0, 0), single_buffer),
                _resident_spec((1, 3 * H), lambda i: (0, 0), single_buffer),
            ],
            out_specs=pl.BlockSpec((t_block, 3 * H), lambda i: (i, 0)),
        ),
        compiler_params=_mosaic_params(("parallel",), proj_vmem),
    )(x_all, w_ih, b_ih)

    # ---- Sequential recurrence, T_BLOCK tokens per grid step ----------------
    rec_vmem = (H * 3 * H * w_itemsize * n_buf_w          # W_hh resident
                + 8 * 3 * H * 4 * n_buf_w                 # b_hh
                + 8 * H * 4 * n_buf_w                     # h0
                + t_block * 3 * H * 4 * 2                 # gi input blocks
                + t_block * H * 4 * 2                     # output blocks
                + 8 * H * 4)                              # h_state scratch
    outputs_pad = pl.pallas_call(
        functools.partial(gru_recurrence_kernel, hidden_size=H, t_block=t_block),
        out_shape=jax.ShapeDtypeStruct((T_pad, H), jnp.float32),
        grid_spec=pltpu.PrefetchScalarGridSpec(
            num_scalar_prefetch=0,
            grid=(n_blocks,),
            in_specs=[
                pl.BlockSpec((t_block, 3 * H), lambda b: (b, 0)),
                _resident_spec((1, H), lambda b: (0, 0), single_buffer),
                _resident_spec((H, 3 * H), lambda b: (0, 0), single_buffer),
                _resident_spec((1, 3 * H), lambda b: (0, 0), single_buffer),
            ],
            out_specs=pl.BlockSpec((t_block, H), lambda b: (b, 0)),
            scratch_shapes=[pltpu.VMEM((1, H), jnp.float32)],  # carried hidden state
        ),
        compiler_params=_mosaic_params(("arbitrary",), rec_vmem),  # sequential recurrence
    )(gi_all, h0, w_hh, b_hh)

    # Padded steps (t >= T) compute values we simply discard; the final hidden is
    # the last VALID step's output, so padding never corrupts it.
    outputs = outputs_pad[:T].reshape(T, 1, H)
    hidden = outputs_pad[T - 1].reshape(1, 1, H)
    return outputs, hidden


def encoder_gru_sequence(tokens, hidden0, params, t_block=8):
    """Runs the EncoderGRU step over a whole token sequence.

    tokens:  (T,) int32 token ids
    hidden0: (n_layers=1, batch=1, H) float32
    returns (outputs, hidden) of shapes (T, 1, H) and (1, 1, H) — equivalent to
    calling EncoderGRU.forward() once per token and stacking the outputs.
    """
    return _encoder_gru_sequence_jit(tokens, hidden0, params, t_block=t_block)


def encoder_gru_forward(token, hidden, params):
    """Exact EncoderGRU.forward(input, hidden) semantics: one token, batch=1.

    Note: token-at-a-time decoding re-streams the (H, 3H) weight matrices every
    call and wastes the time-block pipeline; for throughput, call
    encoder_gru_sequence over the whole token sequence instead.
    """
    tokens = jnp.reshape(jnp.asarray(token, jnp.int32), (1,))
    outputs, hidden_new = encoder_gru_sequence(tokens, hidden, params)
    H = params["embedding"].shape[1]
    return outputs.reshape(1, 1, H), hidden_new


def init_params(key, input_size, hidden_size, param_dtype=jnp.float32):
    """Deterministic params matching the PyTorch module's shapes.

    Use param_dtype=jnp.bfloat16 on v6e/v7x to halve resident weight VMEM and
    weight DMA; gate math, biases and the carried hidden state stay f32.
    """
    H = hidden_size
    k_emb, k_wih, k_whh, k_bih, k_bhh = jax.random.split(key, 5)
    bound = 1.0 / jnp.sqrt(jnp.float32(H))
    emb = jax.random.normal(k_emb, (input_size, H), dtype=jnp.float32)
    w_ih = jax.random.uniform(k_wih, (3 * H, H), jnp.float32, -bound, bound)
    w_hh = jax.random.uniform(k_whh, (3 * H, H), jnp.float32, -bound, bound)
    b_ih = jax.random.uniform(k_bih, (3 * H,), jnp.float32, -bound, bound)
    b_hh = jax.random.uniform(k_bhh, (3 * H,), jnp.float32, -bound, bound)
    return {
        "embedding": emb.astype(param_dtype),
        "w_ih_t": w_ih.T.astype(param_dtype),    # (H, 3H) so x @ W == x @ W_ih.T
        "w_hh_t": w_hh.T.astype(param_dtype),
        "b_ih": b_ih.reshape(1, 3 * H),          # f32 (folded into gi precompute)
        "b_hh": b_hh.reshape(1, 3 * H),          # f32
    }


def _reference_sequence(tokens, hidden0, params):
    """Pure-JAX reference (lax.scan over the same GRU step) for sanity checks."""
    H = params["embedding"].shape[1]
    emb = params["embedding"].astype(jnp.float32)
    w_ih = params["w_ih_t"].astype(jnp.float32)
    w_hh = params["w_hh_t"].astype(jnp.float32)
    b_ih, b_hh = params["b_ih"], params["b_hh"]

    def step(h, tok):
        x = emb[tok].reshape(1, H)
        gi = x @ w_ih + b_ih
        gh = h @ w_hh + b_hh
        r = jax.nn.sigmoid(gi[:, :H] + gh[:, :H])
        z = jax.nn.sigmoid(gi[:, H:2 * H] + gh[:, H:2 * H])
        n = jnp.tanh(gi[:, 2 * H:] + r * gh[:, 2 * H:])
        h_new = (1.0 - z) * n + z * h
        return h_new, h_new

    h0 = hidden0.reshape(1, H).astype(jnp.float32)
    h_last, outs = jax.lax.scan(step, h0, tokens)
    return outs.reshape(-1, 1, H), h_last.reshape(1, 1, H)


if __name__ == "__main__":
    input_size = 20        # vocab size
    hidden_size = 256      # module default; multiple of 256 keeps the v6e/v7x MXU full
    seq_len = 20           # not a multiple of T_BLOCK -> exercises the padding path

    key = jax.random.PRNGKey(0)
    k_params, k_tok = jax.random.split(key)
    params = init_params(k_params, input_size, hidden_size)

    tokens = jax.random.randint(k_tok, (seq_len,), 0, input_size, dtype=jnp.int32)
    hidden0 = jnp.zeros((1, 1, hidden_size), jnp.float32)     # initHidden()

    # Full-sequence kernels (the hot path: hoisted projection + chunked recurrence).
    outputs, hidden_T = encoder_gru_sequence(tokens, hidden0, params)
    jax.block_until_ready((outputs, hidden_T))

    # Single-token EncoderGRU.forward semantics.
    out1, hid1 = encoder_gru_forward(tokens[0], hidden0, params)
    jax.block_until_ready((out1, hid1))

    ref_out, ref_hid = _reference_sequence(tokens, hidden0, params)

    assert outputs.shape == (seq_len, 1, hidden_size)
    assert hidden_T.shape == (1, 1, hidden_size)
    assert out1.shape == (1, 1, hidden_size) and hid1.shape == (1, 1, hidden_size)
    assert jnp.allclose(outputs, ref_out, atol=1e-3, rtol=1e-3)
    assert jnp.allclose(hidden_T, ref_hid, atol=1e-3, rtol=1e-3)
    assert jnp.allclose(out1, ref_out[0:1], atol=1e-3, rtol=1e-3)

    print("KERNEL_OK")
</pallas_src>

<mosaic_0001>
module attributes {stable_mosaic.version = 11 : i64} {
  func.func @input_proj_kernel(%arg0: i32, %arg1: memref<8x256xf32, #tpu.memory_space<vmem>>, %arg2: memref<256x768xf32, #tpu.memory_space<vmem>>, %arg3: memref<1x768xf32, #tpu.memory_space<vmem>>, %arg4: memref<8x768xf32, #tpu.memory_space<vmem>>) attributes {dimension_semantics = [#tpu.dimension_semantics<parallel>], iteration_bounds = array<i64: 3>, scalar_prefetch = 0 : i64, scratch_operands = 0 : i64, tpu.core_type = #tpu.core_type<tc>, window_params = [{transform_indices = @transform_0, window_bounds = array<i64: 8, 256>}, {pipeline_mode = #tpu.pipeline_mode<synchronous>, transform_indices = @transform_1, window_bounds = array<i64: 256, 768>}, {pipeline_mode = #tpu.pipeline_mode<synchronous>, transform_indices = @transform_2, window_bounds = array<i64: 1, 768>}, {transform_indices = @transform_3, window_bounds = array<i64: 8, 768>}]} {
    %c0 = arith.constant 0 : index
    %c0_0 = arith.constant 0 : index
    %0 = vector.load %arg1[%c0, %c0_0] : memref<8x256xf32, #tpu.memory_space<vmem>>, vector<8x256xf32>
    %c0_1 = arith.constant 0 : index
    %c0_2 = arith.constant 0 : index
    %1 = vector.load %arg2[%c0_1, %c0_2] : memref<256x768xf32, #tpu.memory_space<vmem>>, vector<256x768xf32>
    %cst = arith.constant dense<0.000000e+00> : vector<8x768xf32>
    %2 = tpu.matmul %0, %1, %cst {dimension_numbers = #tpu.dot_dimension_numbers<[1], [0], [0], [1], [0, 0, 1, 1], [], []>} : vector<8x256xf32>, vector<256x768xf32>, vector<8x768xf32> -> vector<8x768xf32>
    %c0_3 = arith.constant 0 : index
    %c0_4 = arith.constant 0 : index
    %3 = vector.load %arg3[%c0_3, %c0_4] : memref<1x768xf32, #tpu.memory_space<vmem>>, vector<1x768xf32>
    %4 = vector.broadcast %3 : vector<1x768xf32> to vector<8x768xf32>
    %5 = arith.addf %2, %4 : vector<8x768xf32>
    %c0_5 = arith.constant 0 : index
    %c0_6 = arith.constant 0 : index
    %6 = vector.load %arg4[%c0_5, %c0_6] : memref<8x768xf32, #tpu.memory_space<vmem>>, vector<8x768xf32>
    tpu.vector_store %arg4[%c0_5, %c0_6], %5 {strides = array<i32>} : memref<8x768xf32, #tpu.memory_space<vmem>>, vector<8x768xf32>,
    return
  }
  func.func @transform_0(%arg0: i32) -> (i32, i32) {
    %c0_i32 = arith.constant 0 : i32
    %c0_i32_0 = arith.constant 0 : i32
    return %arg0, %c0_i32 : i32, i32
  }
  func.func @transform_1(%arg0: i32) -> (i32, i32) {
    %c0_i32 = arith.constant 0 : i32
    %c0_i32_0 = arith.constant 0 : i32
    %c0_i32_1 = arith.constant 0 : i32
    return %c0_i32, %c0_i32_0 : i32, i32
  }
  func.func @transform_2(%arg0: i32) -> (i32, i32) {
    %c0_i32 = arith.constant 0 : i32
    %c0_i32_0 = arith.constant 0 : i32
    %c0_i32_1 = arith.constant 0 : i32
    return %c0_i32, %c0_i32_0 : i32, i32
  }
  func.func @transform_3(%arg0: i32) -> (i32, i32) {
    %c0_i32 = arith.constant 0 : i32
    %c0_i32_0 = arith.constant 0 : i32
    return %arg0, %c0_i32 : i32, i32
  }
}

module attributes {stable_mosaic.version = 11 : i64} {
  func.func @gru_recurrence_kernel(%arg0: i32, %arg1: memref<8x768xf32, #tpu.memory_space<vmem>>, %arg2: memref<1x256xf32, #tpu.memory_space<vmem>>, %arg3: memref<256x768xf32, #tpu.memory_space<vmem>>, %arg4: memref<1x768xf32, #tpu.memory_space<vmem>>, %arg5: memref<8x256xf32, #tpu.memory_space<vmem>>, %arg6: memref<1x256xf32, #tpu.memory_space<vmem>>) attributes {dimension_semantics = [#tpu.dimension_semantics<arbitrary>], iteration_bounds = array<i64: 3>, scalar_prefetch = 0 : i64, scratch_operands = 1 : i64, tpu.core_type = #tpu.core_type<tc>, window_params = [{transform_indices = @transform_0, window_bounds = array<i64: 8, 768>}, {pipeline_mode = #tpu.pipeline_mode<synchronous>, transform_indices = @transform_1, window_bounds = array<i64: 1, 256>}, {pipeline_mode = #tpu.pipeline_mode<synchronous>, transform_indices = @transform_2, window_bounds = array<i64: 256, 768>}, {pipeline_mode = #tpu.pipeline_mode<synchronous>, transform_indices = @transform_3, window_bounds = array<i64: 1, 768>}, {transform_indices = @transform_4, window_bounds = array<i64: 8, 256>}]} {
    %c0_i32 = arith.constant 0 : i32
    %0 = arith.cmpi eq, %arg0, %c0_i32 : i32
    %1 = arith.extui %0 : i1 to i32
    %c0_i32_0 = arith.constant 0 : i32
    %2 = arith.cmpi ne, %1, %c0_i32_0 : i32
    scf.if %2 {
      %c0_64 = arith.constant 0 : index
      %c0_65 = arith.constant 0 : index
      %247 = vector.load %arg2[%c0_64, %c0_65] : memref<1x256xf32, #tpu.memory_space<vmem>>, vector<1x256xf32>
      %c0_66 = arith.constant 0 : index
      %c0_67 = arith.constant 0 : index
      %248 = vector.load %arg6[%c0_66, %c0_67] : memref<1x256xf32, #tpu.memory_space<vmem>>, vector<1x256xf32>
      tpu.vector_store %arg6[%c0_66, %c0_67], %247 {strides = array<i32>} : memref<1x256xf32, #tpu.memory_space<vmem>>, vector<1x256xf32>,
    } else {
    }
    %c0 = arith.constant 0 : index
    %c0_1 = arith.constant 0 : index
    %3 = vector.load %arg3[%c0, %c0_1] : memref<256x768xf32, #tpu.memory_space<vmem>>, vector<256x768xf32>
    %c0_2 = arith.constant 0 : index
    %c0_3 = arith.constant 0 : index
    %4 = vector.load %arg4[%c0_2, %c0_3] : memref<1x768xf32, #tpu.memory_space<vmem>>, vector<1x768xf32>
    %c0_4 = arith.constant 0 : index
    %c0_5 = arith.constant 0 : index
    %5 = vector.load %arg6[%c0_4, %c0_5] : memref<1x256xf32, #tpu.memory_space<vmem>>, vector<1x256xf32>
    %c0_6 = arith.constant 0 : index
    %c0_7 = arith.constant 0 : index
    %6 = vector.load %arg1[%c0_6, %c0_7] : memref<8x768xf32, #tpu.memory_space<vmem>>, vector<1x768xf32>
    %cst = arith.constant dense<0.000000e+00> : vector<1x768xf32>
    %7 = tpu.matmul %5, %3, %cst {dimension_numbers = #tpu.dot_dimension_numbers<[1], [0], [0], [1], [0, 0, 1, 1], [], []>} : vector<1x256xf32>, vector<256x768xf32>, vector<1x768xf32> -> vector<1x768xf32>
    %8 = arith.addf %7, %4 : vector<1x768xf32>
    %9 = vector.extract_strided_slice %6 {offsets = [0, 0], sizes = [1, 256], strides = [1, 1]} : vector<1x768xf32> to vector<1x256xf32>
    %10 = vector.extract_strided_slice %8 {offsets = [0, 0], sizes = [1, 256], strides = [1, 1]} : vector<1x768xf32> to vector<1x256xf32>
    %11 = arith.addf %9, %10 : vector<1x256xf32>
    %12 = arith.negf %11 : vector<1x256xf32>
    %13 = math.exp %12 : vector<1x256xf32>
    %cst_8 = arith.constant 1.000000e+00 : f32
    %14 = vector.broadcast %cst_8 : f32 to vector<1x256xf32>
    %15 = arith.addf %14, %13 : vector<1x256xf32>
    %16 = arith.divf %14, %15 : vector<1x256xf32>
    %17 = vector.extract_strided_slice %6 {offsets = [0, 256], sizes = [1, 256], strides = [1, 1]} : vector<1x768xf32> to vector<1x256xf32>
    %18 = vector.extract_strided_slice %8 {offsets = [0, 256], sizes = [1, 256], strides = [1, 1]} : vector<1x768xf32> to vector<1x256xf32>
    %19 = arith.addf %17, %18 : vector<1x256xf32>
    %20 = arith.negf %19 : vector<1x256xf32>
    %21 = math.exp %20 : vector<1x256xf32>
    %cst_9 = arith.constant 1.000000e+00 : f32
    %22 = vector.broadcast %cst_9 : f32 to vector<1x256xf32>
    %23 = arith.addf %22, %21 : vector<1x256xf32>
    %24 = arith.divf %22, %23 : vector<1x256xf32>
    %25 = vector.extract_strided_slice %6 {offsets = [0, 512], sizes = [1, 256], strides = [1, 1]} : vector<1x768xf32> to vector<1x256xf32>
    %26 = vector.extract_strided_slice %8 {offsets = [0, 512], sizes = [1, 256], strides = [1, 1]} : vector<1x768xf32> to vector<1x256xf32>
    %27 = arith.mulf %16, %26 : vector<1x256xf32>
    %28 = arith.addf %25, %27 : vector<1x256xf32>
    %29 = math.tanh %28 : vector<1x256xf32>
    %cst_10 = arith.constant 1.000000e+00 : f32
    %30 = vector.broadcast %cst_10 : f32 to vector<1x256xf32>
    %31 = arith.subf %30, %24 : vector<1x256xf32>
    %32 = arith.mulf %31, %29 : vector<1x256xf32>
    %33 = arith.mulf %24, %5 : vector<1x256xf32>
    %34 = arith.addf %32, %33 : vector<1x256xf32>
    %c0_11 = arith.constant 0 : index
    %c0_12 = arith.constant 0 : index
    %35 = vector.load %arg5[%c0_11, %c0_12] : memref<8x256xf32, #tpu.memory_space<vmem>>, vector<1x256xf32>
    tpu.vector_store %arg5[%c0_11, %c0_12], %34 {strides = array<i32>} : memref<8x256xf32, #tpu.memory_space<vmem>>, vector<1x256xf32>,
    %c1 = arith.constant 1 : index
    %c0_13 = arith.constant 0 : index
    %36 = vector.load %arg1[%c1, %c0_13] : memref<8x768xf32, #tpu.memory_space<vmem>>, vector<1x768xf32>
    %cst_14 = arith.constant dense<0.000000e+00> : vector<1x768xf32>
    %37 = tpu.matmul %34, %3, %cst_14 {dimension_numbers = #tpu.dot_dimension_numbers<[1], [0], [0], [1], [0, 0, 1, 1], [], []>} : vector<1x256xf32>, vector<256x768xf32>, vector<1x768xf32> -> vector<1x768xf32>
    %38 = arith.addf %37, %4 : vector<1x768xf32>
    %39 = vector.extract_strided_slice %36 {offsets = [0, 0], sizes = [1, 256], strides = [1, 1]} : vector<1x768xf32> to vector<1x256xf32>
    %40 = vector.extract_strided_slice %38 {offsets = [0, 0], sizes = [1, 256], strides = [1, 1]} : vector<1x768xf32> to vector<1x256xf32>
    %41 = arith.addf %39, %40 : vector<1x256xf32>
    %42 = arith.negf %41 : vector<1x256xf32>
    %43 = math.exp %42 : vector<1x256xf32>
    %cst_15 = arith.constant 1.000000e+00 : f32
    %44 = vector.broadcast %cst_15 : f32 to vector<1x256xf32>
    %45 = arith.addf %44, %43 : vector<1x256xf32>
    %46 = arith.divf %44, %45 : vector<1x256xf32>
    %47 = vector.extract_strided_slice %36 {offsets = [0, 256], sizes = [1, 256], strides = [1, 1]} : vector<1x768xf32> to vector<1x256xf32>
    %48 = vector.extract_strided_slice %38 {offsets = [0, 256], sizes = [1, 256], strides = [1, 1]} : vector<1x768xf32> to vector<1x256xf32>
    %49 = arith.addf %47, %48 : vector<1x256xf32>
    %50 = arith.negf %49 : vector<1x256xf32>
    %51 = math.exp %50 : vector<1x256xf32>
    %cst_16 = arith.constant 1.000000e+00 : f32
    %52 = vector.broadcast %cst_16 : f32 to vector<1x256xf32>
    %53 = arith.addf %52, %51 : vector<1x256xf32>
    %54 = arith.divf %52, %53 : vector<1x256xf32>
    %55 = vector.extract_strided_slice %36 {offsets = [0, 512], sizes = [1, 256], strides = [1, 1]} : vector<1x768xf32> to vector<1x256xf32>
    %56 = vector.extract_strided_slice %38 {offsets = [0, 512], sizes = [1, 256], strides = [1, 1]} : vector<1x768xf32> to vector<1x256xf32>
    %57 = arith.mulf %46, %56 : vector<1x256xf32>
    %58 = arith.addf %55, %57 : vector<1x256xf32>
    %59 = math.tanh %58 : vector<1x256xf32>
    %cst_17 = arith.constant 1.000000e+00 : f32
    %60 = vector.broadcast %cst_17 : f32 to vector<1x256xf32>
    %61 = arith.subf %60, %54 : vector<1x256xf32>
    %62 = arith.mulf %61, %59 : vector<1x256xf32>
    %63 = arith.mulf %54, %34 : vector<1x256xf32>
    %64 = arith.addf %62, %63 : vector<1x256xf32>
    %c1_18 = arith.constant 1 : index
    %c0_19 = arith.constant 0 : index
    %65 = vector.load %arg5[%c1_18, %c0_19] : memref<8x256xf32, #tpu.memory_space<vmem>>, vector<1x256xf32>
    tpu.vector_store %arg5[%c1_18, %c0_19], %64 {strides = array<i32>} : memref<8x256xf32, #tpu.memory_space<vmem>>, vector<1x256xf32>,
    %c2 = arith.constant 2 : index
    %c0_20 = arith.constant 0 : index
    %66 = vector.load %arg1[%c2, %c0_20] : memref<8x768xf32, #tpu.memory_space<vmem>>, vector<1x768xf32>
    %cst_21 = arith.constant dense<0.000000e+00> : vector<1x768xf32>
    %67 = tpu.matmul %64, %3, %cst_21 {dimension_numbers = #tpu.dot_dimension_numbers<[1], [0], [0], [1], [0, 0, 1, 1], [], []>} : vector<1x256xf32>, vector<256x768xf32>, vector<1x768xf32> -> vector<1x768xf32>
    %68 = arith.addf %67, %4 : vector<1x768xf32>
    %69 = vector.extract_strided_slice %66 {offsets = [0, 0], sizes = [1, 256], strides = [1, 1]} : vector<1x768xf32> to vector<1x256xf32>
    %70 = vector.extract_strided_slice %68 {offsets = [0, 0], sizes = [1, 256], strides = [1, 1]} : vector<1x768xf32> to vector<1x256xf32>
    %71 = arith.addf %69, %70 : vector<1x256xf32>
    %72 = arith.negf %71 : vector<1x256xf32>
    %73 = math.exp %72 : vector<1x256xf32>
    %cst_22 = arith.constant 1.000000e+00 : f32
    %74 = vector.broadcast %cst_22 : f32 to vector<1x256xf32>
    %75 = arith.addf %74, %73 : vector<1x256xf32>
    %76 = arith.divf %74, %75 : vector<1x256xf32>
    %77 = vector.extract_strided_slice %66 {offsets = [0, 256], sizes = [1, 256], strides = [1, 1]} : vector<1x768xf32> to vector<1x256xf32>
    %78 = vector.extract_strided_slice %68 {offsets = [0, 256], sizes = [1, 256], strides = [1, 1]} : vector<1x768xf32> to vector<1x256xf32>
    %79 = arith.addf %77, %78 : vector<1x256xf32>
    %80 = arith.negf %79 : vector<1x256xf32>
    %81 = math.exp %80 : vector<1x256xf32>
    %cst_23 = arith.constant 1.000000e+00 : f32
    %82 = vector.broadcast %cst_23 : f32 to vector<1x256xf32>
    %83 = arith.addf %82, %81 : vector<1x256xf32>
    %84 = arith.divf %82, %83 : vector<1x256xf32>
    %85 = vector.extract_strided_slice %66 {offsets = [0, 512], sizes = [1, 256], strides = [1, 1]} : vector<1x768xf32> to vector<1x256xf32>
    %86 = vector.extract_strided_slice %68 {offsets = [0, 512], sizes = [1, 256], strides = [1, 1]} : vector<1x768xf32> to vector<1x256xf32>
    %87 = arith.mulf %76, %86 : vector<1x256xf32>
    %88 = arith.addf %85, %87 : vector<1x256xf32>
    %89 = math.tanh %88 : vector<1x256xf32>
    %cst_24 = arith.constant 1.000000e+00 : f32
    %90 = vector.broadcast %cst_24 : f32 to vector<1x256xf32>
    %91 = arith.subf %90, %84 : vector<1x256xf32>
    %92 = arith.mulf %91, %89 : vector<1x256xf32>
    %93 = arith.mulf %84, %64 : vector<1x256xf32>
    %94 = arith.addf %92, %93 : vector<1x256xf32>
    %c2_25 = arith.constant 2 : index
    %c0_26 = arith.constant 0 : index
    %95 = vector.load %arg5[%c2_25, %c0_26] : memref<8x256xf32, #tpu.memory_space<vmem>>, vector<1x256xf32>
    tpu.vector_store %arg5[%c2_25, %c0_26], %94 {strides = array<i32>} : memref<8x256xf32, #tpu.memory_space<vmem>>, vector<1x256xf32>,
    %c3 = arith.constant 3 : index
    %c0_27 = arith.constant 0 : index
    %96 = vector.load %arg1[%c3, %c0_27] : memref<8x768xf32, #tpu.memory_space<vmem>>, vector<1x768xf32>
    %cst_28 = arith.constant dense<0.000000e+00> : vector<1x768xf32>
    %97 = tpu.matmul %94, %3, %cst_28 {dimension_numbers = #tpu.dot_dimension_numbers<[1], [0], [0], [1], [0, 0, 1, 1], [], []>} : vector<1x256xf32>, vector<256x768xf32>, vector<1x768xf32> -> vector<1x768xf32>
    %98 = arith.addf %97, %4 : vector<1x768xf32>
    %99 = vector.extract_strided_slice %96 {offsets = [0, 0], sizes = [1, 256], strides = [1, 1]} : vector<1x768xf32> to vector<1x256xf32>
    %100 = vector.extract_strided_slice %98 {offsets = [0, 0], sizes = [1, 256], strides = [1, 1]} : vector<1x768xf32> to vector<1x256xf32>
    %101 = arith.addf %99, %100 : vector<1x256xf32>
    %102 = arith.negf %101 : vector<1x256xf32>
    %103 = math.exp %102 : vector<1x256xf32>
    %cst_29 = arith.constant 1.000000e+00 : f32
    %104 = vector.broadcast %cst_29 : f32 to vector<1x256xf32>
    %105 = arith.addf %104, %103 : vector<1x256xf32>
    %106 = arith.divf %104, %105 : vector<1x256xf32>
    %107 = vector.extract_strided_slice %96 {offsets = [0, 256], sizes = [1, 256], strides = [1, 1]} : vector<1x768xf32> to vector<1x256xf32>
    %108 = vector.extract_strided_slice %98 {offsets = [0, 256], sizes = [1, 256], strides = [1, 1]} : vector<1x768xf32> to vector<1x256xf32>
    %109 = arith.addf %107, %108 : vector<1x256xf32>
    %110 = arith.negf %109 : vector<1x256xf32>
    %111 = math.exp %110 : vector<1x256xf32>
    %cst_30 = arith.constant 1.000000e+00 : f32
    %112 = vector.broadcast %cst_30 : f32 to vector<1x256xf32>
    %113 = arith.addf %112, %111 : vector<1x256xf32>
    %114 = arith.divf %112, %113 : vector<1x256xf32>
    %115 = vector.extract_strided_slice %96 {offsets = [0, 512], sizes = [1, 256], strides = [1, 1]} : vector<1x768xf32> to vector<1x256xf32>
    %116 = vector.extract_strided_slice %98 {offsets = [0, 512], sizes = [1, 256], strides = [1, 1]} : vector<1x768xf32> to vector<1x256xf32>
    %117 = arith.mulf %106, %116 : vector<1x256xf32>
    %118 = arith.addf %115, %117 : vector<1x256xf32>
    %119 = math.tanh %118 : vector<1x256xf32>
    %cst_31 = arith.constant 1.000000e+00 : f32
    %120 = vector.broadcast %cst_31 : f32 to vector<1x256xf32>
    %121 = arith.subf %120, %114 : vector<1x256xf32>
    %122 = arith.mulf %121, %119 : vector<1x256xf32>
    %123 = arith.mulf %114, %94 : vector<1x256xf32>
    %124 = arith.addf %122, %123 : vector<1x256xf32>
    %c3_32 = arith.constant 3 : index
    %c0_33 = arith.constant 0 : index
    %125 = vector.load %arg5[%c3_32, %c0_33] : memref<8x256xf32, #tpu.memory_space<vmem>>, vector<1x256xf32>
    tpu.vector_store %arg5[%c3_32, %c0_33], %124 {strides = array<i32>} : memref<8x256xf32, #tpu.memory_space<vmem>>, vector<1x256xf32>,
    %c4 = arith.constant 4 : index
    %c0_34 = arith.constant 0 : index
    %126 = vector.load %arg1[%c4, %c0_34] : memref<8x768xf32, #tpu.memory_space<vmem>>, vector<1x768xf32>
    %cst_35 = arith.constant dense<0.000000e+00> : vector<1x768xf32>
    %127 = tpu.matmul %124, %3, %cst_35 {dimension_numbers = #tpu.dot_dimension_numbers<[1], [0], [0], [1], [0, 0, 1, 1], [], []>} : vector<1x256xf32>, vector<256x768xf32>, vector<1x768xf32> -> vector<1x768xf32>
    %128 = arith.addf %127, %4 : vector<1x768xf32>
    %129 = vector.extract_strided_slice %126 {offsets = [0, 0], sizes = [1, 256], strides = [1, 1]} : vector<1x768xf32> to vector<1x256xf32>
    %130 = vector.extract_strided_slice %128 {offsets = [0, 0], sizes = [1, 256], strides = [1, 1]} : vector<1x768xf32> to vector<1x256xf32>
    %131 = arith.addf %129, %130 : vector<1x256xf32>
    %132 = arith.negf %131 : vector<1x256xf32>
    %133 = math.exp %132 : vector<1x256xf32>
    %cst_36 = arith.constant 1.000000e+00 : f32
    %134 = vector.broadcast %cst_36 : f32 to vector<1x256xf32>
    %135 = arith.addf %134, %133 : vector<1x256xf32>
    %136 = arith.divf %134, %135 : vector<1x256xf32>
    %137 = vector.extract_strided_slice %126 {offsets = [0, 256], sizes = [1, 256], strides = [1, 1]} : vector<1x768xf32> to vector<1x256xf32>
    %138 = vector.extract_strided_slice %128 {offsets = [0, 256], sizes = [1, 256], strides = [1, 1]} : vector<1x768xf32> to vector<1x256xf32>
    %139 = arith.addf %137, %138 : vector<1x256xf32>
    %140 = arith.negf %139 : vector<1x256xf32>
    %141 = math.exp %140 : vector<1x256xf32>
    %cst_37 = arith.constant 1.000000e+00 : f32
    %142 = vector.broadcast %cst_37 : f32 to vector<1x256xf32>
    %143 = arith.addf %142, %141 : vector<1x256xf32>
    %144 = arith.divf %142, %143 : vector<1x256xf32>
    %145 = vector.extract_strided_slice %126 {offsets = [0, 512], sizes = [1, 256], strides = [1, 1]} : vector<1x768xf32> to vector<1x256xf32>
    %146 = vector.extract_strided_slice %128 {offsets = [0, 512], sizes = [1, 256], strides = [1, 1]} : vector<1x768xf32> to vector<1x256xf32>
    %147 = arith.mulf %136, %146 : vector<1x256xf32>
    %148 = arith.addf %145, %147 : vector<1x256xf32>
    %149 = math.tanh %148 : vector<1x256xf32>
    %cst_38 = arith.constant 1.000000e+00 : f32
    %150 = vector.broadcast %cst_38 : f32 to vector<1x256xf32>
    %151 = arith.subf %150, %144 : vector<1x256xf32>
    %152 = arith.mulf %151, %149 : vector<1x256xf32>
    %153 = arith.mulf %144, %124 : vector<1x256xf32>
    %154 = arith.addf %152, %153 : vector<1x256xf32>
    %c4_39 = arith.constant 4 : index
    %c0_40 = arith.constant 0 : index
    %155 = vector.load %arg5[%c4_39, %c0_40] : memref<8x256xf32, #tpu.memory_space<vmem>>, vector<1x256xf32>
    tpu.vector_store %arg5[%c4_39, %c0_40], %154 {strides = array<i32>} : memref<8x256xf32, #tpu.memory_space<vmem>>, vector<1x256xf32>,
    %c5 = arith.constant 5 : index
    %c0_41 = arith.constant 0 : index
    %156 = vector.load %arg1[%c5, %c0_41] : memref<8x768xf32, #tpu.memory_space<vmem>>, vector<1x768xf32>
    %cst_42 = arith.constant dense<0.000000e+00> : vector<1x768xf32>
    %157 = tpu.matmul %154, %3, %cst_42 {dimension_numbers = #tpu.dot_dimension_numbers<[1], [0], [0], [1], [0, 0, 1, 1], [], []>} : vector<1x256xf32>, vector<256x768xf32>, vector<1x768xf32> -> vector<1x768xf32>
    %158 = arith.addf %157, %4 : vector<1x768xf32>
    %159 = vector.extract_strided_slice %156 {offsets = [0, 0], sizes = [1, 256], strides = [1, 1]} : vector<1x768xf32> to vector<1x256xf32>
    %160 = vector.extract_strided_slice %158 {offsets = [0, 0], sizes = [1, 256], strides = [1, 1]} : vector<1x768xf32> to vector<1x256xf32>
    %161 = arith.addf %159, %160 : vector<1x256xf32>
    %162 = arith.negf %161 : vector<1x256xf32>
    %163 = math.exp %162 : vector<1x256xf32>
    %cst_43 = arith.constant 1.000000e+00 : f32
    %164 = vector.broadcast %cst_43 : f32 to vector<1x256xf32>
    %165 = arith.addf %164, %163 : vector<1x256xf32>
    %166 = arith.divf %164, %165 : vector<1x256xf32>
    %167 = vector.extract_strided_slice %156 {offsets = [0, 256], sizes = [1, 256], strides = [1, 1]} : vector<1x768xf32> to vector<1x256xf32>
    %168 = vector.extract_strided_slice %158 {offsets = [0, 256], sizes = [1, 256], strides = [1, 1]} : vector<1x768xf32> to vector<1x256xf32>
    %169 = arith.addf %167, %168 : vector<1x256xf32>
    %170 = arith.negf %169 : vector<1x256xf32>
    %171 = math.exp %170 : vector<1x256xf32>
    %cst_44 = arith.constant 1.000000e+00 : f32
    %172 = vector.broadcast %cst_44 : f32 to vector<1x256xf32>
    %173 = arith.addf %172, %171 : vector<1x256xf32>
    %174 = arith.divf %172, %173 : vector<1x256xf32>
    %175 = vector.extract_strided_slice %156 {offsets = [0, 512], sizes = [1, 256], strides = [1, 1]} : vector<1x768xf32> to vector<1x256xf32>
    %176 = vector.extract_strided_slice %158 {offsets = [0, 512], sizes = [1, 256], strides = [1, 1]} : vector<1x768xf32> to vector<1x256xf32>
    %177 = arith.mulf %166, %176 : vector<1x256xf32>
    %178 = arith.addf %175, %177 : vector<1x256xf32>
    %179 = math.tanh %178 : vector<1x256xf32>
    %cst_45 = arith.constant 1.000000e+00 : f32
    %180 = vector.broadcast %cst_45 : f32 to vector<1x256xf32>
    %181 = arith.subf %180, %174 : vector<1x256xf32>
    %182 = arith.mulf %181, %179 : vector<1x256xf32>
    %183 = arith.mulf %174, %154 : vector<1x256xf32>
    %184 = arith.addf %182, %183 : vector<1x256xf32>
    %c5_46 = arith.constant 5 : index
    %c0_47 = arith.constant 0 : index
    %185 = vector.load %arg5[%c5_46, %c0_47] : memref<8x256xf32, #tpu.memory_space<vmem>>, vector<1x256xf32>
    tpu.vector_store %arg5[%c5_46, %c0_47], %184 {strides = array<i32>} : memref<8x256xf32, #tpu.memory_space<vmem>>, vector<1x256xf32>,
    %c6 = arith.constant 6 : index
    %c0_48 = arith.constant 0 : index
    %186 = vector.load %arg1[%c6, %c0_48] : memref<8x768xf32, #tpu.memory_space<vmem>>, vector<1x768xf32>
    %cst_49 = arith.constant dense<0.000000e+00> : vector<1x768xf32>
    %187 = tpu.matmul %184, %3, %cst_49 {dimension_numbers = #tpu.dot_dimension_numbers<[1], [0], [0], [1], [0, 0, 1, 1], [], []>} : vector<1x256xf32>, vector<256x768xf32>, vector<1x768xf32> -> vector<1x768xf32>
    %188 = arith.addf %187, %4 : vector<1x768xf32>
    %189 = vector.extract_strided_slice %186 {offsets = [0, 0], sizes = [1, 256], strides = [1, 1]} : vector<1x768xf32> to vector<1x256xf32>
    %190 = vector.extract_strided_slice %188 {offsets = [0, 0], sizes = [1, 256], strides = [1, 1]} : vector<1x768xf32> to vector<1x256xf32>
    %191 = arith.addf %189, %190 : vector<1x256xf32>
    %192 = arith.negf %191 : vector<1x256xf32>
    %193 = math.exp %192 : vector<1x256xf32>
    %cst_50 = arith.constant 1.000000e+00 : f32
    %194 = vector.broadcast %cst_50 : f32 to vector<1x256xf32>
    %195 = arith.addf %194, %193 : vector<1x256xf32>
    %196 = arith.divf %194, %195 : vector<1x256xf32>
    %197 = vector.extract_strided_slice %186 {offsets = [0, 256], sizes = [1, 256], strides = [1, 1]} : vector<1x768xf32> to vector<1x256xf32>
    %198 = vector.extract_strided_slice %188 {offsets = [0, 256], sizes = [1, 256], strides = [1, 1]} : vector<1x768xf32> to vector<1x256xf32>
    %199 = arith.addf %197, %198 : vector<1x256xf32>
    %200 = arith.negf %199 : vector<1x256xf32>
    %201 = math.exp %200 : vector<1x256xf32>
    %cst_51 = arith.constant 1.000000e+00 : f32
    %202 = vector.broadcast %cst_51 : f32 to vector<1x256xf32>
    %203 = arith.addf %202, %201 : vector<1x256xf32>
    %204 = arith.divf %202, %203 : vector<1x256xf32>
    %205 = vector.extract_strided_slice %186 {offsets = [0, 512], sizes = [1, 256], strides = [1, 1]} : vector<1x768xf32> to vector<1x256xf32>
    %206 = vector.extract_strided_slice %188 {offsets = [0, 512], sizes = [1, 256], strides = [1, 1]} : vector<1x768xf32> to vector<1x256xf32>
    %207 = arith.mulf %196, %206 : vector<1x256xf32>
    %208 = arith.addf %205, %207 : vector<1x256xf32>
    %209 = math.tanh %208 : vector<1x256xf32>
    %cst_52 = arith.constant 1.000000e+00 : f32
    %210 = vector.broadcast %cst_52 : f32 to vector<1x256xf32>
    %211 = arith.subf %210, %204 : vector<1x256xf32>
    %212 = arith.mulf %211, %209 : vector<1x256xf32>
    %213 = arith.mulf %204, %184 : vector<1x256xf32>
    %214 = arith.addf %212, %213 : vector<1x256xf32>
    %c6_53 = arith.constant 6 : index
    %c0_54 = arith.constant 0 : index
    %215 = vector.load %arg5[%c6_53, %c0_54] : memref<8x256xf32, #tpu.memory_space<vmem>>, vector<1x256xf32>
    tpu.vector_store %arg5[%c6_53, %c0_54], %214 {strides = array<i32>} : memref<8x256xf32, #tpu.memory_space<vmem>>, vector<1x256xf32>,
    %c7 = arith.constant 7 : index
    %c0_55 = arith.constant 0 : index
    %216 = vector.load %arg1[%c7, %c0_55] : memref<8x768xf32, #tpu.memory_space<vmem>>, vector<1x768xf32>
    %cst_56 = arith.constant dense<0.000000e+00> : vector<1x768xf32>
    %217 = tpu.matmul %214, %3, %cst_56 {dimension_numbers = #tpu.dot_dimension_numbers<[1], [0], [0], [1], [0, 0, 1, 1], [], []>} : vector<1x256xf32>, vector<256x768xf32>, vector<1x768xf32> -> vector<1x768xf32>
    %218 = arith.addf %217, %4 : vector<1x768xf32>
    %219 = vector.extract_strided_slice %216 {offsets = [0, 0], sizes = [1, 256], strides = [1, 1]} : vector<1x768xf32> to vector<1x256xf32>
    %220 = vector.extract_strided_slice %218 {offsets = [0, 0], sizes = [1, 256], strides = [1, 1]} : vector<1x768xf32> to vector<1x256xf32>
    %221 = arith.addf %219, %220 : vector<1x256xf32>
    %222 = arith.negf %221 : vector<1x256xf32>
    %223 = math.exp %222 : vector<1x256xf32>
    %cst_57 = arith.constant 1.000000e+00 : f32
    %224 = vector.broadcast %cst_57 : f32 to vector<1x256xf32>
    %225 = arith.addf %224, %223 : vector<1x256xf32>
    %226 = arith.divf %224, %225 : vector<1x256xf32>
    %227 = vector.extract_strided_slice %216 {offsets = [0, 256], sizes = [1, 256], strides = [1, 1]} : vector<1x768xf32> to vector<1x256xf32>
    %228 = vector.extract_strided_slice %218 {offsets = [0, 256], sizes = [1, 256], strides = [1, 1]} : vector<1x768xf32> to vector<1x256xf32>
    %229 = arith.addf %227, %228 : vector<1x256xf32>
    %230 = arith.negf %229 : vector<1x256xf32>
    %231 = math.exp %230 : vector<1x256xf32>
    %cst_58 = arith.constant 1.000000e+00 : f32
    %232 = vector.broadcast %cst_58 : f32 to vector<1x256xf32>
    %233 = arith.addf %232, %231 : vector<1x256xf32>
    %234 = arith.divf %232, %233 : vector<1x256xf32>
    %235 = vector.extract_strided_slice %216 {offsets = [0, 512], sizes = [1, 256], strides = [1, 1]} : vector<1x768xf32> to vector<1x256xf32>
    %236 = vector.extract_strided_slice %218 {offsets = [0, 512], sizes = [1, 256], strides = [1, 1]} : vector<1x768xf32> to vector<1x256xf32>
    %237 = arith.mulf %226, %236 : vector<1x256xf32>
    %238 = arith.addf %235, %237 : vector<1x256xf32>
    %239 = math.tanh %238 : vector<1x256xf32>
    %cst_59 = arith.constant 1.000000e+00 : f32
    %240 = vector.broadcast %cst_59 : f32 to vector<1x256xf32>
    %241 = arith.subf %240, %234 : vector<1x256xf32>
    %242 = arith.mulf %241, %239 : vector<1x256xf32>
    %243 = arith.mulf %234, %214 : vector<1x256xf32>
    %244 = arith.addf %242, %243 : vector<1x256xf32>
    %c7_60 = arith.constant 7 : index
    %c0_61 = arith.constant 0 : index
    %245 = vector.load %arg5[%c7_60, %c0_61] : memref<8x256xf32, #tpu.memory_space<vmem>>, vector<1x256xf32>
    tpu.vector_store %arg5[%c7_60, %c0_61], %244 {strides = array<i32>} : memref<8x256xf32, #tpu.memory_space<vmem>>, vector<1x256xf32>,
    %c0_62 = arith.constant 0 : index
    %c0_63 = arith.constant 0 : index
    %246 = vector.load %arg6[%c0_62, %c0_63] : memref<1x256xf32, #tpu.memory_space<vmem>>, vector<1x256xf32>
    tpu.vector_store %arg6[%c0_62, %c0_63], %244 {strides = array<i32>} : memref<1x256xf32, #tpu.memory_space<vmem>>, vector<1x256xf32>,
    return
  }
  func.func @transform_0(%arg0: i32) -> (i32, i32) {
    %c0_i32 = arith.constant 0 : i32
    %c0_i32_0 = arith.constant 0 : i32
    return %arg0, %c0_i32 : i32, i32
  }
  func.func @transform_1(%arg0: i32) -> (i32, i32) {
    %c0_i32 = arith.constant 0 : i32
    %c0_i32_0 = arith.constant 0 : i32
    %c0_i32_1 = arith.constant 0 : i32
    return %c0_i32, %c0_i32_0 : i32, i32
  }
  func.func @transform_2(%arg0: i32) -> (i32, i32) {
    %c0_i32 = arith.constant 0 : i32
    %c0_i32_0 = arith.constant 0 : i32
    %c0_i32_1 = arith.constant 0 : i32
    return %c0_i32, %c0_i32_0 : i32, i32
  }
  func.func @transform_3(%arg0: i32) -> (i32, i32) {
    %c0_i32 = arith.constant 0 : i32
    %c0_i32_0 = arith.constant 0 : i32
    %c0_i32_1 = arith.constant 0 : i32
    return %c0_i32, %c0_i32_0 : i32, i32
  }
  func.func @transform_4(%arg0: i32) -> (i32, i32) {
    %c0_i32 = arith.constant 0 : i32
    %c0_i32_0 = arith.constant 0 : i32
    return %arg0, %c0_i32 : i32, i32
  }
}

</mosaic_0001>

<llo_original>
// kernel: _encoder_gru_sequence_jit.2
$region0: #{_encoder_gru_sequence_jit.2}
  #allocation0 [shape = 'u32[]', space=smem, size = 0x4, offset = 0x4, fixed_abs, tag = 'smem constant byte address 0x4 - core index']
  #allocation1 [shape = 'u32[144,128]{1,0:T(1,128)}', space=vmem, size = 0x12000, scoped, tag = 'internal scratch']
  %s0 = inlined_call_operand.vmem [shape: f32[24,256], index: 0, kind: input, shape index: {}]
  %s1 = inlined_call_operand.hbm [shape: f32[256,768], index: 1, kind: input, shape index: {}]
  %s2 = inlined_call_operand.hbm [shape: f32[1,768], index: 2, kind: input, shape index: {}]
  %s3 = inlined_call_operand.vmem [shape: f32[24,768], index: 3, kind: output, shape index: {}]
  %s4 = sld [smem:[#allocation0]]
  $region53: #{_encoder_gru_sequence_jit.2} parent=0
    _
  %s6 = ssub.s32 1, %s4
  %s7 = scalar_select 0, %s6, %s4
  $region1: #{_encoder_gru_sequence_jit.2} parent=0
    #allocation2 [shape = 'u8[786432]{0}', space=vmem, size = 0xc0000, scoped, tag = 'input window, operand 1, single buffered']
    #allocation3 [shape = 's32[2]{0}', space=sflag, size = 0x8, scoped, tag = 'scoped memory for _encoder_gru_sequence_jit.2']
    #allocation4 [shape = 'u8[3072]{0}', space=vmem, size = 0xc00, scoped, tag = 'input window, operand 2, single buffered']
    #allocation5 [shape = 's32[1]{0}', space=sflag, size = 0x4, scoped, tag = 'scoped memory for _encoder_gru_sequence_jit.2']
    %8 = vsyncpa [#allocation3], 0
    %9 = vsyncpa [#allocation5], 0
    loop: start=0, step=1, limit=5
    $region2: #{_encoder_gru_sequence_jit.2} parent=1 // loop_pre_header
      _
    $region3: #{_encoder_gru_sequence_jit.2} parent=1 // loop_header
      %s11 = sphi 0, %s15
      %p12 = scmp.ge.s32.totalorder %s11, 5
      %s21 = sphi 0, %s23
      %s24 = sphi 0, %s21
      %s25 = sphi 0, %s24
      %s41 = sphi 0, %s25
      %s45 = sphi 0, %s45
      %s47 = sphi 0, %s45
      %s48 = sphi 0, %s47
      %s62 = sphi 0, %s48
      %s66 = sphi 0, %s66
      %s68 = sphi 0, %s66
      %s69 = sphi 0, %s68
      %s83 = sphi 0, %s69
      %s89 = sphi 0, %s91
      %s92 = sphi 0, %s89
      %s93 = sphi 0, %s92
      %s109 = sphi 0, %s93
    $region4: #{_encoder_gru_sequence_jit.2} parent=1 // loop_header_branch
      %14 = sbr.rel (%p12) target = $region8
    $region5: #{_encoder_gru_sequence_jit.2} parent=1 // loop_body
      %s16 = ssub.s32 %s11, 1
      %s17 = ssub.s32 %s11, 2
      %s18 = sadd.s32 %s11, 1
      %s19 = ssub.s32 %s11, %s18
      %p20 = scmp.eq.s32.totalorder %s19, 0
      %s22 = sadd.s32 %s21, 1
      %s23 = scalar_select %p20, %s21, %s22
      %p26 = pneg %p20
      %p27 = scmp.eq.s32.totalorder %s11, 2
      %p28 = por %p26, %p27
      %p29 = scmp.ne.s32.totalorder %s21, %s24
      %p30 = scmp.eq.s32.totalorder %s11, 0
      %p31 = por %p29, %p30
      %p32 = scmp.ne.s32.totalorder %s21, %s24
      %p33 = scmp.eq.s32.totalorder %s16, 2
      %p34 = por %p32, %p33
      %p35 = scmp.ne.s32.totalorder %s24, %s25
      %p36 = scmp.eq.s32.totalorder %s16, 0
      %p37 = por %p35, %p36
      %p38 = scmp.ne.s32.totalorder %s24, %s25
      %p39 = scmp.eq.s32.totalorder %s17, 2
      %p40 = por %p38, %p39
      %p42 = scmp.ne.s32.totalorder %s25, %s41
      %p43 = scmp.eq.s32.totalorder %s17, 0
      %p44 = por %p42, %p43
      %s46 = sadd.s32 %s45, 1
      %p49 = scmp.eq.s32.totalorder %s11, 2
      %p50 = scmp.ne.s32.totalorder %s45, %s47
      %p51 = scmp.eq.s32.totalorder %s11, 0
      %p52 = por %p50, %p51
      %p53 = scmp.ne.s32.totalorder %s45, %s47
      %p54 = scmp.eq.s32.totalorder %s16, 2
      %p55 = por %p53, %p54
      %p56 = scmp.ne.s32.totalorder %s47, %s48
      %p57 = scmp.eq.s32.totalorder %s16, 0
      %p58 = por %p56, %p57
      %p59 = scmp.ne.s32.totalorder %s47, %s48
      %p60 = scmp.eq.s32.totalorder %s17, 2
      %p61 = por %p59, %p60
      %p63 = scmp.ne.s32.totalorder %s48, %s62
      %p64 = scmp.eq.s32.totalorder %s17, 0
      %p65 = por %p63, %p64
      %s67 = sadd.s32 %s66, 1
      %p70 = scmp.eq.s32.totalorder %s11, 2
      %p71 = scmp.ne.s32.totalorder %s66, %s68
      %p72 = scmp.eq.s32.totalorder %s11, 0
      %p73 = por %p71, %p72
      %p74 = scmp.ne.s32.totalorder %s66, %s68
      %p75 = scmp.eq.s32.totalorder %s16, 2
      %p76 = por %p74, %p75
      %p77 = scmp.ne.s32.totalorder %s68, %s69
      %p78 = scmp.eq.s32.totalorder %s16, 0
      %p79 = por %p77, %p78
      %p80 = scmp.ne.s32.totalorder %s68, %s69
      %p81 = scmp.eq.s32.totalorder %s17, 2
      %p82 = por %p80, %p81
      %p84 = scmp.ne.s32.totalorder %s69, %s83
      %p85 = scmp.eq.s32.totalorder %s17, 0
      %p86 = por %p84, %p85
      %s87 = ssub.s32 %s11, %s18
      %p88 = scmp.eq.s32.totalorder %s87, 0
      %s90 = sadd.s32 %s89, 1
      %s91 = scalar_select %p88, %s89, %s90
      %p94 = pneg %p88
      %p95 = scmp.eq.s32.totalorder %s11, 2
      %p96 = por %p94, %p95
      %p97 = scmp.ne.s32.totalorder %s89, %s92
      %p98 = scmp.eq.s32.totalorder %s11, 0
      %p99 = por %p97, %p98
      %p100 = scmp.ne.s32.totalorder %s89, %s92
      %p101 = scmp.eq.s32.totalorder %s16, 2
      %p102 = por %p100, %p101
      %p103 = scmp.ne.s32.totalorder %s92, %s93
      %p104 = scmp.eq.s32.totalorder %s16, 0
      %p105 = por %p103, %p104
      %p106 = scmp.ne.s32.totalorder %s92, %s93
      %p107 = scmp.eq.s32.totalorder %s17, 2
      %p108 = por %p106, %p107
      %p110 = scmp.ne.s32.totalorder %s93, %s109
      %p111 = scmp.eq.s32.totalorder %s17, 0
      %p112 = por %p110, %p111
      %p113 = scmp.le.s32.totalorder 1, %s11
      %p114 = scmp.lt.s32.totalorder %s11, 4
      %p115 = pnand %p113, %p114
      %p116 = pneg %p115
      // Predicated region
      $region9: #{_encoder_gru_sequence_jit.2} parent=5 // pred_check
        _
      $region10: #{_encoder_gru_sequence_jit.2} parent=5 // pred_check_branch
        %118 = sbr.rel (%p115) target = $region12
      $region11: #{_encoder_gru_sequence_jit.2} parent=5 // pred_region
        %s119 = ssub.s32 %s11, 1
        // Predicated region
        $region13: #{_encoder_gru_sequence_jit.2} parent=11 // pred_check
          %p120 = pneg %p58
        $region14: #{_encoder_gru_sequence_jit.2} parent=11 // pred_check_branch
          %122 = sbr.rel (%p120) target = $region16
        $region15: #{_encoder_gru_sequence_jit.2} parent=11 // pred_region
          %s124 = ssub.s32 24576, 24576
          %125 = vsyncadd [#allocation3], %s124
          %s126 = sshll.u32 [#allocation2], 4
          %s127 = int_to_ptr.vmem [resolvable:$true] %s126
          %132 = dma.hbm_to_vmem [thread:$0]  %s1, 24576, %s127, [#allocation3], 768, 768, 48
        $region16: #{_encoder_gru_sequence_jit.2} parent=11 // pred_fallthru
          _
        // Predicated region
        $region17: #{_encoder_gru_sequence_jit.2} parent=11 // pred_check
          %p133 = pneg %p79
        $region18: #{_encoder_gru_sequence_jit.2} parent=11 // pred_check_branch
          %135 = sbr.rel (%p133) target = $region20
        $region19: #{_encoder_gru_sequence_jit.2} parent=11 // pred_region
          %s137 = ssub.s32 96, 96
          %138 = vsyncadd [#allocation5], %s137
          %s140 = sshll.u32 [#allocation4], 4
          %s141 = int_to_ptr.vmem [resolvable:$true] %s140
          %143 = dma.hbm_to_vmem [thread:$0]  %s2, 96, %s141, [#allocation5]
        $region20: #{_encoder_gru_sequence_jit.2} parent=11 // pred_fallthru
          _
      $region12: #{_encoder_gru_sequence_jit.2} parent=5 // pred_fallthru
        _
      %p144 = scmp.lt.s32.totalorder %s11, 3
      // Predicated region
      $region21: #{_encoder_gru_sequence_jit.2} parent=5 // pred_check
        %p145 = pneg %p144
      $region22: #{_encoder_gru_sequence_jit.2} parent=5 // pred_check_branch
        %147 = sbr.rel (%p145) target = $region24
      $region23: #{_encoder_gru_sequence_jit.2} parent=5 // pred_region
        // Predicated region
        $region25: #{_encoder_gru_sequence_jit.2} parent=23 // pred_check
          %p148 = pneg %p31
        $region26: #{_encoder_gru_sequence_jit.2} parent=23 // pred_check_branch
          %150 = sbr.rel (%p148) target = $region28
        $region27: #{_encoder_gru_sequence_jit.2} parent=23 // pred_region
          %p151 = scmp.lt.s32.totalorder %s11, 2
          %s152 = scalar_select %p151, %s11, 2
          %s153 = smul.addr %s152, 2
          %s154 = smul.addr %s153, 8
          %s155 = scalar_lea.vmem %s0, %s154
        $region28: #{_encoder_gru_sequence_jit.2} parent=23 // pred_fallthru
          _
      $region24: #{_encoder_gru_sequence_jit.2} parent=5 // pred_fallthru
        _
      %p156 = scmp.le.s32.totalorder 1, %s11
      %p157 = scmp.lt.s32.totalorder %s11, 4
      %p158 = pnand %p156, %p157
      %p159 = pneg %p158
      // Predicated region
      $region29: #{_encoder_gru_sequence_jit.2} parent=5 // pred_check
        _
      $region30: #{_encoder_gru_sequence_jit.2} parent=5 // pred_check_branch
        %161 = sbr.rel (%p158) target = $region32
      $region31: #{_encoder_gru_sequence_jit.2} parent=5 // pred_region
        %s162 = ssub.s32 %s11, 1
        // Predicated region
        $region33: #{_encoder_gru_sequence_jit.2} parent=31 // pred_check
          %p163 = pneg %p58
        $region34: #{_encoder_gru_sequence_jit.2} parent=31 // pred_check_branch
          %165 = sbr.rel (%p163) target = $region36
        $region35: #{_encoder_gru_sequence_jit.2} parent=31 // pred_region
          %166 = dma.done [#allocation3], 24576
        $region36: #{_encoder_gru_sequence_jit.2} parent=31 // pred_fallthru
          _
        // Predicated region
        $region37: #{_encoder_gru_sequence_jit.2} parent=31 // pred_check
          %p167 = pneg %p79
        $region38: #{_encoder_gru_sequence_jit.2} parent=31 // pred_check_branch
          %169 = sbr.rel (%p167) target = $region40
        $region39: #{_encoder_gru_sequence_jit.2} parent=31 // pred_region
          %170 = dma.done [#allocation5], 96
        $region40: #{_encoder_gru_sequence_jit.2} parent=31 // pred_fallthru
          _
        %p171 = scmp.lt.s32.totalorder %s16, 2
        %s172 = scalar_select %p171, %s16, 2
        %s173 = smul.addr %s172, 2
        %s174 = smul.addr %s173, 8
        %s175 = scalar_lea.vmem %s0, %s174
        %p176 = pneg %p37
        %p177 = pneg %p34
        %p178 = pneg %p58
        %p179 = pneg %p55
        %p180 = pneg %p79
        %p181 = pneg %p76
        %p182 = pneg %p105
        %p183 = pneg %p102
        %p184 = scmp.lt.s32.totalorder %s16, 2
        %s185 = scalar_select %p184, %s16, 2
        %s186 = smul.addr %s185, 6
        %s187 = smul.addr %s186, 8
        %s188 = scalar_lea.vmem %s3, %s187
        %p189 = scmp.lt.s32.totalorder %s16, 2
        %s190 = scalar_select %p189, %s16, 2
        %s191 = smul.addr %s190, 2
        %s192 = smul.addr %s191, 8
        %s193 = scalar_lea.vmem %s0, %s192
        %p194 = scmp.lt.s32.totalorder %s16, 2
        %s195 = scalar_select %p194, %s16, 2
        %s196 = smul.addr %s195, 6
        %s197 = smul.addr %s196, 8
        %s198 = scalar_lea.vmem %s3, %s197
        %v199 = vld [vmem:[%s193] sm:$0xff]
        %v200 = vld [vmem:[%s193 + $0x8] sm:$0xff]
        %v201 = vld [vmem:[#allocation2] sm:$0xff]
        %v202 = vld [vmem:[#allocation2 + $0x8] sm:$0xff]
        %v203 = vld [vmem:[#allocation2 + $0x10] sm:$0xff]
        %v204 = vld [vmem:[#allocation2 + $0x18] sm:$0xff]
        %v205 = vld [vmem:[#allocation2 + $0x20] sm:$0xff]
        %v206 = vld [vmem:[#allocation2 + $0x28] sm:$0xff]
        %v207 = vld [vmem:[#allocation2 + $0x30] sm:$0xff]
        %v208 = vld [vmem:[#allocation2 + $0x38] sm:$0xff]
        %v209 = vld [vmem:[#allocation2 + $0x40] sm:$0xff]
        %v210 = vld [vmem:[#allocation2 + $0x48] sm:$0xff]
        %v211 = vld [vmem:[#allocation2 + $0x50] sm:$0xff]
        %v212 = vld [vmem:[#allocation2 + $0x58] sm:$0xff]
        %v213 = vld [vmem:[#allocation2 + $0x60] sm:$0xff]
        %v214 = vld [vmem:[#allocation2 + $0x68] sm:$0xff]
        %v215 = vld [vmem:[#allocation2 + $0x70] sm:$0xff]
        %v216 = vld [vmem:[#allocation2 + $0x78] sm:$0xff]
        %v217 = vld [vmem:[#allocation2 + $0x80] sm:$0xff]
        %v218 = vld [vmem:[#allocation2 + $0x88] sm:$0xff]
        %v219 = vld [vmem:[#allocation2 + $0x90] sm:$0xff]
        %v220 = vld [vmem:[#allocation2 + $0x98] sm:$0xff]
        %v221 = vld [vmem:[#allocation2 + $0xa0] sm:$0xff]
        %v222 = vld [vmem:[#allocation2 + $0xa8] sm:$0xff]
        %v223 = vld [vmem:[#allocation2 + $0xb0] sm:$0xff]
        %v224 = vld [vmem:[#allocation2 + $0xb8] sm:$0xff]
        %v225 = vld [vmem:[#allocation2 + $0xc0] sm:$0xff]
        %v226 = vld [vmem:[#allocation2 + $0xc8] sm:$0xff]
        %v227 = vld [vmem:[#allocation2 + $0xd0] sm:$0xff]
        %v228 = vld [vmem:[#allocation2 + $0xd8] sm:$0xff]
        %v229 = vld [vmem:[#allocation2 + $0xe0] sm:$0xff]
        %v230 = vld [vmem:[#allocation2 + $0xe8] sm:$0xff]
        %v231 = vld [vmem:[#allocation2 + $0xf0] sm:$0xff]
        %v232 = vld [vmem:[#allocation2 + $0xf8] sm:$0xff]
        %v233 = vld [vmem:[#allocation2 + $0x100] sm:$0xff]
        %v234 = vld [vmem:[#allocation2 + $0x108] sm:$0xff]
        %v235 = vld [vmem:[#allocation2 + $0x110] sm:$0xff]
        %v236 = vld [vmem:[#allocation2 + $0x118] sm:$0xff]
        %v237 = vld [vmem:[#allocation2 + $0x120] sm:$0xff]
        %v238 = vld [vmem:[#allocation2 + $0x128] sm:$0xff]
        %v239 = vld [vmem:[#allocation2 + $0x130] sm:$0xff]
        %v240 = vld [vmem:[#allocation2 + $0x138] sm:$0xff]
        %v241 = vld [vmem:[#allocation2 + $0x140] sm:$0xff]
        %v242 = vld [vmem:[#allocation2 + $0x148] sm:$0xff]
        %v243 = vld [vmem:[#allocation2 + $0x150] sm:$0xff]
        %v244 = vld [vmem:[#allocation2 + $0x158] sm:$0xff]
        %v245 = vld [vmem:[#allocation2 + $0x160] sm:$0xff]
        %v246 = vld [vmem:[#allocation2 + $0x168] sm:$0xff]
        %v247 = vld [vmem:[#allocation2 + $0x170] sm:$0xff]
        %v248 = vld [vmem:[#allocation2 + $0x178] sm:$0xff]
        %v249 = vld [vmem:[#allocation2 + $0x180] sm:$0xff]
        %v250 = vld [vmem:[#allocation2 + $0x188] sm:$0xff]
        %v251 = vld [vmem:[#allocation2 + $0x190] sm:$0xff]
        %v252 = vld [vmem:[#allocation2 + $0x198] sm:$0xff]
        %v253 = vld [vmem:[#allocation2 + $0x1a0] sm:$0xff]
        %v254 = vld [vmem:[#allocation2 + $0x1a8] sm:$0xff]
        %v255 = vld [vmem:[#allocation2 + $0x1b0] sm:$0xff]
        %v256 = vld [vmem:[#allocation2 + $0x1b8] sm:$0xff]
        %v257 = vld [vmem:[#allocation2 + $0x1c0] sm:$0xff]
        %v258 = vld [vmem:[#allocation2 + $0x1c8] sm:$0xff]
        %v259 = vld [vmem:[#allocation2 + $0x1d0] sm:$0xff]
        %v260 = vld [vmem:[#allocation2 + $0x1d8] sm:$0xff]
        %v261 = vld [vmem:[#allocation2 + $0x1e0] sm:$0xff]
        %v262 = vld [vmem:[#allocation2 + $0x1e8] sm:$0xff]
        %v263 = vld [vmem:[#allocation2 + $0x1f0] sm:$0xff]
        %v264 = vld [vmem:[#allocation2 + $0x1f8] sm:$0xff]
        %v265 = vld [vmem:[#allocation2 + $0x200] sm:$0xff]
        %v266 = vld [vmem:[#allocation2 + $0x208] sm:$0xff]
        %v267 = vld [vmem:[#allocation2 + $0x210] sm:$0xff]
        %v268 = vld [vmem:[#allocation2 + $0x218] sm:$0xff]
        %v269 = vld [vmem:[#allocation2 + $0x220] sm:$0xff]
        %v270 = vld [vmem:[#allocation2 + $0x228] sm:$0xff]
        %v271 = vld [vmem:[#allocation2 + $0x230] sm:$0xff]
        %v272 = vld [vmem:[#allocation2 + $0x238] sm:$0xff]
        %v273 = vld [vmem:[#allocation2 + $0x240] sm:$0xff]
        %v274 = vld [vmem:[#allocation2 + $0x248] sm:$0xff]
        %v275 = vld [vmem:[#allocation2 + $0x250] sm:$0xff]
        %v276 = vld [vmem:[#allocation2 + $0x258] sm:$0xff]
        %v277 = vld [vmem:[#allocation2 + $0x260] sm:$0xff]
        %v278 = vld [vmem:[#allocation2 + $0x268] sm:$0xff]
        %v279 = vld [vmem:[#allocation2 + $0x270] sm:$0xff]
        %v280 = vld [vmem:[#allocation2 + $0x278] sm:$0xff]
        %v281 = vld [vmem:[#allocation2 + $0x280] sm:$0xff]
        %v282 = vld [vmem:[#allocation2 + $0x288] sm:$0xff]
        %v283 = vld [vmem:[#allocation2 + $0x290] sm:$0xff]
        %v284 = vld [vmem:[#allocation2 + $0x298] sm:$0xff]
        %v285 = vld [vmem:[#allocation2 + $0x2a0] sm:$0xff]
        %v286 = vld [vmem:[#allocation2 + $0x2a8] sm:$0xff]
        %v287 = vld [vmem:[#allocation2 + $0x2b0] sm:$0xff]
        %v288 = vld [vmem:[#allocation2 + $0x2b8] sm:$0xff]
        %v289 = vld [vmem:[#allocation2 + $0x2c0] sm:$0xff]
        %v290 = vld [vmem:[#allocation2 + $0x2c8] sm:$0xff]
        %v291 = vld [vmem:[#allocation2 + $0x2d0] sm:$0xff]
        %v292 = vld [vmem:[#allocation2 + $0x2d8] sm:$0xff]
        %v293 = vld [vmem:[#allocation2 + $0x2e0] sm:$0xff]
        %v294 = vld [vmem:[#allocation2 + $0x2e8] sm:$0xff]
        %v295 = vld [vmem:[#allocation2 + $0x2f0] sm:$0xff]
        %v296 = vld [vmem:[#allocation2 + $0x2f8] sm:$0xff]
        %v297 = vld [vmem:[#allocation2 + $0x300] sm:$0xff]
        %v298 = vld [vmem:[#allocation2 + $0x308] sm:$0xff]
        %v299 = vld [vmem:[#allocation2 + $0x310] sm:$0xff]
        %v300 = vld [vmem:[#allocation2 + $0x318] sm:$0xff]
        %v301 = vld [vmem:[#allocation2 + $0x320] sm:$0xff]
        %v302 = vld [vmem:[#allocation2 + $0x328] sm:$0xff]
        %v303 = vld [vmem:[#allocation2 + $0x330] sm:$0xff]
        %v304 = vld [vmem:[#allocation2 + $0x338] sm:$0xff]
        %v305 = vld [vmem:[#allocation2 + $0x340] sm:$0xff]
        %v306 = vld [vmem:[#allocation2 + $0x348] sm:$0xff]
        %v307 = vld [vmem:[#allocation2 + $0x350] sm:$0xff]
        %v308 = vld [vmem:[#allocation2 + $0x358] sm:$0xff]
        %v309 = vld [vmem:[#allocation2 + $0x360] sm:$0xff]
        %v310 = vld [vmem:[#allocation2 + $0x368] sm:$0xff]
        %v311 = vld [vmem:[#allocation2 + $0x370] sm:$0xff]
        %v312 = vld [vmem:[#allocation2 + $0x378] sm:$0xff]
        %v313 = vld [vmem:[#allocation2 + $0x380] sm:$0xff]
        %v314 = vld [vmem:[#allocation2 + $0x388] sm:$0xff]
        %v315 = vld [vmem:[#allocation2 + $0x390] sm:$0xff]
        %v316 = vld [vmem:[#allocation2 + $0x398] sm:$0xff]
        %v317 = vld [vmem:[#allocation2 + $0x3a0] sm:$0xff]
        %v318 = vld [vmem:[#allocation2 + $0x3a8] sm:$0xff]
        %v319 = vld [vmem:[#allocation2 + $0x3b0] sm:$0xff]
        %v320 = vld [vmem:[#allocation2 + $0x3b8] sm:$0xff]
        %v321 = vld [vmem:[#allocation2 + $0x3c0] sm:$0xff]
        %v322 = vld [vmem:[#allocation2 + $0x3c8] sm:$0xff]
        %v323 = vld [vmem:[#allocation2 + $0x3d0] sm:$0xff]
        %v324 = vld [vmem:[#allocation2 + $0x3d8] sm:$0xff]
        %v325 = vld [vmem:[#allocation2 + $0x3e0] sm:$0xff]
        %v326 = vld [vmem:[#allocation2 + $0x3e8] sm:$0xff]
        %v327 = vld [vmem:[#allocation2 + $0x3f0] sm:$0xff]
        %v328 = vld [vmem:[#allocation2 + $0x3f8] sm:$0xff]
        %v329 = vld [vmem:[#allocation2 + $0x400] sm:$0xff]
        %v330 = vld [vmem:[#allocation2 + $0x408] sm:$0xff]
        %v331 = vld [vmem:[#allocation2 + $0x410] sm:$0xff]
        %v332 = vld [vmem:[#allocation2 + $0x418] sm:$0xff]
        %v333 = vld [vmem:[#allocation2 + $0x420] sm:$0xff]
        %v334 = vld [vmem:[#allocation2 + $0x428] sm:$0xff]
        %v335 = vld [vmem:[#allocation2 + $0x430] sm:$0xff]
        %v336 = vld [vmem:[#allocation2 + $0x438] sm:$0xff]
        %v337 = vld [vmem:[#allocation2 + $0x440] sm:$0xff]
        %v338 = vld [vmem:[#allocation2 + $0x448] sm:$0xff]
        %v339 = vld [vmem:[#allocation2 + $0x450] sm:$0xff]
        %v340 = vld [vmem:[#allocation2 + $0x458] sm:$0xff]
        %v341 = vld [vmem:[#allocation2 + $0x460] sm:$0xff]
        %v342 = vld [vmem:[#allocation2 + $0x468] sm:$0xff]
        %v343 = vld [vmem:[#allocation2 + $0x470] sm:$0xff]
        %v344 = vld [vmem:[#allocation2 + $0x478] sm:$0xff]
        %v345 = vld [vmem:[#allocation2 + $0x480] sm:$0xff]
        %v346 = vld [vmem:[#allocation2 + $0x488] sm:$0xff]
        %v347 = vld [vmem:[#allocation2 + $0x490] sm:$0xff]
        %v348 = vld [vmem:[#allocation2 + $0x498] sm:$0xff]
        %v349 = vld [vmem:[#allocation2 + $0x4a0] sm:$0xff]
        %v350 = vld [vmem:[#allocation2 + $0x4a8] sm:$0xff]
        %v351 = vld [vmem:[#allocation2 + $0x4b0] sm:$0xff]
        %v352 = vld [vmem:[#allocation2 + $0x4b8] sm:$0xff]
        %v353 = vld [vmem:[#allocation2 + $0x4c0] sm:$0xff]
        %v354 = vld [vmem:[#allocation2 + $0x4c8] sm:$0xff]
        %v355 = vld [vmem:[#allocation2 + $0x4d0] sm:$0xff]
        %v356 = vld [vmem:[#allocation2 + $0x4d8] sm:$0xff]
        %v357 = vld [vmem:[#allocation2 + $0x4e0] sm:$0xff]
        %v358 = vld [vmem:[#allocation2 + $0x4e8] sm:$0xff]
        %v359 = vld [vmem:[#allocation2 + $0x4f0] sm:$0xff]
        %v360 = vld [vmem:[#allocation2 + $0x4f8] sm:$0xff]
        %v361 = vld [vmem:[#allocation2 + $0x500] sm:$0xff]
        %v362 = vld [vmem:[#allocation2 + $0x508] sm:$0xff]
        %v363 = vld [vmem:[#allocation2 + $0x510] sm:$0xff]
        %v364 = vld [vmem:[#allocation2 + $0x518] sm:$0xff]
        %v365 = vld [vmem:[#allocation2 + $0x520] sm:$0xff]
        %v366 = vld [vmem:[#allocation2 + $0x528] sm:$0xff]
        %v367 = vld [vmem:[#allocation2 + $0x530] sm:$0xff]
        %v368 = vld [vmem:[#allocation2 + $0x538] sm:$0xff]
        %v369 = vld [vmem:[#allocation2 + $0x540] sm:$0xff]
        %v370 = vld [vmem:[#allocation2 + $0x548] sm:$0xff]
        %v371 = vld [vmem:[#allocation2 + $0x550] sm:$0xff]
        %v372 = vld [vmem:[#allocation2 + $0x558] sm:$0xff]
        %v373 = vld [vmem:[#allocation2 + $0x560] sm:$0xff]
        %v374 = vld [vmem:[#allocation2 + $0x568] sm:$0xff]
        %v375 = vld [vmem:[#allocation2 + $0x570] sm:$0xff]
        %v376 = vld [vmem:[#allocation2 + $0x578] sm:$0xff]
        %v377 = vld [vmem:[#allocation2 + $0x580] sm:$0xff]
        %v378 = vld [vmem:[#allocation2 + $0x588] sm:$0xff]
        %v379 = vld [vmem:[#allocation2 + $0x590] sm:$0xff]
        %v380 = vld [vmem:[#allocation2 + $0x598] sm:$0xff]
        %v381 = vld [vmem:[#allocation2 + $0x5a0] sm:$0xff]
        %v382 = vld [vmem:[#allocation2 + $0x5a8] sm:$0xff]
        %v383 = vld [vmem:[#allocation2 + $0x5b0] sm:$0xff]
        %v384 = vld [vmem:[#allocation2 + $0x5b8] sm:$0xff]
        %v385 = vld [vmem:[#allocation2 + $0x5c0] sm:$0xff]
        %v386 = vld [vmem:[#allocation2 + $0x5c8] sm:$0xff]
        %v387 = vld [vmem:[#allocation2 + $0x5d0] sm:$0xff]
        %v388 = vld [vmem:[#allocation2 + $0x5d8] sm:$0xff]
        %v389 = vld [vmem:[#allocation2 + $0x5e0] sm:$0xff]
        %v390 = vld [vmem:[#allocation2 + $0x5e8] sm:$0xff]
        %v391 = vld [vmem:[#allocation2 + $0x5f0] sm:$0xff]
        %v392 = vld [vmem:[#allocation2 + $0x5f8] sm:$0xff]
        %v393 = vld [vmem:[#allocation4] sm:$0x3f]
        %v395 = vlaneseq
        %v396 = vshrl.u32 %v395, 7
        %v397 = vsub.s32 0, %v396
        %v398 = vrot.slane %v393, %v397
        %v399 = vlaneseq
        %v400 = vshrl.u32 %v399, 7
        %v401 = vsub.s32 1, %v400
        %v402 = vrot.slane %v393, %v401
        %v403 = vlaneseq
        %v404 = vshrl.u32 %v403, 7
        %v405 = vsub.s32 2, %v404
        %v406 = vrot.slane %v393, %v405
        %v407 = vlaneseq
        %v408 = vshrl.u32 %v407, 7
        %v409 = vsub.s32 3, %v408
        %v410 = vrot.slane %v393, %v409
        %v411 = vlaneseq
        %v412 = vshrl.u32 %v411, 7
        %v413 = vsub.s32 4, %v412
        %v414 = vrot.slane %v393, %v413
        %v415 = vlaneseq
        %v416 = vshrl.u32 %v415, 7
        %v417 = vsub.s32 5, %v416
        %v418 = vrot.slane %v393, %v417
        %425 = vmatprep.subr.mxu0 %v202
        %426 = vmatpush1.msra.mxu0 %v201
        %427 = vmatprep.subr.mxu0 %v208
        %428 = vmatpush1.msra.mxu0 %v207
        %429 = vmatprep.subr.mxu0 %v214
        %430 = vmatpush1.msra.mxu0 %v213
        %431 = vmatprep.subr.mxu0 %v220
        %432 = vmatpush1.msra.mxu0 %v219
        %433 = vmatprep.subr.mxu0 %v226
        %434 = vmatpush1.msra.mxu0 %v225
        %435 = vmatprep.subr.mxu0 %v232
        %436 = vmatpush1.msra.mxu0 %v231
        %437 = vmatprep.subr.mxu0 %v238
        %438 = vmatpush1.msra.mxu0 %v237
        %439 = vmatprep.subr.mxu0 %v244
        %440 = vmatpush1.msra.mxu0 %v243
        %441 = vmatprep.subr.mxu0 %v250
        %442 = vmatpush1.msra.mxu0 %v249
        %443 = vmatprep.subr.mxu0 %v256
        %444 = vmatpush1.msra.mxu0 %v255
        %445 = vmatprep.subr.mxu0 %v262
        %446 = vmatpush1.msra.mxu0 %v261
        %447 = vmatprep.subr.mxu0 %v268
        %448 = vmatpush1.msra.mxu0 %v267
        %449 = vmatprep.subr.mxu0 %v274
        %450 = vmatpush1.msra.mxu0 %v273
        %451 = vmatprep.subr.mxu0 %v280
        %452 = vmatpush1.msra.mxu0 %v279
        %453 = vmatprep.subr.mxu0 %v286
        %454 = vmatpush1.msra.mxu0 %v285
        %455 = vmatprep.subr.mxu0 %v292
        %456 = vmatpush1.msra.mxu0 %v291
        %457 = vmatprep.subr.mxu0 %v298
        %458 = vmatpush1.msra.mxu0 %v297
        %459 = vmatprep.subr.mxu0 %v304
        %460 = vmatpush1.msra.mxu0 %v303
        %461 = vmatprep.subr.mxu0 %v310
        %462 = vmatpush1.msra.mxu0 %v309
        %463 = vmatprep.subr.mxu0 %v316
        %464 = vmatpush1.msra.mxu0 %v315
        %465 = vmatprep.subr.mxu0 %v322
        %466 = vmatpush1.msra.mxu0 %v321
        %467 = vmatprep.subr.mxu0 %v328
        %468 = vmatpush1.msra.mxu0 %v327
        %469 = vmatprep.subr.mxu0 %v334
        %470 = vmatpush1.msra.mxu0 %v333
        %471 = vmatprep.subr.mxu0 %v340
        %472 = vmatpush1.msra.mxu0 %v339
        %473 = vmatprep.subr.mxu0 %v346
        %474 = vmatpush1.msra.mxu0 %v345
        %475 = vmatprep.subr.mxu0 %v352
        %476 = vmatpush1.msra.mxu0 %v351
        %477 = vmatprep.subr.mxu0 %v358
        %478 = vmatpush1.msra.mxu0 %v357
        %479 = vmatprep.subr.mxu0 %v364
        %480 = vmatpush1.msra.mxu0 %v363
        %481 = vmatprep.subr.mxu0 %v370
        %482 = vmatpush1.msra.mxu0 %v369
        %483 = vmatprep.subr.mxu0 %v376
        %484 = vmatpush1.msra.mxu0 %v375
        %485 = vmatprep.subr.mxu0 %v382
        %486 = vmatpush1.msra.mxu0 %v381
        %487 = vmatprep.subr.mxu0 %v388
        %488 = vmatpush1.msra.mxu0 %v387
        %489 = vmatprep.mubr.f32.mxu0 %v200
        %490 = vmatmul.mubr.f32.gmra.mrb[0].mxu0 %v199
        %v491 = vpop.f32.mrb[0].mxu0
        %v492 = vadd.f32 %v398, %v491
        %v493 = vpop.f32.mrb[0].mxu0
        %v494 = vadd.f32 %v402, %v493
        %495 = vdwg.mxu0
        %496 = vmatprep.subr.mxu0 %v204
        %497 = vmatpush1.msra.mxu0 %v203
        %498 = vmatprep.subr.mxu0 %v210
        %499 = vmatpush1.msra.mxu0 %v209
        %500 = vmatprep.subr.mxu0 %v216
        %501 = vmatpush1.msra.mxu0 %v215
        %502 = vmatprep.subr.mxu0 %v222
        %503 = vmatpush1.msra.mxu0 %v221
        %504 = vmatprep.subr.mxu0 %v228
        %505 = vmatpush1.msra.mxu0 %v227
        %506 = vmatprep.subr.mxu0 %v234
        %507 = vmatpush1.msra.mxu0 %v233
        %508 = vmatprep.subr.mxu0 %v240
        %509 = vmatpush1.msra.mxu0 %v239
        %510 = vmatprep.subr.mxu0 %v246
        %511 = vmatpush1.msra.mxu0 %v245
        %512 = vmatprep.subr.mxu0 %v252
        %513 = vmatpush1.msra.mxu0 %v251
        %514 = vmatprep.subr.mxu0 %v258
        %515 = vmatpush1.msra.mxu0 %v257
        %516 = vmatprep.subr.mxu0 %v264
        %517 = vmatpush1.msra.mxu0 %v263
        %518 = vmatprep.subr.mxu0 %v270
        %519 = vmatpush1.msra.mxu0 %v269
        %520 = vmatprep.subr.mxu0 %v276
        %521 = vmatpush1.msra.mxu0 %v275
        %522 = vmatprep.subr.mxu0 %v282
        %523 = vmatpush1.msra.mxu0 %v281
        %524 = vmatprep.subr.mxu0 %v288
        %525 = vmatpush1.msra.mxu0 %v287
        %526 = vmatprep.subr.mxu0 %v294
        %527 = vmatpush1.msra.mxu0 %v293
        %528 = vmatprep.subr.mxu0 %v300
        %529 = vmatpush1.msra.mxu0 %v299
        %530 = vmatprep.subr.mxu0 %v306
        %531 = vmatpush1.msra.mxu0 %v305
        %532 = vmatprep.subr.mxu0 %v312
        %533 = vmatpush1.msra.mxu0 %v311
        %534 = vmatprep.subr.mxu0 %v318
        %535 = vmatpush1.msra.mxu0 %v317
        %536 = vmatprep.subr.mxu0 %v324
        %537 = vmatpush1.msra.mxu0 %v323
        %538 = vmatprep.subr.mxu0 %v330
        %539 = vmatpush1.msra.mxu0 %v329
        %540 = vmatprep.subr.mxu0 %v336
        %541 = vmatpush1.msra.mxu0 %v335
        %542 = vmatprep.subr.mxu0 %v342
        %543 = vmatpush1.msra.mxu0 %v341
        %544 = vmatprep.subr.mxu0 %v348
        %545 = vmatpush1.msra.mxu0 %v347
        %546 = vmatprep.subr.mxu0 %v354
        %547 = vmatpush1.msra.mxu0 %v353
        %548 = vmatprep.subr.mxu0 %v360
        %549 = vmatpush1.msra.mxu0 %v359
        %550 = vmatprep.subr.mxu0 %v366
        %551 = vmatpush1.msra.mxu0 %v365
        %552 = vmatprep.subr.mxu0 %v372
        %553 = vmatpush1.msra.mxu0 %v371
        %554 = vmatprep.subr.mxu0 %v378
        %555 = vmatpush1.msra.mxu0 %v377
        %556 = vmatprep.subr.mxu0 %v384
        %557 = vmatpush1.msra.mxu0 %v383
        %558 = vmatprep.subr.mxu0 %v390
        %559 = vmatpush1.msra.mxu0 %v389
        %560 = vmatprep.mubr.f32.mxu0 %v200
        %561 = vmatmul.mubr.f32.gmra.mrb[0].mxu0 %v199
        %v562 = vpop.f32.mrb[0].mxu0
        %v563 = vadd.f32 %v406, %v562
        %v564 = vpop.f32.mrb[0].mxu0
        %v565 = vadd.f32 %v410, %v564
        %566 = vdwg.mxu0
        %567 = vmatprep.subr.mxu0 %v206
        %568 = vmatpush1.msra.mxu0 %v205
        %569 = vmatprep.subr.mxu0 %v212
        %570 = vmatpush1.msra.mxu0 %v211
        %571 = vmatprep.subr.mxu0 %v218
        %572 = vmatpush1.msra.mxu0 %v217
        %573 = vmatprep.subr.mxu0 %v224
        %574 = vmatpush1.msra.mxu0 %v223
        %575 = vmatprep.subr.mxu0 %v230
        %576 = vmatpush1.msra.mxu0 %v229
        %577 = vmatprep.subr.mxu0 %v236
        %578 = vmatpush1.msra.mxu0 %v235
        %579 = vmatprep.subr.mxu0 %v242
        %580 = vmatpush1.msra.mxu0 %v241
        %581 = vmatprep.subr.mxu0 %v248
        %582 = vmatpush1.msra.mxu0 %v247
        %583 = vmatprep.subr.mxu0 %v254
        %584 = vmatpush1.msra.mxu0 %v253
        %585 = vmatprep.subr.mxu0 %v260
        %586 = vmatpush1.msra.mxu0 %v259
        %587 = vmatprep.subr.mxu0 %v266
        %588 = vmatpush1.msra.mxu0 %v265
        %589 = vmatprep.subr.mxu0 %v272
        %590 = vmatpush1.msra.mxu0 %v271
        %591 = vmatprep.subr.mxu0 %v278
        %592 = vmatpush1.msra.mxu0 %v277
        %593 = vmatprep.subr.mxu0 %v284
        %594 = vmatpush1.msra.mxu0 %v283
        %595 = vmatprep.subr.mxu0 %v290
        %596 = vmatpush1.msra.mxu0 %v289
        %597 = vmatprep.subr.mxu0 %v296
        %598 = vmatpush1.msra.mxu0 %v295
        %599 = vmatprep.subr.mxu0 %v302
        %600 = vmatpush1.msra.mxu0 %v301
        %601 = vmatprep.subr.mxu0 %v308
        %602 = vmatpush1.msra.mxu0 %v307
        %603 = vmatprep.subr.mxu0 %v314
        %604 = vmatpush1.msra.mxu0 %v313
        %605 = vmatprep.subr.mxu0 %v320
        %606 = vmatpush1.msra.mxu0 %v319
        %607 = vmatprep.subr.mxu0 %v326
        %608 = vmatpush1.msra.mxu0 %v325
        %609 = vmatprep.subr.mxu0 %v332
        %610 = vmatpush1.msra.mxu0 %v331
        %611 = vmatprep.subr.mxu0 %v338
        %612 = vmatpush1.msra.mxu0 %v337
        %613 = vmatprep.subr.mxu0 %v344
        %614 = vmatpush1.msra.mxu0 %v343
        %615 = vmatprep.subr.mxu0 %v350
        %616 = vmatpush1.msra.mxu0 %v349
        %617 = vmatprep.subr.mxu0 %v356
        %618 = vmatpush1.msra.mxu0 %v355
        %619 = vmatprep.subr.mxu0 %v362
        %620 = vmatpush1.msra.mxu0 %v361
        %621 = vmatprep.subr.mxu0 %v368
        %622 = vmatpush1.msra.mxu0 %v367
        %623 = vmatprep.subr.mxu0 %v374
        %624 = vmatpush1.msra.mxu0 %v373
        %625 = vmatprep.subr.mxu0 %v380
        %626 = vmatpush1.msra.mxu0 %v379
        %627 = vmatprep.subr.mxu0 %v386
        %628 = vmatpush1.msra.mxu0 %v385
        %629 = vmatprep.subr.mxu0 %v392
        %630 = vmatpush1.msra.mxu0 %v391
        %631 = vmatprep.mubr.f32.mxu0 %v200
        %632 = vmatmul.mubr.f32.gmra.mrb[0].mxu0 %v199
        %v633 = vpop.f32.mrb[0].mxu0
        %v634 = vadd.f32 %v414, %v633
        %v635 = vpop.f32.mrb[0].mxu0
        %v636 = vadd.f32 %v418, %v635
        %637 = vdwg.mxu0
        %638 = vst [vmem:[%s198] sm:$0xff] %v492
        %639 = vst [vmem:[%s198 + $0x8] sm:$0xff] %v494
        %640 = vst [vmem:[%s198 + $0x10] sm:$0xff] %v563
        %641 = vst [vmem:[%s198 + $0x18] sm:$0xff] %v565
        %642 = vst [vmem:[%s198 + $0x20] sm:$0xff] %v634
        %643 = vst [vmem:[%s198 + $0x28] sm:$0xff] %v636
        %p644 = scmp.lt.s32.totalorder %s16, 2
        %s645 = scalar_select %p644, %s16, 2
        %s646 = smul.addr %s645, 6
        %s647 = smul.addr %s646, 8
        %s648 = scalar_lea.vmem %s3, %s647
        // Predicated region
        $region41: #{_encoder_gru_sequence_jit.2} parent=31 // pred_check
          %p649 = pneg %p102
        $region42: #{_encoder_gru_sequence_jit.2} parent=31 // pred_check_branch
          %651 = sbr.rel (%p649) target = $region44
        $region43: #{_encoder_gru_sequence_jit.2} parent=31 // pred_region
          _
        $region44: #{_encoder_gru_sequence_jit.2} parent=31 // pred_fallthru
          _
      $region32: #{_encoder_gru_sequence_jit.2} parent=5 // pred_fallthru
        _
      %p652 = scmp.le.s32.totalorder 2, %s11
      // Predicated region
      $region45: #{_encoder_gru_sequence_jit.2} parent=5 // pred_check
        %p653 = pneg %p652
      $region46: #{_encoder_gru_sequence_jit.2} parent=5 // pred_check_branch
        %655 = sbr.rel (%p653) target = $region48
      $region47: #{_encoder_gru_sequence_jit.2} parent=5 // pred_region
        %s656 = ssub.s32 %s11, 2
        // Predicated region
        $region49: #{_encoder_gru_sequence_jit.2} parent=47 // pred_check
          %p657 = pneg %p108
        $region50: #{_encoder_gru_sequence_jit.2} parent=47 // pred_check_branch
          %659 = sbr.rel (%p657) target = $region52
        $region51: #{_encoder_gru_sequence_jit.2} parent=47 // pred_region
          %p660 = scmp.lt.s32.totalorder %s17, 2
          %s661 = scalar_select %p660, %s17, 2
          %s662 = smul.addr %s661, 6
          %s663 = smul.addr %s662, 8
          %s664 = scalar_lea.vmem %s3, %s663
        $region52: #{_encoder_gru_sequence_jit.2} parent=47 // pred_fallthru
          _
      $region48: #{_encoder_gru_sequence_jit.2} parent=5 // pred_fallthru
        _
    $region6: #{_encoder_gru_sequence_jit.2} parent=1 // loop_footer
      %s15 = sadd.s32 1, %s11
    $region7: #{_encoder_gru_sequence_jit.2} parent=1 // loop_footer_branch
      %10 = sbr.rel target = $region3
    $region8: #{_encoder_gru_sequence_jit.2} parent=1 // loop_exit
      _
    %665 = vsyncpa [#allocation3], 1
    %s666 = scalar_lea.sflag [#allocation3], 1
    %667 = vsyncpa %s666, 1
    %668 = vsyncpa [#allocation5], 1

// kernel: _encoder_gru_sequence_jit.3
$region0: #{_encoder_gru_sequence_jit.3}
  #allocation0 [shape = 'u32[]', space=smem, size = 0x4, offset = 0x4, fixed_abs, tag = 'smem constant byte address 0x4 - core index']
  #allocation1 [shape = 'u32[144,128]{1,0:T(1,128)}', space=vmem, size = 0x12000, scoped, tag = 'internal scratch']
  #allocation2 [shape = 'f32[1,256]{1,0:T(1,128)}', space=vmem, size = 0x400, scoped, tag = 'scratch operand']
  %s0 = inlined_call_operand.vmem [shape: f32[24,768], index: 0, kind: input, shape index: {}]
  %s1 = inlined_call_operand.vmem [shape: f32[1,256], index: 1, kind: input, shape index: {}]
  %s2 = inlined_call_operand.vmem [shape: f32[256,768], index: 2, kind: input, shape index: {}]
  %s3 = inlined_call_operand.vmem [shape: f32[1,768], index: 3, kind: input, shape index: {}]
  %s4 = inlined_call_operand.vmem [shape: f32[24,256], index: 4, kind: output, shape index: {}]
  %s5 = sld [smem:[#allocation0]]
  $region53: #{_encoder_gru_sequence_jit.3} parent=0
    _
  %s7 = ssub.s32 1, %s5
  %s8 = scalar_select 0, %s7, %s5
  loop: start=0, step=1, limit=5
  $region2: #{_encoder_gru_sequence_jit.3} parent=0 // loop_pre_header
    _
  $region3: #{_encoder_gru_sequence_jit.3} parent=0 // loop_header
    %s10 = sphi 0, %s14
    %p11 = scmp.ge.s32.totalorder %s10, 5
    %s20 = sphi 0, %s22
    %s23 = sphi 0, %s20
    %s24 = sphi 0, %s23
    %s40 = sphi 0, %s24
    %s44 = sphi 0, %s44
    %s46 = sphi 0, %s44
    %s47 = sphi 0, %s46
    %s61 = sphi 0, %s47
    %s65 = sphi 0, %s65
    %s67 = sphi 0, %s65
    %s68 = sphi 0, %s67
    %s82 = sphi 0, %s68
    %s86 = sphi 0, %s86
    %s88 = sphi 0, %s86
    %s89 = sphi 0, %s88
    %s103 = sphi 0, %s89
    %s109 = sphi 0, %s111
    %s112 = sphi 0, %s109
    %s113 = sphi 0, %s112
    %s129 = sphi 0, %s113
  $region4: #{_encoder_gru_sequence_jit.3} parent=0 // loop_header_branch
    %13 = sbr.rel (%p11) target = $region8
  $region5: #{_encoder_gru_sequence_jit.3} parent=0 // loop_body
    %s15 = ssub.s32 %s10, 1
    %s16 = ssub.s32 %s10, 2
    %s17 = sadd.s32 %s10, 1
    %s18 = ssub.s32 %s10, %s17
    %p19 = scmp.eq.s32.totalorder %s18, 0
    %s21 = sadd.s32 %s20, 1
    %s22 = scalar_select %p19, %s20, %s21
    %p25 = pneg %p19
    %p26 = scmp.eq.s32.totalorder %s10, 2
    %p27 = por %p25, %p26
    %p28 = scmp.ne.s32.totalorder %s20, %s23
    %p29 = scmp.eq.s32.totalorder %s10, 0
    %p30 = por %p28, %p29
    %p31 = scmp.ne.s32.totalorder %s20, %s23
    %p32 = scmp.eq.s32.totalorder %s15, 2
    %p33 = por %p31, %p32
    %p34 = scmp.ne.s32.totalorder %s23, %s24
    %p35 = scmp.eq.s32.totalorder %s15, 0
    %p36 = por %p34, %p35
    %p37 = scmp.ne.s32.totalorder %s23, %s24
    %p38 = scmp.eq.s32.totalorder %s16, 2
    %p39 = por %p37, %p38
    %p41 = scmp.ne.s32.totalorder %s24, %s40
    %p42 = scmp.eq.s32.totalorder %s16, 0
    %p43 = por %p41, %p42
    %s45 = sadd.s32 %s44, 1
    %p48 = scmp.eq.s32.totalorder %s10, 2
    %p49 = scmp.ne.s32.totalorder %s44, %s46
    %p50 = scmp.eq.s32.totalorder %s10, 0
    %p51 = por %p49, %p50
    %p52 = scmp.ne.s32.totalorder %s44, %s46
    %p53 = scmp.eq.s32.totalorder %s15, 2
    %p54 = por %p52, %p53
    %p55 = scmp.ne.s32.totalorder %s46, %s47
    %p56 = scmp.eq.s32.totalorder %s15, 0
    %p57 = por %p55, %p56
    %p58 = scmp.ne.s32.totalorder %s46, %s47
    %p59 = scmp.eq.s32.totalorder %s16, 2
    %p60 = por %p58, %p59
    %p62 = scmp.ne.s32.totalorder %s47, %s61
    %p63 = scmp.eq.s32.totalorder %s16, 0
    %p64 = por %p62, %p63
    %s66 = sadd.s32 %s65, 1
    %p69 = scmp.eq.s32.totalorder %s10, 2
    %p70 = scmp.ne.s32.totalorder %s65, %s67
    %p71 = scmp.eq.s32.totalorder %s10, 0
    %p72 = por %p70, %p71
    %p73 = scmp.ne.s32.totalorder %s65, %s67
    %p74 = scmp.eq.s32.totalorder %s15, 2
    %p75 = por %p73, %p74
    %p76 = scmp.ne.s32.totalorder %s67, %s68
    %p77 = scmp.eq.s32.totalorder %s15, 0
    %p78 = por %p76, %p77
    %p79 = scmp.ne.s32.totalorder %s67, %s68
    %p80 = scmp.eq.s32.totalorder %s16, 2
    %p81 = por %p79, %p80
    %p83 = scmp.ne.s32.totalorder %s68, %s82
    %p84 = scmp.eq.s32.totalorder %s16, 0
    %p85 = por %p83, %p84
    %s87 = sadd.s32 %s86, 1
    %p90 = scmp.eq.s32.totalorder %s10, 2
    %p91 = scmp.ne.s32.totalorder %s86, %s88
    %p92 = scmp.eq.s32.totalorder %s10, 0
    %p93 = por %p91, %p92
    %p94 = scmp.ne.s32.totalorder %s86, %s88
    %p95 = scmp.eq.s32.totalorder %s15, 2
    %p96 = por %p94, %p95
    %p97 = scmp.ne.s32.totalorder %s88, %s89
    %p98 = scmp.eq.s32.totalorder %s15, 0
    %p99 = por %p97, %p98
    %p100 = scmp.ne.s32.totalorder %s88, %s89
    %p101 = scmp.eq.s32.totalorder %s16, 2
    %p102 = por %p100, %p101
    %p104 = scmp.ne.s32.totalorder %s89, %s103
    %p105 = scmp.eq.s32.totalorder %s16, 0
    %p106 = por %p104, %p105
    %s107 = ssub.s32 %s10, %s17
    %p108 = scmp.eq.s32.totalorder %s107, 0
    %s110 = sadd.s32 %s109, 1
    %s111 = scalar_select %p108, %s109, %s110
    %p114 = pneg %p108
    %p115 = scmp.eq.s32.totalorder %s10, 2
    %p116 = por %p114, %p115
    %p117 = scmp.ne.s32.totalorder %s109, %s112
    %p118 = scmp.eq.s32.totalorder %s10, 0
    %p119 = por %p117, %p118
    %p120 = scmp.ne.s32.totalorder %s109, %s112
    %p121 = scmp.eq.s32.totalorder %s15, 2
    %p122 = por %p120, %p121
    %p123 = scmp.ne.s32.totalorder %s112, %s113
    %p124 = scmp.eq.s32.totalorder %s15, 0
    %p125 = por %p123, %p124
    %p126 = scmp.ne.s32.totalorder %s112, %s113
    %p127 = scmp.eq.s32.totalorder %s16, 2
    %p128 = por %p126, %p127
    %p130 = scmp.ne.s32.totalorder %s113, %s129
    %p131 = scmp.eq.s32.totalorder %s16, 0
    %p132 = por %p130, %p131
    %p133 = scmp.le.s32.totalorder 1, %s10
    %p134 = scmp.lt.s32.totalorder %s10, 4
    %p135 = pnand %p133, %p134
    %p136 = pneg %p135
    // Predicated region
    $region9: #{_encoder_gru_sequence_jit.3} parent=5 // pred_check
      _
    $region10: #{_encoder_gru_sequence_jit.3} parent=5 // pred_check_branch
      %138 = sbr.rel (%p135) target = $region12
    $region11: #{_encoder_gru_sequence_jit.3} parent=5 // pred_region
      %s139 = ssub.s32 %s10, 1
      // Predicated region
      $region13: #{_encoder_gru_sequence_jit.3} parent=11 // pred_check
        %p140 = pneg %p57
      $region14: #{_encoder_gru_sequence_jit.3} parent=11 // pred_check_branch
        %142 = sbr.rel (%p140) target = $region16
      $region15: #{_encoder_gru_sequence_jit.3} parent=11 // pred_region
        _
      $region16: #{_encoder_gru_sequence_jit.3} parent=11 // pred_fallthru
        _
      // Predicated region
      $region17: #{_encoder_gru_sequence_jit.3} parent=11 // pred_check
        %p143 = pneg %p78
      $region18: #{_encoder_gru_sequence_jit.3} parent=11 // pred_check_branch
        %145 = sbr.rel (%p143) target = $region20
      $region19: #{_encoder_gru_sequence_jit.3} parent=11 // pred_region
        _
      $region20: #{_encoder_gru_sequence_jit.3} parent=11 // pred_fallthru
        _
      // Predicated region
      $region21: #{_encoder_gru_sequence_jit.3} parent=11 // pred_check
        %p146 = pneg %p99
      $region22: #{_encoder_gru_sequence_jit.3} parent=11 // pred_check_branch
        %148 = sbr.rel (%p146) target = $region24
      $region23: #{_encoder_gru_sequence_jit.3} parent=11 // pred_region
        _
      $region24: #{_encoder_gru_sequence_jit.3} parent=11 // pred_fallthru
        _
    $region12: #{_encoder_gru_sequence_jit.3} parent=5 // pred_fallthru
      _
    %p149 = scmp.lt.s32.totalorder %s10, 3
    // Predicated region
    $region25: #{_encoder_gru_sequence_jit.3} parent=5 // pred_check
      %p150 = pneg %p149
    $region26: #{_encoder_gru_sequence_jit.3} parent=5 // pred_check_branch
      %152 = sbr.rel (%p150) target = $region28
    $region27: #{_encoder_gru_sequence_jit.3} parent=5 // pred_region
      // Predicated region
      $region29: #{_encoder_gru_sequence_jit.3} parent=27 // pred_check
        %p153 = pneg %p30
      $region30: #{_encoder_gru_sequence_jit.3} parent=27 // pred_check_branch
        %155 = sbr.rel (%p153) target = $region32
      $region31: #{_encoder_gru_sequence_jit.3} parent=27 // pred_region
        %p156 = scmp.lt.s32.totalorder %s10, 2
        %s157 = scalar_select %p156, %s10, 2
        %s158 = smul.addr %s157, 6
        %s159 = smul.addr %s158, 8
        %s160 = scalar_lea.vmem %s0, %s159
      $region32: #{_encoder_gru_sequence_jit.3} parent=27 // pred_fallthru
        _
    $region28: #{_encoder_gru_sequence_jit.3} parent=5 // pred_fallthru
      _
    %p161 = scmp.le.s32.totalorder 1, %s10
    %p162 = scmp.lt.s32.totalorder %s10, 4
    %p163 = pnand %p161, %p162
    %p164 = pneg %p163
    // Predicated region
    $region33: #{_encoder_gru_sequence_jit.3} parent=5 // pred_check
      _
    $region34: #{_encoder_gru_sequence_jit.3} parent=5 // pred_check_branch
      %166 = sbr.rel (%p163) target = $region36
    $region35: #{_encoder_gru_sequence_jit.3} parent=5 // pred_region
      %s167 = ssub.s32 %s10, 1
      %p168 = scmp.lt.s32.totalorder %s15, 2
      %s169 = scalar_select %p168, %s15, 2
      %s170 = smul.addr %s169, 6
      %s171 = smul.addr %s170, 8
      %s172 = scalar_lea.vmem %s0, %s171
      %p173 = pneg %p36
      %p174 = pneg %p33
      %p175 = pneg %p57
      %p176 = pneg %p54
      %p177 = pneg %p78
      %p178 = pneg %p75
      %p179 = pneg %p99
      %p180 = pneg %p96
      %p181 = pneg %p125
      %p182 = pneg %p122
      %p183 = scmp.lt.s32.totalorder %s15, 2
      %s184 = scalar_select %p183, %s15, 2
      %s185 = smul.addr %s184, 2
      %s186 = smul.addr %s185, 8
      %s187 = scalar_lea.vmem %s4, %s186
      %p188 = scmp.lt.s32.totalorder %s15, 2
      %s189 = scalar_select %p188, %s15, 2
      %s190 = smul.addr %s189, 6
      %s191 = smul.addr %s190, 8
      %s192 = scalar_lea.vmem %s0, %s191
      %p193 = scmp.lt.s32.totalorder %s15, 2
      %s194 = scalar_select %p193, %s15, 2
      %s195 = smul.addr %s194, 2
      %s196 = smul.addr %s195, 8
      %s197 = scalar_lea.vmem %s4, %s196
      %p198 = scmp.eq.s32.totalorder %s15, 0
      // Predicated region
      $region37: #{_encoder_gru_sequence_jit.3} parent=35 // pred_check
        %p199 = pneg %p198
      $region38: #{_encoder_gru_sequence_jit.3} parent=35 // pred_check_branch
        %201 = sbr.rel (%p199) target = $region40
      $region39: #{_encoder_gru_sequence_jit.3} parent=35 // pred_region
        %v202 = vld [vmem:[%s1] sm:$0x3]
        %v203 = vlaneseq
        %vm204 = vcmp.ge.s32.totalorder %v203, 0
        %vm205 = vcmp.lt.s32.totalorder %v203, 256
        %vm206 = vmand %vm204, %vm205
        %207 = vst.msk [vmem:[#allocation2] sm:$0x3] %vm206, %v202
      $region40: #{_encoder_gru_sequence_jit.3} parent=35 // pred_fallthru
        _
      %v208 = vld [vmem:[%s2] sm:$0xff]
      %v209 = vld [vmem:[%s2 + $0x8] sm:$0xff]
      %v210 = vld [vmem:[%s2 + $0x10] sm:$0xff]
      %v211 = vld [vmem:[%s2 + $0x18] sm:$0xff]
      %v212 = vld [vmem:[%s2 + $0x20] sm:$0xff]
      %v213 = vld [vmem:[%s2 + $0x28] sm:$0xff]
      %v214 = vld [vmem:[%s2 + $0x30] sm:$0xff]
      %v215 = vld [vmem:[%s2 + $0x38] sm:$0xff]
      %v216 = vld [vmem:[%s2 + $0x40] sm:$0xff]
      %v217 = vld [vmem:[%s2 + $0x48] sm:$0xff]
      %v218 = vld [vmem:[%s2 + $0x50] sm:$0xff]
      %v219 = vld [vmem:[%s2 + $0x58] sm:$0xff]
      %v220 = vld [vmem:[%s2 + $0x60] sm:$0xff]
      %v221 = vld [vmem:[%s2 + $0x68] sm:$0xff]
      %v222 = vld [vmem:[%s2 + $0x70] sm:$0xff]
      %v223 = vld [vmem:[%s2 + $0x78] sm:$0xff]
      %v224 = vld [vmem:[%s2 + $0x80] sm:$0xff]
      %v225 = vld [vmem:[%s2 + $0x88] sm:$0xff]
      %v226 = vld [vmem:[%s2 + $0x90] sm:$0xff]
      %v227 = vld [vmem:[%s2 + $0x98] sm:$0xff]
      %v228 = vld [vmem:[%s2 + $0xa0] sm:$0xff]
      %v229 = vld [vmem:[%s2 + $0xa8] sm:$0xff]
      %v230 = vld [vmem:[%s2 + $0xb0] sm:$0xff]
      %v231 = vld [vmem:[%s2 + $0xb8] sm:$0xff]
      %v232 = vld [vmem:[%s2 + $0xc0] sm:$0xff]
      %v233 = vld [vmem:[%s2 + $0xc8] sm:$0xff]
      %v234 = vld [vmem:[%s2 + $0xd0] sm:$0xff]
      %v235 = vld [vmem:[%s2 + $0xd8] sm:$0xff]
      %v236 = vld [vmem:[%s2 + $0xe0] sm:$0xff]
      %v237 = vld [vmem:[%s2 + $0xe8] sm:$0xff]
      %v238 = vld [vmem:[%s2 + $0xf0] sm:$0xff]
      %v239 = vld [vmem:[%s2 + $0xf8] sm:$0xff]
      %v240 = vld [vmem:[%s2 + $0x100] sm:$0xff]
      %v241 = vld [vmem:[%s2 + $0x108] sm:$0xff]
      %v242 = vld [vmem:[%s2 + $0x110] sm:$0xff]
      %v243 = vld [vmem:[%s2 + $0x118] sm:$0xff]
      %v244 = vld [vmem:[%s2 + $0x120] sm:$0xff]
      %v245 = vld [vmem:[%s2 + $0x128] sm:$0xff]
      %v246 = vld [vmem:[%s2 + $0x130] sm:$0xff]
      %v247 = vld [vmem:[%s2 + $0x138] sm:$0xff]
      %v248 = vld [vmem:[%s2 + $0x140] sm:$0xff]
      %v249 = vld [vmem:[%s2 + $0x148] sm:$0xff]
      %v250 = vld [vmem:[%s2 + $0x150] sm:$0xff]
      %v251 = vld [vmem:[%s2 + $0x158] sm:$0xff]
      %v252 = vld [vmem:[%s2 + $0x160] sm:$0xff]
      %v253 = vld [vmem:[%s2 + $0x168] sm:$0xff]
      %v254 = vld [vmem:[%s2 + $0x170] sm:$0xff]
      %v255 = vld [vmem:[%s2 + $0x178] sm:$0xff]
      %v256 = vld [vmem:[%s2 + $0x180] sm:$0xff]
      %v257 = vld [vmem:[%s2 + $0x188] sm:$0xff]
      %v258 = vld [vmem:[%s2 + $0x190] sm:$0xff]
      %v259 = vld [vmem:[%s2 + $0x198] sm:$0xff]
      %v260 = vld [vmem:[%s2 + $0x1a0] sm:$0xff]
      %v261 = vld [vmem:[%s2 + $0x1a8] sm:$0xff]
      %v262 = vld [vmem:[%s2 + $0x1b0] sm:$0xff]
      %v263 = vld [vmem:[%s2 + $0x1b8] sm:$0xff]
      %v264 = vld [vmem:[%s2 + $0x1c0] sm:$0xff]
      %v265 = vld [vmem:[%s2 + $0x1c8] sm:$0xff]
      %v266 = vld [vmem:[%s2 + $0x1d0] sm:$0xff]
      %v267 = vld [vmem:[%s2 + $0x1d8] sm:$0xff]
      %v268 = vld [vmem:[%s2 + $0x1e0] sm:$0xff]
      %v269 = vld [vmem:[%s2 + $0x1e8] sm:$0xff]
      %v270 = vld [vmem:[%s2 + $0x1f0] sm:$0xff]
      %v271 = vld [vmem:[%s2 + $0x1f8] sm:$0xff]
      %v272 = vld [vmem:[%s2 + $0x200] sm:$0xff]
      %v273 = vld [vmem:[%s2 + $0x208] sm:$0xff]
      %v274 = vld [vmem:[%s2 + $0x210] sm:$0xff]
      %v275 = vld [vmem:[%s2 + $0x218] sm:$0xff]
      %v276 = vld [vmem:[%s2 + $0x220] sm:$0xff]
      %v277 = vld [vmem:[%s2 + $0x228] sm:$0xff]
      %v278 = vld [vmem:[%s2 + $0x230] sm:$0xff]
      %v279 = vld [vmem:[%s2 + $0x238] sm:$0xff]
      %v280 = vld [vmem:[%s2 + $0x240] sm:$0xff]
      %v281 = vld [vmem:[%s2 + $0x248] sm:$0xff]
      %v282 = vld [vmem:[%s2 + $0x250] sm:$0xff]
      %v283 = vld [vmem:[%s2 + $0x258] sm:$0xff]
      %v284 = vld [vmem:[%s2 + $0x260] sm:$0xff]
      %v285 = vld [vmem:[%s2 + $0x268] sm:$0xff]
      %v286 = vld [vmem:[%s2 + $0x270] sm:$0xff]
      %v287 = vld [vmem:[%s2 + $0x278] sm:$0xff]
      %v288 = vld [vmem:[%s2 + $0x280] sm:$0xff]
      %v289 = vld [vmem:[%s2 + $0x288] sm:$0xff]
      %v290 = vld [vmem:[%s2 + $0x290] sm:$0xff]
      %v291 = vld [vmem:[%s2 + $0x298] sm:$0xff]
      %v292 = vld [vmem:[%s2 + $0x2a0] sm:$0xff]
      %v293 = vld [vmem:[%s2 + $0x2a8] sm:$0xff]
      %v294 = vld [vmem:[%s2 + $0x2b0] sm:$0xff]
      %v295 = vld [vmem:[%s2 + $0x2b8] sm:$0xff]
      %v296 = vld [vmem:[%s2 + $0x2c0] sm:$0xff]
      %v297 = vld [vmem:[%s2 + $0x2c8] sm:$0xff]
      %v298 = vld [vmem:[%s2 + $0x2d0] sm:$0xff]
      %v299 = vld [vmem:[%s2 + $0x2d8] sm:$0xff]
      %v300 = vld [vmem:[%s2 + $0x2e0] sm:$0xff]
      %v301 = vld [vmem:[%s2 + $0x2e8] sm:$0xff]
      %v302 = vld [vmem:[%s2 + $0x2f0] sm:$0xff]
      %v303 = vld [vmem:[%s2 + $0x2f8] sm:$0xff]
      %v304 = vld [vmem:[%s2 + $0x300] sm:$0xff]
      %v305 = vld [vmem:[%s2 + $0x308] sm:$0xff]
      %v306 = vld [vmem:[%s2 + $0x310] sm:$0xff]
      %v307 = vld [vmem:[%s2 + $0x318] sm:$0xff]
      %v308 = vld [vmem:[%s2 + $0x320] sm:$0xff]
      %v309 = vld [vmem:[%s2 + $0x328] sm:$0xff]
      %v310 = vld [vmem:[%s2 + $0x330] sm:$0xff]
      %v311 = vld [vmem:[%s2 + $0x338] sm:$0xff]
      %v312 = vld [vmem:[%s2 + $0x340] sm:$0xff]
      %v313 = vld [vmem:[%s2 + $0x348] sm:$0xff]
      %v314 = vld [vmem:[%s2 + $0x350] sm:$0xff]
      %v315 = vld [vmem:[%s2 + $0x358] sm:$0xff]
      %v316 = vld [vmem:[%s2 + $0x360] sm:$0xff]
      %v317 = vld [vmem:[%s2 + $0x368] sm:$0xff]
      %v318 = vld [vmem:[%s2 + $0x370] sm:$0xff]
      %v319 = vld [vmem:[%s2 + $0x378] sm:$0xff]
      %v320 = vld [vmem:[%s2 + $0x380] sm:$0xff]
      %v321 = vld [vmem:[%s2 + $0x388] sm:$0xff]
      %v322 = vld [vmem:[%s2 + $0x390] sm:$0xff]
      %v323 = vld [vmem:[%s2 + $0x398] sm:$0xff]
      %v324 = vld [vmem:[%s2 + $0x3a0] sm:$0xff]
      %v325 = vld [vmem:[%s2 + $0x3a8] sm:$0xff]
      %v326 = vld [vmem:[%s2 + $0x3b0] sm:$0xff]
      %v327 = vld [vmem:[%s2 + $0x3b8] sm:$0xff]
      %v328 = vld [vmem:[%s2 + $0x3c0] sm:$0xff]
      %v329 = vld [vmem:[%s2 + $0x3c8] sm:$0xff]
      %v330 = vld [vmem:[%s2 + $0x3d0] sm:$0xff]
      %v331 = vld [vmem:[%s2 + $0x3d8] sm:$0xff]
      %v332 = vld [vmem:[%s2 + $0x3e0] sm:$0xff]
      %v333 = vld [vmem:[%s2 + $0x3e8] sm:$0xff]
      %v334 = vld [vmem:[%s2 + $0x3f0] sm:$0xff]
      %v335 = vld [vmem:[%s2 + $0x3f8] sm:$0xff]
      %v336 = vld [vmem:[%s2 + $0x400] sm:$0xff]
      %v337 = vld [vmem:[%s2 + $0x408] sm:$0xff]
      %v338 = vld [vmem:[%s2 + $0x410] sm:$0xff]
      %v339 = vld [vmem:[%s2 + $0x418] sm:$0xff]
      %v340 = vld [vmem:[%s2 + $0x420] sm:$0xff]
      %v341 = vld [vmem:[%s2 + $0x428] sm:$0xff]
      %v342 = vld [vmem:[%s2 + $0x430] sm:$0xff]
      %v343 = vld [vmem:[%s2 + $0x438] sm:$0xff]
      %v344 = vld [vmem:[%s2 + $0x440] sm:$0xff]
      %v345 = vld [vmem:[%s2 + $0x448] sm:$0xff]
      %v346 = vld [vmem:[%s2 + $0x450] sm:$0xff]
      %v347 = vld [vmem:[%s2 + $0x458] sm:$0xff]
      %v348 = vld [vmem:[%s2 + $0x460] sm:$0xff]
      %v349 = vld [vmem:[%s2 + $0x468] sm:$0xff]
      %v350 = vld [vmem:[%s2 + $0x470] sm:$0xff]
      %v351 = vld [vmem:[%s2 + $0x478] sm:$0xff]
      %v352 = vld [vmem:[%s2 + $0x480] sm:$0xff]
      %v353 = vld [vmem:[%s2 + $0x488] sm:$0xff]
      %v354 = vld [vmem:[%s2 + $0x490] sm:$0xff]
      %v355 = vld [vmem:[%s2 + $0x498] sm:$0xff]
      %v356 = vld [vmem:[%s2 + $0x4a0] sm:$0xff]
      %v357 = vld [vmem:[%s2 + $0x4a8] sm:$0xff]
      %v358 = vld [vmem:[%s2 + $0x4b0] sm:$0xff]
      %v359 = vld [vmem:[%s2 + $0x4b8] sm:$0xff]
      %v360 = vld [vmem:[%s2 + $0x4c0] sm:$0xff]
      %v361 = vld [vmem:[%s2 + $0x4c8] sm:$0xff]
      %v362 = vld [vmem:[%s2 + $0x4d0] sm:$0xff]
      %v363 = vld [vmem:[%s2 + $0x4d8] sm:$0xff]
      %v364 = vld [vmem:[%s2 + $0x4e0] sm:$0xff]
      %v365 = vld [vmem:[%s2 + $0x4e8] sm:$0xff]
      %v366 = vld [vmem:[%s2 + $0x4f0] sm:$0xff]
      %v367 = vld [vmem:[%s2 + $0x4f8] sm:$0xff]
      %v368 = vld [vmem:[%s2 + $0x500] sm:$0xff]
      %v369 = vld [vmem:[%s2 + $0x508] sm:$0xff]
      %v370 = vld [vmem:[%s2 + $0x510] sm:$0xff]
      %v371 = vld [vmem:[%s2 + $0x518] sm:$0xff]
      %v372 = vld [vmem:[%s2 + $0x520] sm:$0xff]
      %v373 = vld [vmem:[%s2 + $0x528] sm:$0xff]
      %v374 = vld [vmem:[%s2 + $0x530] sm:$0xff]
      %v375 = vld [vmem:[%s2 + $0x538] sm:$0xff]
      %v376 = vld [vmem:[%s2 + $0x540] sm:$0xff]
      %v377 = vld [vmem:[%s2 + $0x548] sm:$0xff]
      %v378 = vld [vmem:[%s2 + $0x550] sm:$0xff]
      %v379 = vld [vmem:[%s2 + $0x558] sm:$0xff]
      %v380 = vld [vmem:[%s2 + $0x560] sm:$0xff]
      %v381 = vld [vmem:[%s2 + $0x568] sm:$0xff]
      %v382 = vld [vmem:[%s2 + $0x570] sm:$0xff]
      %v383 = vld [vmem:[%s2 + $0x578] sm:$0xff]
      %v384 = vld [vmem:[%s2 + $0x580] sm:$0xff]
      %v385 = vld [vmem:[%s2 + $0x588] sm:$0xff]
      %v386 = vld [vmem:[%s2 + $0x590] sm:$0xff]
      %v387 = vld [vmem:[%s2 + $0x598] sm:$0xff]
      %v388 = vld [vmem:[%s2 + $0x5a0] sm:$0xff]
      %v389 = vld [vmem:[%s2 + $0x5a8] sm:$0xff]
      %v390 = vld [vmem:[%s2 + $0x5b0] sm:$0xff]
      %v391 = vld [vmem:[%s2 + $0x5b8] sm:$0xff]
      %v392 = vld [vmem:[%s2 + $0x5c0] sm:$0xff]
      %v393 = vld [vmem:[%s2 + $0x5c8] sm:$0xff]
      %v394 = vld [vmem:[%s2 + $0x5d0] sm:$0xff]
      %v395 = vld [vmem:[%s2 + $0x5d8] sm:$0xff]
      %v396 = vld [vmem:[%s2 + $0x5e0] sm:$0xff]
      %v397 = vld [vmem:[%s2 + $0x5e8] sm:$0xff]
      %v398 = vld [vmem:[%s2 + $0x5f0] sm:$0xff]
      %v399 = vld [vmem:[%s2 + $0x5f8] sm:$0xff]
      %v400 = vld [vmem:[%s3] sm:$0x3f]
      %v401 = vld [vmem:[#allocation2] sm:$0x3]
      %v402 = vld [vmem:[%s192] ss:$8 sm:$0xf]
      %v403 = vld [vmem:[%s192] ss:$8 sm:$0x30]
      %v404 = vor.u32 %v402, %v403
      %v406 = vlaneseq
      %v407 = vshrl.u32 %v406, 7
      %v408 = vsub.s32 0, %v407
      %v409 = vrot.slane %v401, %v408
      %v410 = vlaneseq
      %v411 = vshrl.u32 %v410, 7
      %v412 = vsub.s32 1, %v411
      %v413 = vrot.slane %v401, %v412
      %v417 = vlaneseq
      %v418 = vshrl.u32 %v417, 7
      %v419 = vsub.s32 0, %v418
      %v420 = vrot.slane %v400, %v419
      %v421 = vlaneseq
      %v422 = vshrl.u32 %v421, 7
      %v423 = vsub.s32 1, %v422
      %v424 = vrot.slane %v400, %v423
      %v425 = vlaneseq
      %v426 = vshrl.u32 %v425, 7
      %v427 = vsub.s32 2, %v426
      %v428 = vrot.slane %v400, %v427
      %v429 = vlaneseq
      %v430 = vshrl.u32 %v429, 7
      %v431 = vsub.s32 3, %v430
      %v432 = vrot.slane %v400, %v431
      %v433 = vlaneseq
      %v434 = vshrl.u32 %v433, 7
      %v435 = vsub.s32 4, %v434
      %v436 = vrot.slane %v400, %v435
      %v437 = vlaneseq
      %v438 = vshrl.u32 %v437, 7
      %v439 = vsub.s32 5, %v438
      %v440 = vrot.slane %v400, %v439
      %447 = vmatprep.subr.mxu0 %v209
      %448 = vmatpush1.msra.mxu0 %v208
      %449 = vmatprep.subr.mxu0 %v215
      %450 = vmatpush1.msra.mxu0 %v214
      %451 = vmatprep.subr.mxu0 %v221
      %452 = vmatpush1.msra.mxu0 %v220
      %453 = vmatprep.subr.mxu0 %v227
      %454 = vmatpush1.msra.mxu0 %v226
      %455 = vmatprep.subr.mxu0 %v233
      %456 = vmatpush1.msra.mxu0 %v232
      %457 = vmatprep.subr.mxu0 %v239
      %458 = vmatpush1.msra.mxu0 %v238
      %459 = vmatprep.subr.mxu0 %v245
      %460 = vmatpush1.msra.mxu0 %v244
      %461 = vmatprep.subr.mxu0 %v251
      %462 = vmatpush1.msra.mxu0 %v250
      %463 = vmatprep.subr.mxu0 %v257
      %464 = vmatpush1.msra.mxu0 %v256
      %465 = vmatprep.subr.mxu0 %v263
      %466 = vmatpush1.msra.mxu0 %v262
      %467 = vmatprep.subr.mxu0 %v269
      %468 = vmatpush1.msra.mxu0 %v268
      %469 = vmatprep.subr.mxu0 %v275
      %470 = vmatpush1.msra.mxu0 %v274
      %471 = vmatprep.subr.mxu0 %v281
      %472 = vmatpush1.msra.mxu0 %v280
      %473 = vmatprep.subr.mxu0 %v287
      %474 = vmatpush1.msra.mxu0 %v286
      %475 = vmatprep.subr.mxu0 %v293
      %476 = vmatpush1.msra.mxu0 %v292
      %477 = vmatprep.subr.mxu0 %v299
      %478 = vmatpush1.msra.mxu0 %v298
      %479 = vmatprep.subr.mxu0 %v305
      %480 = vmatpush1.msra.mxu0 %v304
      %481 = vmatprep.subr.mxu0 %v311
      %482 = vmatpush1.msra.mxu0 %v310
      %483 = vmatprep.subr.mxu0 %v317
      %484 = vmatpush1.msra.mxu0 %v316
      %485 = vmatprep.subr.mxu0 %v323
      %486 = vmatpush1.msra.mxu0 %v322
      %487 = vmatprep.subr.mxu0 %v329
      %488 = vmatpush1.msra.mxu0 %v328
      %489 = vmatprep.subr.mxu0 %v335
      %490 = vmatpush1.msra.mxu0 %v334
      %491 = vmatprep.subr.mxu0 %v341
      %492 = vmatpush1.msra.mxu0 %v340
      %493 = vmatprep.subr.mxu0 %v347
      %494 = vmatpush1.msra.mxu0 %v346
      %495 = vmatprep.subr.mxu0 %v353
      %496 = vmatpush1.msra.mxu0 %v352
      %497 = vmatprep.subr.mxu0 %v359
      %498 = vmatpush1.msra.mxu0 %v358
      %499 = vmatprep.subr.mxu0 %v365
      %500 = vmatpush1.msra.mxu0 %v364
      %501 = vmatprep.subr.mxu0 %v371
      %502 = vmatpush1.msra.mxu0 %v370
      %503 = vmatprep.subr.mxu0 %v377
      %504 = vmatpush1.msra.mxu0 %v376
      %505 = vmatprep.subr.mxu0 %v383
      %506 = vmatpush1.msra.mxu0 %v382
      %507 = vmatprep.subr.mxu0 %v389
      %508 = vmatpush1.msra.mxu0 %v388
      %509 = vmatprep.subr.mxu0 %v395
      %510 = vmatpush1.msra.mxu0 %v394
      %511 = vmatprep.mubr.f32.mxu0 %v413
      %512 = vmatmul.mubr.f32.gmra.mrb[0].mxu0 %v409
      %v513 = vpop.f32.mrb[0].mxu0
      %v514 = vadd.f32 %v420, %v513
      %v515 = vpop.f32.mrb[0].mxu0
      %v516 = vadd.f32 %v424, %v515
      %517 = vdwg.mxu0
      %518 = vmatprep.subr.mxu0 %v211
      %519 = vmatpush1.msra.mxu0 %v210
      %520 = vmatprep.subr.mxu0 %v217
      %521 = vmatpush1.msra.mxu0 %v216
      %522 = vmatprep.subr.mxu0 %v223
      %523 = vmatpush1.msra.mxu0 %v222
      %524 = vmatprep.subr.mxu0 %v229
      %525 = vmatpush1.msra.mxu0 %v228
      %526 = vmatprep.subr.mxu0 %v235
      %527 = vmatpush1.msra.mxu0 %v234
      %528 = vmatprep.subr.mxu0 %v241
      %529 = vmatpush1.msra.mxu0 %v240
      %530 = vmatprep.subr.mxu0 %v247
      %531 = vmatpush1.msra.mxu0 %v246
      %532 = vmatprep.subr.mxu0 %v253
      %533 = vmatpush1.msra.mxu0 %v252
      %534 = vmatprep.subr.mxu0 %v259
      %535 = vmatpush1.msra.mxu0 %v258
      %536 = vmatprep.subr.mxu0 %v265
      %537 = vmatpush1.msra.mxu0 %v264
      %538 = vmatprep.subr.mxu0 %v271
      %539 = vmatpush1.msra.mxu0 %v270
      %540 = vmatprep.subr.mxu0 %v277
      %541 = vmatpush1.msra.mxu0 %v276
      %542 = vmatprep.subr.mxu0 %v283
      %543 = vmatpush1.msra.mxu0 %v282
      %544 = vmatprep.subr.mxu0 %v289
      %545 = vmatpush1.msra.mxu0 %v288
      %546 = vmatprep.subr.mxu0 %v295
      %547 = vmatpush1.msra.mxu0 %v294
      %548 = vmatprep.subr.mxu0 %v301
      %549 = vmatpush1.msra.mxu0 %v300
      %550 = vmatprep.subr.mxu0 %v307
      %551 = vmatpush1.msra.mxu0 %v306
      %552 = vmatprep.subr.mxu0 %v313
      %553 = vmatpush1.msra.mxu0 %v312
      %554 = vmatprep.subr.mxu0 %v319
      %555 = vmatpush1.msra.mxu0 %v318
      %556 = vmatprep.subr.mxu0 %v325
      %557 = vmatpush1.msra.mxu0 %v324
      %558 = vmatprep.subr.mxu0 %v331
      %559 = vmatpush1.msra.mxu0 %v330
      %560 = vmatprep.subr.mxu0 %v337
      %561 = vmatpush1.msra.mxu0 %v336
      %562 = vmatprep.subr.mxu0 %v343
      %563 = vmatpush1.msra.mxu0 %v342
      %564 = vmatprep.subr.mxu0 %v349
      %565 = vmatpush1.msra.mxu0 %v348
      %566 = vmatprep.subr.mxu0 %v355
      %567 = vmatpush1.msra.mxu0 %v354
      %568 = vmatprep.subr.mxu0 %v361
      %569 = vmatpush1.msra.mxu0 %v360
      %570 = vmatprep.subr.mxu0 %v367
      %571 = vmatpush1.msra.mxu0 %v366
      %572 = vmatprep.subr.mxu0 %v373
      %573 = vmatpush1.msra.mxu0 %v372
      %574 = vmatprep.subr.mxu0 %v379
      %575 = vmatpush1.msra.mxu0 %v378
      %576 = vmatprep.subr.mxu0 %v385
      %577 = vmatpush1.msra.mxu0 %v384
      %578 = vmatprep.subr.mxu0 %v391
      %579 = vmatpush1.msra.mxu0 %v390
      %580 = vmatprep.subr.mxu0 %v397
      %581 = vmatpush1.msra.mxu0 %v396
      %582 = vmatprep.mubr.f32.mxu0 %v413
      %583 = vmatmul.mubr.f32.gmra.mrb[0].mxu0 %v409
      %v584 = vpop.f32.mrb[0].mxu0
      %v585 = vadd.f32 %v428, %v584
      %v586 = vpop.f32.mrb[0].mxu0
      %v587 = vadd.f32 %v432, %v586
      %588 = vdwg.mxu0
      %589 = vmatprep.subr.mxu0 %v213
      %590 = vmatpush1.msra.mxu0 %v212
      %591 = vmatprep.subr.mxu0 %v219
      %592 = vmatpush1.msra.mxu0 %v218
      %593 = vmatprep.subr.mxu0 %v225
      %594 = vmatpush1.msra.mxu0 %v224
      %595 = vmatprep.subr.mxu0 %v231
      %596 = vmatpush1.msra.mxu0 %v230
      %597 = vmatprep.subr.mxu0 %v237
      %598 = vmatpush1.msra.mxu0 %v236
      %599 = vmatprep.subr.mxu0 %v243
      %600 = vmatpush1.msra.mxu0 %v242
      %601 = vmatprep.subr.mxu0 %v249
      %602 = vmatpush1.msra.mxu0 %v248
      %603 = vmatprep.subr.mxu0 %v255
      %604 = vmatpush1.msra.mxu0 %v254
      %605 = vmatprep.subr.mxu0 %v261
      %606 = vmatpush1.msra.mxu0 %v260
      %607 = vmatprep.subr.mxu0 %v267
      %608 = vmatpush1.msra.mxu0 %v266
      %609 = vmatprep.subr.mxu0 %v273
      %610 = vmatpush1.msra.mxu0 %v272
      %611 = vmatprep.subr.mxu0 %v279
      %612 = vmatpush1.msra.mxu0 %v278
      %613 = vmatprep.subr.mxu0 %v285
      %614 = vmatpush1.msra.mxu0 %v284
      %615 = vmatprep.subr.mxu0 %v291
      %616 = vmatpush1.msra.mxu0 %v290
      %617 = vmatprep.subr.mxu0 %v297
      %618 = vmatpush1.msra.mxu0 %v296
      %619 = vmatprep.subr.mxu0 %v303
      %620 = vmatpush1.msra.mxu0 %v302
      %621 = vmatprep.subr.mxu0 %v309
      %622 = vmatpush1.msra.mxu0 %v308
      %623 = vmatprep.subr.mxu0 %v315
      %624 = vmatpush1.msra.mxu0 %v314
      %625 = vmatprep.subr.mxu0 %v321
      %626 = vmatpush1.msra.mxu0 %v320
      %627 = vmatprep.subr.mxu0 %v327
      %628 = vmatpush1.msra.mxu0 %v326
      %629 = vmatprep.subr.mxu0 %v333
      %630 = vmatpush1.msra.mxu0 %v332
      %631 = vmatprep.subr.mxu0 %v339
      %632 = vmatpush1.msra.mxu0 %v338
      %633 = vmatprep.subr.mxu0 %v345
      %634 = vmatpush1.msra.mxu0 %v344
      %635 = vmatprep.subr.mxu0 %v351
      %636 = vmatpush1.msra.mxu0 %v350
      %637 = vmatprep.subr.mxu0 %v357
      %638 = vmatpush1.msra.mxu0 %v356
      %639 = vmatprep.subr.mxu0 %v363
      %640 = vmatpush1.msra.mxu0 %v362
      %641 = vmatprep.subr.mxu0 %v369
      %642 = vmatpush1.msra.mxu0 %v368
      %643 = vmatprep.subr.mxu0 %v375
      %644 = vmatpush1.msra.mxu0 %v374
      %645 = vmatprep.subr.mxu0 %v381
      %646 = vmatpush1.msra.mxu0 %v380
      %647 = vmatprep.subr.mxu0 %v387
      %648 = vmatpush1.msra.mxu0 %v386
      %649 = vmatprep.subr.mxu0 %v393
      %650 = vmatpush1.msra.mxu0 %v392
      %651 = vmatprep.subr.mxu0 %v399
      %652 = vmatpush1.msra.mxu0 %v398
      %653 = vmatprep.mubr.f32.mxu0 %v413
      %654 = vmatmul.mubr.f32.gmra.mrb[0].mxu0 %v409
      %v655 = vpop.f32.mrb[0].mxu0
      %v656 = vadd.f32 %v436, %v655
      %v657 = vpop.f32.mrb[0].mxu0
      %v658 = vadd.f32 %v440, %v657
      %659 = vdwg.mxu0
      %v662 = vcombine.low %v514, %v516
      %v664 = vunpack.c.l.s4 1966171168
      %v665 = vunpack.c.0.s8 %v664
      %v666 = vlaneseq
      %v667 = vshrl.u32 %v666, 7
      %v668 = vsub.s32 %v665, %v667
      %v669 = vrot.slane %v662, %v668
      %v671 = vunpack.c.l.s4 1966171168
      %v672 = vunpack.c.0.s8 %v671
      %v673 = vlaneseq
      %v674 = vshrl.u32 %v673, 7
      %v675 = vsub.s32 %v672, %v674
      %v676 = vrot.slane %v669, %v675
      %v678 = vadd.f32 %v404, %v676
      %v679 = vxor.u32 %v678, 2147483648
      %v680 = vmul.f32 %v679, 1.442695
      %v681 = vpow.pop %v680
      %v682 = vadd.f32 %v681, 1.0
      %v683 = vrcp.pop %v682
      %v684 = vmul.f32 1.0, %v683
      %v686 = vrot.slane %v404, 2
      %v690 = vcombine.low %v585, %v587
      %v692 = vunpack.c.l.s4 1966171168
      %v693 = vunpack.c.0.s8 %v692
      %v694 = vlaneseq
      %v695 = vshrl.u32 %v694, 7
      %v696 = vsub.s32 %v693, %v695
      %v697 = vrot.slane %v690, %v696
      %v699 = vunpack.c.l.s4 1966171168
      %v700 = vunpack.c.0.s8 %v699
      %v701 = vlaneseq
      %v702 = vshrl.u32 %v701, 7
      %v703 = vsub.s32 %v700, %v702
      %v704 = vrot.slane %v697, %v703
      %v706 = vadd.f32 %v686, %v704
      %v707 = vxor.u32 %v706, 2147483648
      %v708 = vmul.f32 %v707, 1.442695
      %v709 = vpow.pop %v708
      %v710 = vadd.f32 %v709, 1.0
      %v711 = vrcp.pop %v710
      %v712 = vmul.f32 1.0, %v711
      %v715 = vcombine.low %v656, %v658
      %v717 = vunpack.c.l.s4 1966171168
      %v718 = vunpack.c.0.s8 %v717
      %v719 = vlaneseq
      %v720 = vshrl.u32 %v719, 7
      %v721 = vsub.s32 %v718, %v720
      %v722 = vrot.slane %v715, %v721
      %v724 = vunpack.c.l.s4 1966171168
      %v725 = vunpack.c.0.s8 %v724
      %v726 = vlaneseq
      %v727 = vshrl.u32 %v726, 7
      %v728 = vsub.s32 %v725, %v727
      %v729 = vrot.slane %v722, %v728
      %v731 = vmul.f32 %v684, %v729
      %v732 = vrot.slane %v404, 4
      %v734 = vadd.f32 %v732, %v731
      %v735 = vtanh.pop %v734
      %v736 = vsub.f32 1.0, %v712
      %v737 = vmul.f32 %v736, %v735
      %v738 = vmul.f32 %v712, %v401
      %v739 = vadd.f32 %v737, %v738
      %v740 = vlaneseq
      %vm741 = vcmp.ge.s32.totalorder %v740, 0
      %vm742 = vcmp.lt.s32.totalorder %v740, 256
      %vm743 = vmand %vm741, %vm742
      %744 = vst.msk [vmem:[%s197] ss:$8 sm:$0x3] %vm743, %v739
      %745 = vst.msk [vmem:[%s197] ss:$8 sm:$0x0] %vm743, %v739
      %s746 = scalar_lea.vmem %s192, 1
      %v747 = vld [vmem:[%s746] ss:$8 sm:$0xf]
      %v748 = vld [vmem:[%s746] ss:$8 sm:$0x30]
      %v749 = vor.u32 %v747, %v748
      %v751 = vlaneseq
      %v752 = vshrl.u32 %v751, 7
      %v753 = vsub.s32 0, %v752
      %v754 = vrot.slane %v739, %v753
      %v755 = vlaneseq
      %v756 = vshrl.u32 %v755, 7
      %v757 = vsub.s32 1, %v756
      %v758 = vrot.slane %v739, %v757
      %761 = vmatprep.subr.mxu0 %v209
      %762 = vmatpush1.msra.mxu0 %v208
      %763 = vmatprep.subr.mxu0 %v215
      %764 = vmatpush1.msra.mxu0 %v214
      %765 = vmatprep.subr.mxu0 %v221
      %766 = vmatpush1.msra.mxu0 %v220
      %767 = vmatprep.subr.mxu0 %v227
      %768 = vmatpush1.msra.mxu0 %v226
      %769 = vmatprep.subr.mxu0 %v233
      %770 = vmatpush1.msra.mxu0 %v232
      %771 = vmatprep.subr.mxu0 %v239
      %772 = vmatpush1.msra.mxu0 %v238
      %773 = vmatprep.subr.mxu0 %v245
      %774 = vmatpush1.msra.mxu0 %v244
      %775 = vmatprep.subr.mxu0 %v251
      %776 = vmatpush1.msra.mxu0 %v250
      %777 = vmatprep.subr.mxu0 %v257
      %778 = vmatpush1.msra.mxu0 %v256
      %779 = vmatprep.subr.mxu0 %v263
      %780 = vmatpush1.msra.mxu0 %v262
      %781 = vmatprep.subr.mxu0 %v269
      %782 = vmatpush1.msra.mxu0 %v268
      %783 = vmatprep.subr.mxu0 %v275
      %784 = vmatpush1.msra.mxu0 %v274
      %785 = vmatprep.subr.mxu0 %v281
      %786 = vmatpush1.msra.mxu0 %v280
      %787 = vmatprep.subr.mxu0 %v287
      %788 = vmatpush1.msra.mxu0 %v286
      %789 = vmatprep.subr.mxu0 %v293
      %790 = vmatpush1.msra.mxu0 %v292
      %791 = vmatprep.subr.mxu0 %v299
      %792 = vmatpush1.msra.mxu0 %v298
      %793 = vmatprep.subr.mxu0 %v305
      %794 = vmatpush1.msra.mxu0 %v304
      %795 = vmatprep.subr.mxu0 %v311
      %796 = vmatpush1.msra.mxu0 %v310
      %797 = vmatprep.subr.mxu0 %v317
      %798 = vmatpush1.msra.mxu0 %v316
      %799 = vmatprep.subr.mxu0 %v323
      %800 = vmatpush1.msra.mxu0 %v322
      %801 = vmatprep.subr.mxu0 %v329
      %802 = vmatpush1.msra.mxu0 %v328
      %803 = vmatprep.subr.mxu0 %v335
      %804 = vmatpush1.msra.mxu0 %v334
      %805 = vmatprep.subr.mxu0 %v341
      %806 = vmatpush1.msra.mxu0 %v340
      %807 = vmatprep.subr.mxu0 %v347
      %808 = vmatpush1.msra.mxu0 %v346
      %809 = vmatprep.subr.mxu0 %v353
      %810 = vmatpush1.msra.mxu0 %v352
      %811 = vmatprep.subr.mxu0 %v359
      %812 = vmatpush1.msra.mxu0 %v358
      %813 = vmatprep.subr.mxu0 %v365
      %814 = vmatpush1.msra.mxu0 %v364
      %815 = vmatprep.subr.mxu0 %v371
      %816 = vmatpush1.msra.mxu0 %v370
      %817 = vmatprep.subr.mxu0 %v377
      %818 = vmatpush1.msra.mxu0 %v376
      %819 = vmatprep.subr.mxu0 %v383
      %820 = vmatpush1.msra.mxu0 %v382
      %821 = vmatprep.subr.mxu0 %v389
      %822 = vmatpush1.msra.mxu0 %v388
      %823 = vmatprep.subr.mxu0 %v395
      %824 = vmatpush1.msra.mxu0 %v394
      %825 = vmatprep.mubr.f32.mxu0 %v758
      %826 = vmatmul.mubr.f32.gmra.mrb[0].mxu0 %v754
      %v827 = vpop.f32.mrb[0].mxu0
      %v828 = vadd.f32 %v420, %v827
      %v829 = vpop.f32.mrb[0].mxu0
      %v830 = vadd.f32 %v424, %v829
      %831 = vdwg.mxu0
      %832 = vmatprep.subr.mxu0 %v211
      %833 = vmatpush1.msra.mxu0 %v210
      %834 = vmatprep.subr.mxu0 %v217
      %835 = vmatpush1.msra.mxu0 %v216
      %836 = vmatprep.subr.mxu0 %v223
      %837 = vmatpush1.msra.mxu0 %v222
      %838 = vmatprep.subr.mxu0 %v229
      %839 = vmatpush1.msra.mxu0 %v228
      %840 = vmatprep.subr.mxu0 %v235
      %841 = vmatpush1.msra.mxu0 %v234
      %842 = vmatprep.subr.mxu0 %v241
      %843 = vmatpush1.msra.mxu0 %v240
      %844 = vmatprep.subr.mxu0 %v247
      %845 = vmatpush1.msra.mxu0 %v246
      %846 = vmatprep.subr.mxu0 %v253
      %847 = vmatpush1.msra.mxu0 %v252
      %848 = vmatprep.subr.mxu0 %v259
      %849 = vmatpush1.msra.mxu0 %v258
      %850 = vmatprep.subr.mxu0 %v265
      %851 = vmatpush1.msra.mxu0 %v264
      %852 = vmatprep.subr.mxu0 %v271
      %853 = vmatpush1.msra.mxu0 %v270
      %854 = vmatprep.subr.mxu0 %v277
      %855 = vmatpush1.msra.mxu0 %v276
      %856 = vmatprep.subr.mxu0 %v283
      %857 = vmatpush1.msra.mxu0 %v282
      %858 = vmatprep.subr.mxu0 %v289
      %859 = vmatpush1.msra.mxu0 %v288
      %860 = vmatprep.subr.mxu0 %v295
      %861 = vmatpush1.msra.mxu0 %v294
      %862 = vmatprep.subr.mxu0 %v301
      %863 = vmatpush1.msra.mxu0 %v300
      %864 = vmatprep.subr.mxu0 %v307
      %865 = vmatpush1.msra.mxu0 %v306
      %866 = vmatprep.subr.mxu0 %v313
      %867 = vmatpush1.msra.mxu0 %v312
      %868 = vmatprep.subr.mxu0 %v319
      %869 = vmatpush1.msra.mxu0 %v318
      %870 = vmatprep.subr.mxu0 %v325
      %871 = vmatpush1.msra.mxu0 %v324
      %872 = vmatprep.subr.mxu0 %v331
      %873 = vmatpush1.msra.mxu0 %v330
      %874 = vmatprep.subr.mxu0 %v337
      %875 = vmatpush1.msra.mxu0 %v336
      %876 = vmatprep.subr.mxu0 %v343
      %877 = vmatpush1.msra.mxu0 %v342
      %878 = vmatprep.subr.mxu0 %v349
      %879 = vmatpush1.msra.mxu0 %v348
      %880 = vmatprep.subr.mxu0 %v355
      %881 = vmatpush1.msra.mxu0 %v354
      %882 = vmatprep.subr.mxu0 %v361
      %883 = vmatpush1.msra.mxu0 %v360
      %884 = vmatprep.subr.mxu0 %v367
      %885 = vmatpush1.msra.mxu0 %v366
      %886 = vmatprep.subr.mxu0 %v373
      %887 = vmatpush1.msra.mxu0 %v372
      %888 = vmatprep.subr.mxu0 %v379
      %889 = vmatpush1.msra.mxu0 %v378
      %890 = vmatprep.subr.mxu0 %v385
      %891 = vmatpush1.msra.mxu0 %v384
      %892 = vmatprep.subr.mxu0 %v391
      %893 = vmatpush1.msra.mxu0 %v390
      %894 = vmatprep.subr.mxu0 %v397
      %895 = vmatpush1.msra.mxu0 %v396
      %896 = vmatprep.mubr.f32.mxu0 %v758
      %897 = vmatmul.mubr.f32.gmra.mrb[0].mxu0 %v754
      %v898 = vpop.f32.mrb[0].mxu0
      %v899 = vadd.f32 %v428, %v898
      %v900 = vpop.f32.mrb[0].mxu0
      %v901 = vadd.f32 %v432, %v900
      %902 = vdwg.mxu0
      %903 = vmatprep.subr.mxu0 %v213
      %904 = vmatpush1.msra.mxu0 %v212
      %905 = vmatprep.subr.mxu0 %v219
      %906 = vmatpush1.msra.mxu0 %v218
      %907 = vmatprep.subr.mxu0 %v225
      %908 = vmatpush1.msra.mxu0 %v224
      %909 = vmatprep.subr.mxu0 %v231
      %910 = vmatpush1.msra.mxu0 %v230
      %911 = vmatprep.subr.mxu0 %v237
      %912 = vmatpush1.msra.mxu0 %v236
      %913 = vmatprep.subr.mxu0 %v243
      %914 = vmatpush1.msra.mxu0 %v242
      %915 = vmatprep.subr.mxu0 %v249
      %916 = vmatpush1.msra.mxu0 %v248
      %917 = vmatprep.subr.mxu0 %v255
      %918 = vmatpush1.msra.mxu0 %v254
      %919 = vmatprep.subr.mxu0 %v261
      %920 = vmatpush1.msra.mxu0 %v260
      %921 = vmatprep.subr.mxu0 %v267
      %922 = vmatpush1.msra.mxu0 %v266
      %923 = vmatprep.subr.mxu0 %v273
      %924 = vmatpush1.msra.mxu0 %v272
      %925 = vmatprep.subr.mxu0 %v279
      %926 = vmatpush1.msra.mxu0 %v278
      %927 = vmatprep.subr.mxu0 %v285
      %928 = vmatpush1.msra.mxu0 %v284
      %929 = vmatprep.subr.mxu0 %v291
      %930 = vmatpush1.msra.mxu0 %v290
      %931 = vmatprep.subr.mxu0 %v297
      %932 = vmatpush1.msra.mxu0 %v296
      %933 = vmatprep.subr.mxu0 %v303
      %934 = vmatpush1.msra.mxu0 %v302
      %935 = vmatprep.subr.mxu0 %v309
      %936 = vmatpush1.msra.mxu0 %v308
      %937 = vmatprep.subr.mxu0 %v315
      %938 = vmatpush1.msra.mxu0 %v314
      %939 = vmatprep.subr.mxu0 %v321
      %940 = vmatpush1.msra.mxu0 %v320
      %941 = vmatprep.subr.mxu0 %v327
      %942 = vmatpush1.msra.mxu0 %v326
      %943 = vmatprep.subr.mxu0 %v333
      %944 = vmatpush1.msra.mxu0 %v332
      %945 = vmatprep.subr.mxu0 %v339
      %946 = vmatpush1.msra.mxu0 %v338
      %947 = vmatprep.subr.mxu0 %v345
      %948 = vmatpush1.msra.mxu0 %v344
      %949 = vmatprep.subr.mxu0 %v351
      %950 = vmatpush1.msra.mxu0 %v350
      %951 = vmatprep.subr.mxu0 %v357
      %952 = vmatpush1.msra.mxu0 %v356
      %953 = vmatprep.subr.mxu0 %v363
      %954 = vmatpush1.msra.mxu0 %v362
      %955 = vmatprep.subr.mxu0 %v369
      %956 = vmatpush1.msra.mxu0 %v368
      %957 = vmatprep.subr.mxu0 %v375
      %958 = vmatpush1.msra.mxu0 %v374
      %959 = vmatprep.subr.mxu0 %v381
      %960 = vmatpush1.msra.mxu0 %v380
      %961 = vmatprep.subr.mxu0 %v387
      %962 = vmatpush1.msra.mxu0 %v386
      %963 = vmatprep.subr.mxu0 %v393
      %964 = vmatpush1.msra.mxu0 %v392
      %965 = vmatprep.subr.mxu0 %v399
      %966 = vmatpush1.msra.mxu0 %v398
      %967 = vmatprep.mubr.f32.mxu0 %v758
      %968 = vmatmul.mubr.f32.gmra.mrb[0].mxu0 %v754
      %v969 = vpop.f32.mrb[0].mxu0
      %v970 = vadd.f32 %v436, %v969
      %v971 = vpop.f32.mrb[0].mxu0
      %v972 = vadd.f32 %v440, %v971
      %973 = vdwg.mxu0
      %v976 = vcombine.low %v828, %v830
      %v978 = vunpack.c.l.s4 1966171168
      %v979 = vunpack.c.0.s8 %v978
      %v980 = vlaneseq
      %v981 = vshrl.u32 %v980, 7
      %v982 = vsub.s32 %v979, %v981
      %v983 = vrot.slane %v976, %v982
      %v985 = vunpack.c.l.s4 1966171168
      %v986 = vunpack.c.0.s8 %v985
      %v987 = vlaneseq
      %v988 = vshrl.u32 %v987, 7
      %v989 = vsub.s32 %v986, %v988
      %v990 = vrot.slane %v983, %v989
      %v992 = vadd.f32 %v749, %v990
      %v993 = vxor.u32 %v992, 2147483648
      %v994 = vmul.f32 %v993, 1.442695
      %v995 = vpow.pop %v994
      %v996 = vadd.f32 %v995, 1.0
      %v997 = vrcp.pop %v996
      %v998 = vmul.f32 1.0, %v997
      %v1000 = vrot.slane %v749, 2
      %v1004 = vcombine.low %v899, %v901
      %v1006 = vunpack.c.l.s4 1966171168
      %v1007 = vunpack.c.0.s8 %v1006
      %v1008 = vlaneseq
      %v1009 = vshrl.u32 %v1008, 7
      %v1010 = vsub.s32 %v1007, %v1009
      %v1011 = vrot.slane %v1004, %v1010
      %v1013 = vunpack.c.l.s4 1966171168
      %v1014 = vunpack.c.0.s8 %v1013
      %v1015 = vlaneseq
      %v1016 = vshrl.u32 %v1015, 7
      %v1017 = vsub.s32 %v1014, %v1016
      %v1018 = vrot.slane %v1011, %v1017
      %v1020 = vadd.f32 %v1000, %v1018
      %v1021 = vxor.u32 %v1020, 2147483648
      %v1022 = vmul.f32 %v1021, 1.442695
      %v1023 = vpow.pop %v1022
      %v1024 = vadd.f32 %v1023, 1.0
      %v1025 = vrcp.pop %v1024
      %v1026 = vmul.f32 1.0, %v1025
      %v1029 = vcombine.low %v970, %v972
      %v1031 = vunpack.c.l.s4 1966171168
      %v1032 = vunpack.c.0.s8 %v1031
      %v1033 = vlaneseq
      %v1034 = vshrl.u32 %v1033, 7
      %v1035 = vsub.s32 %v1032, %v1034
      %v1036 = vrot.slane %v1029, %v1035
      %v1038 = vunpack.c.l.s4 1966171168
      %v1039 = vunpack.c.0.s8 %v1038
      %v1040 = vlaneseq
      %v1041 = vshrl.u32 %v1040, 7
      %v1042 = vsub.s32 %v1039, %v1041
      %v1043 = vrot.slane %v1036, %v1042
      %v1045 = vmul.f32 %v998, %v1043
      %v1046 = vrot.slane %v749, 4
      %v1048 = vadd.f32 %v1046, %v1045
      %v1049 = vtanh.pop %v1048
      %v1050 = vsub.f32 1.0, %v1026
      %v1051 = vmul.f32 %v1050, %v1049
      %v1052 = vmul.f32 %v1026, %v739
      %v1053 = vadd.f32 %v1051, %v1052
      %s1054 = scalar_lea.vmem %s197, 1
      %1055 = vst.msk [vmem:[%s1054] ss:$8 sm:$0x3] %vm743, %v1053
      %1056 = vst.msk [vmem:[%s1054] ss:$8 sm:$0x0] %vm743, %v1053
      %s1057 = scalar_lea.vmem %s192, 2
      %v1058 = vld [vmem:[%s1057] ss:$8 sm:$0xf]
      %v1059 = vld [vmem:[%s1057] ss:$8 sm:$0x30]
      %v1060 = vor.u32 %v1058, %v1059
      %v1062 = vlaneseq
      %v1063 = vshrl.u32 %v1062, 7
      %v1064 = vsub.s32 0, %v1063
      %v1065 = vrot.slane %v1053, %v1064
      %v1066 = vlaneseq
      %v1067 = vshrl.u32 %v1066, 7
      %v1068 = vsub.s32 1, %v1067
      %v1069 = vrot.slane %v1053, %v1068
      %1072 = vmatprep.subr.mxu0 %v209
      %1073 = vmatpush1.msra.mxu0 %v208
      %1074 = vmatprep.subr.mxu0 %v215
      %1075 = vmatpush1.msra.mxu0 %v214
      %1076 = vmatprep.subr.mxu0 %v221
      %1077 = vmatpush1.msra.mxu0 %v220
      %1078 = vmatprep.subr.mxu0 %v227
      %1079 = vmatpush1.msra.mxu0 %v226
      %1080 = vmatprep.subr.mxu0 %v233
      %1081 = vmatpush1.msra.mxu0 %v232
      %1082 = vmatprep.subr.mxu0 %v239
      %1083 = vmatpush1.msra.mxu0 %v238
      %1084 = vmatprep.subr.mxu0 %v245
      %1085 = vmatpush1.msra.mxu0 %v244
      %1086 = vmatprep.subr.mxu0 %v251
      %1087 = vmatpush1.msra.mxu0 %v250
      %1088 = vmatprep.subr.mxu0 %v257
      %1089 = vmatpush1.msra.mxu0 %v256
      %1090 = vmatprep.subr.mxu0 %v263
      %1091 = vmatpush1.msra.mxu0 %v262
      %1092 = vmatprep.subr.mxu0 %v269
      %1093 = vmatpush1.msra.mxu0 %v268
      %1094 = vmatprep.subr.mxu0 %v275
      %1095 = vmatpush1.msra.mxu0 %v274
      %1096 = vmatprep.subr.mxu0 %v281
      %1097 = vmatpush1.msra.mxu0 %v280
      %1098 = vmatprep.subr.mxu0 %v287
      %1099 = vmatpush1.msra.mxu0 %v286
      %1100 = vmatprep.subr.mxu0 %v293
      %1101 = vmatpush1.msra.mxu0 %v292
      %1102 = vmatprep.subr.mxu0 %v299
      %1103 = vmatpush1.msra.mxu0 %v298
      %1104 = vmatprep.subr.mxu0 %v305
      %1105 = vmatpush1.msra.mxu0 %v304
      %1106 = vmatprep.subr.mxu0 %v311
      %1107 = vmatpush1.msra.mxu0 %v310
      %1108 = vmatprep.subr.mxu0 %v317
      %1109 = vmatpush1.msra.mxu0 %v316
      %1110 = vmatprep.subr.mxu0 %v323
      %1111 = vmatpush1.msra.mxu0 %v322
      %1112 = vmatprep.subr.mxu0 %v329
      %1113 = vmatpush1.msra.mxu0 %v328
      %1114 = vmatprep.subr.mxu0 %v335
      %1115 = vmatpush1.msra.mxu0 %v334
      %1116 = vmatprep.subr.mxu0 %v341
      %1117 = vmatpush1.msra.mxu0 %v340
      %1118 = vmatprep.subr.mxu0 %v347
      %1119 = vmatpush1.msra.mxu0 %v346
      %1120 = vmatprep.subr.mxu0 %v353
      %1121 = vmatpush1.msra.mxu0 %v352
      %1122 = vmatprep.subr.mxu0 %v359
      %1123 = vmatpush1.msra.mxu0 %v358
      %1124 = vmatprep.subr.mxu0 %v365
      %1125 = vmatpush1.msra.mxu0 %v364
      %1126 = vmatprep.subr.mxu0 %v371
      %1127 = vmatpush1.msra.mxu0 %v370
      %1128 = vmatprep.subr.mxu0 %v377
      %1129 = vmatpush1.msra.mxu0 %v376
      %1130 = vmatprep.subr.mxu0 %v383
      %1131 = vmatpush1.msra.mxu0 %v382
      %1132 = vmatprep.subr.mxu0 %v389
      %1133 = vmatpush1.msra.mxu0 %v388
      %1134 = vmatprep.subr.mxu0 %v395
      %1135 = vmatpush1.msra.mxu0 %v394
      %1136 = vmatprep.mubr.f32.mxu0 %v1069
      %1137 = vmatmul.mubr.f32.gmra.mrb[0].mxu0 %v1065
      %v1138 = vpop.f32.mrb[0].mxu0
      %v1139 = vadd.f32 %v420, %v1138
      %v1140 = vpop.f32.mrb[0].mxu0
      %v1141 = vadd.f32 %v424, %v1140
      %1142 = vdwg.mxu0
      %1143 = vmatprep.subr.mxu0 %v211
      %1144 = vmatpush1.msra.mxu0 %v210
      %1145 = vmatprep.subr.mxu0 %v217
      %1146 = vmatpush1.msra.mxu0 %v216
      %1147 = vmatprep.subr.mxu0 %v223
      %1148 = vmatpush1.msra.mxu0 %v222
      %1149 = vmatprep.subr.mxu0 %v229
      %1150 = vmatpush1.msra.mxu0 %v228
      %1151 = vmatprep.subr.mxu0 %v235
      %1152 = vmatpush1.msra.mxu0 %v234
      %1153 = vmatprep.subr.mxu0 %v241
      %1154 = vmatpush1.msra.mxu0 %v240
      %1155 = vmatprep.subr.mxu0 %v247
      %1156 = vmatpush1.msra.mxu0 %v246
      %1157 = vmatprep.subr.mxu0 %v253
      %1158 = vmatpush1.msra.mxu0 %v252
      %1159 = vmatprep.subr.mxu0 %v259
      %1160 = vmatpush1.msra.mxu0 %v258
      %1161 = vmatprep.subr.mxu0 %v265
      %1162 = vmatpush1.msra.mxu0 %v264
      %1163 = vmatprep.subr.mxu0 %v271
      %1164 = vmatpush1.msra.mxu0 %v270
      %1165 = vmatprep.subr.mxu0 %v277
      %1166 = vmatpush1.msra.mxu0 %v276
      %1167 = vmatprep.subr.mxu0 %v283
      %1168 = vmatpush1.msra.mxu0 %v282
      %1169 = vmatprep.subr.mxu0 %v289
      %1170 = vmatpush1.msra.mxu0 %v288
      %1171 = vmatprep.subr.mxu0 %v295
      %1172 = vmatpush1.msra.mxu0 %v294
      %1173 = vmatprep.subr.mxu0 %v301
      %1174 = vmatpush1.msra.mxu0 %v300
      %1175 = vmatprep.subr.mxu0 %v307
      %1176 = vmatpush1.msra.mxu0 %v306
      %1177 = vmatprep.subr.mxu0 %v313
      %1178 = vmatpush1.msra.mxu0 %v312
      %1179 = vmatprep.subr.mxu0 %v319
      %1180 = vmatpush1.msra.mxu0 %v318
      %1181 = vmatprep.subr.mxu0 %v325
      %1182 = vmatpush1.msra.mxu0 %v324
      %1183 = vmatprep.subr.mxu0 %v331
      %1184 = vmatpush1.msra.mxu0 %v330
      %1185 = vmatprep.subr.mxu0 %v337
      %1186 = vmatpush1.msra.mxu0 %v336
      %1187 = vmatprep.subr.mxu0 %v343
      %1188 = vmatpush1.msra.mxu0 %v342
      %1189 = vmatprep.subr.mxu0 %v349
      %1190 = vmatpush1.msra.mxu0 %v348
      %1191 = vmatprep.subr.mxu0 %v355
      %1192 = vmatpush1.msra.mxu0 %v354
      %1193 = vmatprep.subr.mxu0 %v361
      %1194 = vmatpush1.msra.mxu0 %v360
      %1195 = vmatprep.subr.mxu0 %v367
      %1196 = vmatpush1.msra.mxu0 %v366
      %1197 = vmatprep.subr.mxu0 %v373
      %1198 = vmatpush1.msra.mxu0 %v372
      %1199 = vmatprep.subr.mxu0 %v379
      %1200 = vmatpush1.msra.mxu0 %v378
      %1201 = vmatprep.subr.mxu0 %v385
      %1202 = vmatpush1.msra.mxu0 %v384
      %1203 = vmatprep.subr.mxu0 %v391
      %1204 = vmatpush1.msra.mxu0 %v390
      %1205 = vmatprep.subr.mxu0 %v397
      %1206 = vmatpush1.msra.mxu0 %v396
      %1207 = vmatprep.mubr.f32.mxu0 %v1069
      %1208 = vmatmul.mubr.f32.gmra.mrb[0].mxu0 %v1065
      %v1209 = vpop.f32.mrb[0].mxu0
      %v1210 = vadd.f32 %v428, %v1209
      %v1211 = vpop.f32.mrb[0].mxu0
      %v1212 = vadd.f32 %v432, %v1211
      %1213 = vdwg.mxu0
      %1214 = vmatprep.subr.mxu0 %v213
      %1215 = vmatpush1.msra.mxu0 %v212
      %1216 = vmatprep.subr.mxu0 %v219
      %1217 = vmatpush1.msra.mxu0 %v218
      %1218 = vmatprep.subr.mxu0 %v225
      %1219 = vmatpush1.msra.mxu0 %v224
      %1220 = vmatprep.subr.mxu0 %v231
      %1221 = vmatpush1.msra.mxu0 %v230
      %1222 = vmatprep.subr.mxu0 %v237
      %1223 = vmatpush1.msra.mxu0 %v236
      %1224 = vmatprep.subr.mxu0 %v243
      %1225 = vmatpush1.msra.mxu0 %v242
      %1226 = vmatprep.subr.mxu0 %v249
      %1227 = vmatpush1.msra.mxu0 %v248
      %1228 = vmatprep.subr.mxu0 %v255
      %1229 = vmatpush1.msra.mxu0 %v254
      %1230 = vmatprep.subr.mxu0 %v261
      %1231 = vmatpush1.msra.mxu0 %v260
      %1232 = vmatprep.subr.mxu0 %v267
      %1233 = vmatpush1.msra.mxu0 %v266
      %1234 = vmatprep.subr.mxu0 %v273
      %1235 = vmatpush1.msra.mxu0 %v272
      %1236 = vmatprep.subr.mxu0 %v279
      %1237 = vmatpush1.msra.mxu0 %v278
      %1238 = vmatprep.subr.mxu0 %v285
      %1239 = vmatpush1.msra.mxu0 %v284
      %1240 = vmatprep.subr.mxu0 %v291
      %1241 = vmatpush1.msra.mxu0 %v290
      %1242 = vmatprep.subr.mxu0 %v297
      %1243 = vmatpush1.msra.mxu0 %v296
      %1244 = vmatprep.subr.mxu0 %v303
      %1245 = vmatpush1.msra.mxu0 %v302
      %1246 = vmatprep.subr.mxu0 %v309
      %1247 = vmatpush1.msra.mxu0 %v308
      %1248 = vmatprep.subr.mxu0 %v315
      %1249 = vmatpush1.msra.mxu0 %v314
      %1250 = vmatprep.subr.mxu0 %v321
      %1251 = vmatpush1.msra.mxu0 %v320
      %1252 = vmatprep.subr.mxu0 %v327
      %1253 = vmatpush1.msra.mxu0 %v326
      %1254 = vmatprep.subr.mxu0 %v333
      %1255 = vmatpush1.msra.mxu0 %v332
      %1256 = vmatprep.subr.mxu0 %v339
      %1257 = vmatpush1.msra.mxu0 %v338
      %1258 = vmatprep.subr.mxu0 %v345
      %1259 = vmatpush1.msra.mxu0 %v344
      %1260 = vmatprep.subr.mxu0 %v351
      %1261 = vmatpush1.msra.mxu0 %v350
      %1262 = vmatprep.subr.mxu0 %v357
      %1263 = vmatpush1.msra.mxu0 %v356
      %1264 = vmatprep.subr.mxu0 %v363
      %1265 = vmatpush1.msra.mxu0 %v362
      %1266 = vmatprep.subr.mxu0 %v369
      %1267 = vmatpush1.msra.mxu0 %v368
      %1268 = vmatprep.subr.mxu0 %v375
      %1269 = vmatpush1.msra.mxu0 %v374
      %1270 = vmatprep.subr.mxu0 %v381
      %1271 = vmatpush1.msra.mxu0 %v380
      %1272 = vmatprep.subr.mxu0 %v387
      %1273 = vmatpush1.msra.mxu0 %v386
      %1274 = vmatprep.subr.mxu0 %v393
      %1275 = vmatpush1.msra.mxu0 %v392
      %1276 = vmatprep.subr.mxu0 %v399
      %1277 = vmatpush1.msra.mxu0 %v398
      %1278 = vmatprep.mubr.f32.mxu0 %v1069
      %1279 = vmatmul.mubr.f32.gmra.mrb[0].mxu0 %v1065
      %v1280 = vpop.f32.mrb[0].mxu0
      %v1281 = vadd.f32 %v436, %v1280
      %v1282 = vpop.f32.mrb[0].mxu0
      %v1283 = vadd.f32 %v440, %v1282
      %1284 = vdwg.mxu0
      %v1287 = vcombine.low %v1139, %v1141
      %v1289 = vunpack.c.l.s4 1966171168
      %v1290 = vunpack.c.0.s8 %v1289
      %v1291 = vlaneseq
      %v1292 = vshrl.u32 %v1291, 7
      %v1293 = vsub.s32 %v1290, %v1292
      %v1294 = vrot.slane %v1287, %v1293
      %v1296 = vunpack.c.l.s4 1966171168
      %v1297 = vunpack.c.0.s8 %v1296
      %v1298 = vlaneseq
      %v1299 = vshrl.u32 %v1298, 7
      %v1300 = vsub.s32 %v1297, %v1299
      %v1301 = vrot.slane %v1294, %v1300
      %v1303 = vadd.f32 %v1060, %v1301
      %v1304 = vxor.u32 %v1303, 2147483648
      %v1305 = vmul.f32 %v1304, 1.442695
      %v1306 = vpow.pop %v1305
      %v1307 = vadd.f32 %v1306, 1.0
      %v1308 = vrcp.pop %v1307
      %v1309 = vmul.f32 1.0, %v1308
      %v1311 = vrot.slane %v1060, 2
      %v1315 = vcombine.low %v1210, %v1212
      %v1317 = vunpack.c.l.s4 1966171168
      %v1318 = vunpack.c.0.s8 %v1317
      %v1319 = vlaneseq
      %v1320 = vshrl.u32 %v1319, 7
      %v1321 = vsub.s32 %v1318, %v1320
      %v1322 = vrot.slane %v1315, %v1321
      %v1324 = vunpack.c.l.s4 1966171168
      %v1325 = vunpack.c.0.s8 %v1324
      %v1326 = vlaneseq
      %v1327 = vshrl.u32 %v1326, 7
      %v1328 = vsub.s32 %v1325, %v1327
      %v1329 = vrot.slane %v1322, %v1328
      %v1331 = vadd.f32 %v1311, %v1329
      %v1332 = vxor.u32 %v1331, 2147483648
      %v1333 = vmul.f32 %v1332, 1.442695
      %v1334 = vpow.pop %v1333
      %v1335 = vadd.f32 %v1334, 1.0
      %v1336 = vrcp.pop %v1335
      %v1337 = vmul.f32 1.0, %v1336
      %v1340 = vcombine.low %v1281, %v1283
      %v1342 = vunpack.c.l.s4 1966171168
      %v1343 = vunpack.c.0.s8 %v1342
      %v1344 = vlaneseq
      %v1345 = vshrl.u32 %v1344, 7
      %v1346 = vsub.s32 %v1343, %v1345
      %v1347 = vrot.slane %v1340, %v1346
      %v1349 = vunpack.c.l.s4 1966171168
      %v1350 = vunpack.c.0.s8 %v1349
      %v1351 = vlaneseq
      %v1352 = vshrl.u32 %v1351, 7
      %v1353 = vsub.s32 %v1350, %v1352
      %v1354 = vrot.slane %v1347, %v1353
      %v1356 = vmul.f32 %v1309, %v1354
      %v1357 = vrot.slane %v1060, 4
      %v1359 = vadd.f32 %v1357, %v1356
      %v1360 = vtanh.pop %v1359
      %v1361 = vsub.f32 1.0, %v1337
      %v1362 = vmul.f32 %v1361, %v1360
      %v1363 = vmul.f32 %v1337, %v1053
      %v1364 = vadd.f32 %v1362, %v1363
      %s1365 = scalar_lea.vmem %s197, 2
      %1366 = vst.msk [vmem:[%s1365] ss:$8 sm:$0x3] %vm743, %v1364
      %1367 = vst.msk [vmem:[%s1365] ss:$8 sm:$0x0] %vm743, %v1364
      %s1368 = scalar_lea.vmem %s192, 3
      %v1369 = vld [vmem:[%s1368] ss:$8 sm:$0xf]
      %v1370 = vld [vmem:[%s1368] ss:$8 sm:$0x30]
      %v1371 = vor.u32 %v1369, %v1370
      %v1373 = vlaneseq
      %v1374 = vshrl.u32 %v1373, 7
      %v1375 = vsub.s32 0, %v1374
      %v1376 = vrot.slane %v1364, %v1375
      %v1377 = vlaneseq
      %v1378 = vshrl.u32 %v1377, 7
      %v1379 = vsub.s32 1, %v1378
      %v1380 = vrot.slane %v1364, %v1379
      %1383 = vmatprep.subr.mxu0 %v209
      %1384 = vmatpush1.msra.mxu0 %v208
      %1385 = vmatprep.subr.mxu0 %v215
      %1386 = vmatpush1.msra.mxu0 %v214
      %1387 = vmatprep.subr.mxu0 %v221
      %1388 = vmatpush1.msra.mxu0 %v220
      %1389 = vmatprep.subr.mxu0 %v227
      %1390 = vmatpush1.msra.mxu0 %v226
      %1391 = vmatprep.subr.mxu0 %v233
      %1392 = vmatpush1.msra.mxu0 %v232
      %1393 = vmatprep.subr.mxu0 %v239
      %1394 = vmatpush1.msra.mxu0 %v238
      %1395 = vmatprep.subr.mxu0 %v245
      %1396 = vmatpush1.msra.mxu0 %v244
      %1397 = vmatprep.subr.mxu0 %v251
      %1398 = vmatpush1.msra.mxu0 %v250
      %1399 = vmatprep.subr.mxu0 %v257
      %1400 = vmatpush1.msra.mxu0 %v256
      %1401 = vmatprep.subr.mxu0 %v263
      %1402 = vmatpush1.msra.mxu0 %v262
      %1403 = vmatprep.subr.mxu0 %v269
      %1404 = vmatpush1.msra.mxu0 %v268
      %1405 = vmatprep.subr.mxu0 %v275
      %1406 = vmatpush1.msra.mxu0 %v274
      %1407 = vmatprep.subr.mxu0 %v281
      %1408 = vmatpush1.msra.mxu0 %v280
      %1409 = vmatprep.subr.mxu0 %v287
      %1410 = vmatpush1.msra.mxu0 %v286
      %1411 = vmatprep.subr.mxu0 %v293
      %1412 = vmatpush1.msra.mxu0 %v292
      %1413 = vmatprep.subr.mxu0 %v299
      %1414 = vmatpush1.msra.mxu0 %v298
      %1415 = vmatprep.subr.mxu0 %v305
      %1416 = vmatpush1.msra.mxu0 %v304
      %1417 = vmatprep.subr.mxu0 %v311
      %1418 = vmatpush1.msra.mxu0 %v310
      %1419 = vmatprep.subr.mxu0 %v317
      %1420 = vmatpush1.msra.mxu0 %v316
      %1421 = vmatprep.subr.mxu0 %v323
      %1422 = vmatpush1.msra.mxu0 %v322
      %1423 = vmatprep.subr.mxu0 %v329
      %1424 = vmatpush1.msra.mxu0 %v328
      %1425 = vmatprep.subr.mxu0 %v335
      %1426 = vmatpush1.msra.mxu0 %v334
      %1427 = vmatprep.subr.mxu0 %v341
      %1428 = vmatpush1.msra.mxu0 %v340
      %1429 = vmatprep.subr.mxu0 %v347
      %1430 = vmatpush1.msra.mxu0 %v346
      %1431 = vmatprep.subr.mxu0 %v353
      %1432 = vmatpush1.msra.mxu0 %v352
      %1433 = vmatprep.subr.mxu0 %v359
      %1434 = vmatpush1.msra.mxu0 %v358
      %1435 = vmatprep.subr.mxu0 %v365
      %1436 = vmatpush1.msra.mxu0 %v364
      %1437 = vmatprep.subr.mxu0 %v371
      %1438 = vmatpush1.msra.mxu0 %v370
      %1439 = vmatprep.subr.mxu0 %v377
      %1440 = vmatpush1.msra.mxu0 %v376
      %1441 = vmatprep.subr.mxu0 %v383
      %1442 = vmatpush1.msra.mxu0 %v382
      %1443 = vmatprep.subr.mxu0 %v389
      %1444 = vmatpush1.msra.mxu0 %v388
      %1445 = vmatprep.subr.mxu0 %v395
      %1446 = vmatpush1.msra.mxu0 %v394
      %1447 = vmatprep.mubr.f32.mxu0 %v1380
      %1448 = vmatmul.mubr.f32.gmra.mrb[0].mxu0 %v1376
      %v1449 = vpop.f32.mrb[0].mxu0
      %v1450 = vadd.f32 %v420, %v1449
      %v1451 = vpop.f32.mrb[0].mxu0
      %v1452 = vadd.f32 %v424, %v1451
      %1453 = vdwg.mxu0
      %1454 = vmatprep.subr.mxu0 %v211
      %1455 = vmatpush1.msra.mxu0 %v210
      %1456 = vmatprep.subr.mxu0 %v217
      %1457 = vmatpush1.msra.mxu0 %v216
      %1458 = vmatprep.subr.mxu0 %v223
      %1459 = vmatpush1.msra.mxu0 %v222
      %1460 = vmatprep.subr.mxu0 %v229
      %1461 = vmatpush1.msra.mxu0 %v228
      %1462 = vmatprep.subr.mxu0 %v235
      %1463 = vmatpush1.msra.mxu0 %v234
      %1464 = vmatprep.subr.mxu0 %v241
      %1465 = vmatpush1.msra.mxu0 %v240
      %1466 = vmatprep.subr.mxu0 %v247
      %1467 = vmatpush1.msra.mxu0 %v246
      %1468 = vmatprep.subr.mxu0 %v253
      %1469 = vmatpush1.msra.mxu0 %v252
      %1470 = vmatprep.subr.mxu0 %v259
      %1471 = vmatpush1.msra.mxu0 %v258
      %1472 = vmatprep.subr.mxu0 %v265
      %1473 = vmatpush1.msra.mxu0 %v264
      %1474 = vmatprep.subr.mxu0 %v271
      %1475 = vmatpush1.msra.mxu0 %v270
      %1476 = vmatprep.subr.mxu0 %v277
      %1477 = vmatpush1.msra.mxu0 %v276
      %1478 = vmatprep.subr.mxu0 %v283
      %1479 = vmatpush1.msra.mxu0 %v282
      %1480 = vmatprep.subr.mxu0 %v289
      %1481 = vmatpush1.msra.mxu0 %v288
      %1482 = vmatprep.subr.mxu0 %v295
      %1483 = vmatpush1.msra.mxu0 %v294
      %1484 = vmatprep.subr.mxu0 %v301
      %1485 = vmatpush1.msra.mxu0 %v300
      %1486 = vmatprep.subr.mxu0 %v307
      %1487 = vmatpush1.msra.mxu0 %v306
      %1488 = vmatprep.subr.mxu0 %v313
      %1489 = vmatpush1.msra.mxu0 %v312
      %1490 = vmatprep.subr.mxu0 %v319
      %1491 = vmatpush1.msra.mxu0 %v318
      %1492 = vmatprep.subr.mxu0 %v325
      %1493 = vmatpush1.msra.mxu0 %v324
      %1494 = vmatprep.subr.mxu0 %v331
      %1495 = vmatpush1.msra.mxu0 %v330
      %1496 = vmatprep.subr.mxu0 %v337
      %1497 = vmatpush1.msra.mxu0 %v336
      %1498 = vmatprep.subr.mxu0 %v343
      %1499 = vmatpush1.msra.mxu0 %v342
      %1500 = vmatprep.subr.mxu0 %v349
      %1501 = vmatpush1.msra.mxu0 %v348
      %1502 = vmatprep.subr.mxu0 %v355
      %1503 = vmatpush1.msra.mxu0 %v354
      %1504 = vmatprep.subr.mxu0 %v361
      %1505 = vmatpush1.msra.mxu0 %v360
      %1506 = vmatprep.subr.mxu0 %v367
      %1507 = vmatpush1.msra.mxu0 %v366
      %1508 = vmatprep.subr.mxu0 %v373
      %1509 = vmatpush1.msra.mxu0 %v372
      %1510 = vmatprep.subr.mxu0 %v379
      %1511 = vmatpush1.msra.mxu0 %v378
      %1512 = vmatprep.subr.mxu0 %v385
      %1513 = vmatpush1.msra.mxu0 %v384
      %1514 = vmatprep.subr.mxu0 %v391
      %1515 = vmatpush1.msra.mxu0 %v390
      %1516 = vmatprep.subr.mxu0 %v397
      %1517 = vmatpush1.msra.mxu0 %v396
      %1518 = vmatprep.mubr.f32.mxu0 %v1380
      %1519 = vmatmul.mubr.f32.gmra.mrb[0].mxu0 %v1376
      %v1520 = vpop.f32.mrb[0].mxu0
      %v1521 = vadd.f32 %v428, %v1520
      %v1522 = vpop.f32.mrb[0].mxu0
      %v1523 = vadd.f32 %v432, %v1522
      %1524 = vdwg.mxu0
      %1525 = vmatprep.subr.mxu0 %v213
      %1526 = vmatpush1.msra.mxu0 %v212
      %1527 = vmatprep.subr.mxu0 %v219
      %1528 = vmatpush1.msra.mxu0 %v218
      %1529 = vmatprep.subr.mxu0 %v225
      %1530 = vmatpush1.msra.mxu0 %v224
      %1531 = vmatprep.subr.mxu0 %v231
      %1532 = vmatpush1.msra.mxu0 %v230
      %1533 = vmatprep.subr.mxu0 %v237
      %1534 = vmatpush1.msra.mxu0 %v236
      %1535 = vmatprep.subr.mxu0 %v243
      %1536 = vmatpush1.msra.mxu0 %v242
      %1537 = vmatprep.subr.mxu0 %v249
      %1538 = vmatpush1.msra.mxu0 %v248
      %1539 = vmatprep.subr.mxu0 %v255
      %1540 = vmatpush1.msra.mxu0 %v254
      %1541 = vmatprep.subr.mxu0 %v261
      %1542 = vmatpush1.msra.mxu0 %v260
      %1543 = vmatprep.subr.mxu0 %v267
      %1544 = vmatpush1.msra.mxu0 %v266
      %1545 = vmatprep.subr.mxu0 %v273
      %1546 = vmatpush1.msra.mxu0 %v272
      %1547 = vmatprep.subr.mxu0 %v279
      %1548 = vmatpush1.msra.mxu0 %v278
      %1549 = vmatprep.subr.mxu0 %v285
      %1550 = vmatpush1.msra.mxu0 %v284
      %1551 = vmatprep.subr.mxu0 %v291
      %1552 = vmatpush1.msra.mxu0 %v290
      %1553 = vmatprep.subr.mxu0 %v297
      %1554 = vmatpush1.msra.mxu0 %v296
      %1555 = vmatprep.subr.mxu0 %v303
      %1556 = vmatpush1.msra.mxu0 %v302
      %1557 = vmatprep.subr.mxu0 %v309
      %1558 = vmatpush1.msra.mxu0 %v308
      %1559 = vmatprep.subr.mxu0 %v315
      %1560 = vmatpush1.msra.mxu0 %v314
      %1561 = vmatprep.subr.mxu0 %v321
      %1562 = vmatpush1.msra.mxu0 %v320
      %1563 = vmatprep.subr.mxu0 %v327
      %1564 = vmatpush1.msra.mxu0 %v326
      %1565 = vmatprep.subr.mxu0 %v333
      %1566 = vmatpush1.msra.mxu0 %v332
      %1567 = vmatprep.subr.mxu0 %v339
      %1568 = vmatpush1.msra.mxu0 %v338
      %1569 = vmatprep.subr.mxu0 %v345
      %1570 = vmatpush1.msra.mxu0 %v344
      %1571 = vmatprep.subr.mxu0 %v351
      %1572 = vmatpush1.msra.mxu0 %v350
      %1573 = vmatprep.subr.mxu0 %v357
      %1574 = vmatpush1.msra.mxu0 %v356
      %1575 = vmatprep.subr.mxu0 %v363
      %1576 = vmatpush1.msra.mxu0 %v362
      %1577 = vmatprep.subr.mxu0 %v369
      %1578 = vmatpush1.msra.mxu0 %v368
      %1579 = vmatprep.subr.mxu0 %v375
      %1580 = vmatpush1.msra.mxu0 %v374
      %1581 = vmatprep.subr.mxu0 %v381
      %1582 = vmatpush1.msra.mxu0 %v380
      %1583 = vmatprep.subr.mxu0 %v387
      %1584 = vmatpush1.msra.mxu0 %v386
      %1585 = vmatprep.subr.mxu0 %v393
      %1586 = vmatpush1.msra.mxu0 %v392
      %1587 = vmatprep.subr.mxu0 %v399
      %1588 = vmatpush1.msra.mxu0 %v398
      %1589 = vmatprep.mubr.f32.mxu0 %v1380
      %1590 = vmatmul.mubr.f32.gmra.mrb[0].mxu0 %v1376
      %v1591 = vpop.f32.mrb[0].mxu0
      %v1592 = vadd.f32 %v436, %v1591
      %v1593 = vpop.f32.mrb[0].mxu0
      %v1594 = vadd.f32 %v440, %v1593
      %1595 = vdwg.mxu0
      %v1598 = vcombine.low %v1450, %v1452
      %v1600 = vunpack.c.l.s4 1966171168
      %v1601 = vunpack.c.0.s8 %v1600
      %v1602 = vlaneseq
      %v1603 = vshrl.u32 %v1602, 7
      %v1604 = vsub.s32 %v1601, %v1603
      %v1605 = vrot.slane %v1598, %v1604
      %v1607 = vunpack.c.l.s4 1966171168
      %v1608 = vunpack.c.0.s8 %v1607
      %v1609 = vlaneseq
      %v1610 = vshrl.u32 %v1609, 7
      %v1611 = vsub.s32 %v1608, %v1610
      %v1612 = vrot.slane %v1605, %v1611
      %v1614 = vadd.f32 %v1371, %v1612
      %v1615 = vxor.u32 %v1614, 2147483648
      %v1616 = vmul.f32 %v1615, 1.442695
      %v1617 = vpow.pop %v1616
      %v1618 = vadd.f32 %v1617, 1.0
      %v1619 = vrcp.pop %v1618
      %v1620 = vmul.f32 1.0, %v1619
      %v1622 = vrot.slane %v1371, 2
      %v1626 = vcombine.low %v1521, %v1523
      %v1628 = vunpack.c.l.s4 1966171168
      %v1629 = vunpack.c.0.s8 %v1628
      %v1630 = vlaneseq
      %v1631 = vshrl.u32 %v1630, 7
      %v1632 = vsub.s32 %v1629, %v1631
      %v1633 = vrot.slane %v1626, %v1632
      %v1635 = vunpack.c.l.s4 1966171168
      %v1636 = vunpack.c.0.s8 %v1635
      %v1637 = vlaneseq
      %v1638 = vshrl.u32 %v1637, 7
      %v1639 = vsub.s32 %v1636, %v1638
      %v1640 = vrot.slane %v1633, %v1639
      %v1642 = vadd.f32 %v1622, %v1640
      %v1643 = vxor.u32 %v1642, 2147483648
      %v1644 = vmul.f32 %v1643, 1.442695
      %v1645 = vpow.pop %v1644
      %v1646 = vadd.f32 %v1645, 1.0
      %v1647 = vrcp.pop %v1646
      %v1648 = vmul.f32 1.0, %v1647
      %v1651 = vcombine.low %v1592, %v1594
      %v1653 = vunpack.c.l.s4 1966171168
      %v1654 = vunpack.c.0.s8 %v1653
      %v1655 = vlaneseq
      %v1656 = vshrl.u32 %v1655, 7
      %v1657 = vsub.s32 %v1654, %v1656
      %v1658 = vrot.slane %v1651, %v1657
      %v1660 = vunpack.c.l.s4 1966171168
      %v1661 = vunpack.c.0.s8 %v1660
      %v1662 = vlaneseq
      %v1663 = vshrl.u32 %v1662, 7
      %v1664 = vsub.s32 %v1661, %v1663
      %v1665 = vrot.slane %v1658, %v1664
      %v1667 = vmul.f32 %v1620, %v1665
      %v1668 = vrot.slane %v1371, 4
      %v1670 = vadd.f32 %v1668, %v1667
      %v1671 = vtanh.pop %v1670
      %v1672 = vsub.f32 1.0, %v1648
      %v1673 = vmul.f32 %v1672, %v1671
      %v1674 = vmul.f32 %v1648, %v1364
      %v1675 = vadd.f32 %v1673, %v1674
      %s1676 = scalar_lea.vmem %s197, 3
      %1677 = vst.msk [vmem:[%s1676] ss:$8 sm:$0x3] %vm743, %v1675
      %1678 = vst.msk [vmem:[%s1676] ss:$8 sm:$0x0] %vm743, %v1675
      %s1679 = scalar_lea.vmem %s192, 4
      %v1680 = vld [vmem:[%s1679] ss:$8 sm:$0xf]
      %v1681 = vld [vmem:[%s1679] ss:$8 sm:$0x30]
      %v1682 = vor.u32 %v1680, %v1681
      %v1684 = vlaneseq
      %v1685 = vshrl.u32 %v1684, 7
      %v1686 = vsub.s32 0, %v1685
      %v1687 = vrot.slane %v1675, %v1686
      %v1688 = vlaneseq
      %v1689 = vshrl.u32 %v1688, 7
      %v1690 = vsub.s32 1, %v1689
      %v1691 = vrot.slane %v1675, %v1690
      %1694 = vmatprep.subr.mxu0 %v209
      %1695 = vmatpush1.msra.mxu0 %v208
      %1696 = vmatprep.subr.mxu0 %v215
      %1697 = vmatpush1.msra.mxu0 %v214
      %1698 = vmatprep.subr.mxu0 %v221
      %1699 = vmatpush1.msra.mxu0 %v220
      %1700 = vmatprep.subr.mxu0 %v227
      %1701 = vmatpush1.msra.mxu0 %v226
      %1702 = vmatprep.subr.mxu0 %v233
      %1703 = vmatpush1.msra.mxu0 %v232
      %1704 = vmatprep.subr.mxu0 %v239
      %1705 = vmatpush1.msra.mxu0 %v238
      %1706 = vmatprep.subr.mxu0 %v245
      %1707 = vmatpush1.msra.mxu0 %v244
      %1708 = vmatprep.subr.mxu0 %v251
      %1709 = vmatpush1.msra.mxu0 %v250
      %1710 = vmatprep.subr.mxu0 %v257
      %1711 = vmatpush1.msra.mxu0 %v256
      %1712 = vmatprep.subr.mxu0 %v263
      %1713 = vmatpush1.msra.mxu0 %v262
      %1714 = vmatprep.subr.mxu0 %v269
      %1715 = vmatpush1.msra.mxu0 %v268
      %1716 = vmatprep.subr.mxu0 %v275
      %1717 = vmatpush1.msra.mxu0 %v274
      %1718 = vmatprep.subr.mxu0 %v281
      %1719 = vmatpush1.msra.mxu0 %v280
      %1720 = vmatprep.subr.mxu0 %v287
      %1721 = vmatpush1.msra.mxu0 %v286
      %1722 = vmatprep.subr.mxu0 %v293
      %1723 = vmatpush1.msra.mxu0 %v292
      %1724 = vmatprep.subr.mxu0 %v299
      %1725 = vmatpush1.msra.mxu0 %v298
      %1726 = vmatprep.subr.mxu0 %v305
      %1727 = vmatpush1.msra.mxu0 %v304
      %1728 = vmatprep.subr.mxu0 %v311
      %1729 = vmatpush1.msra.mxu0 %v310
      %1730 = vmatprep.subr.mxu0 %v317
      %1731 = vmatpush1.msra.mxu0 %v316
      %1732 = vmatprep.subr.mxu0 %v323
      %1733 = vmatpush1.msra.mxu0 %v322
      %1734 = vmatprep.subr.mxu0 %v329
      %1735 = vmatpush1.msra.mxu0 %v328
      %1736 = vmatprep.subr.mxu0 %v335
      %1737 = vmatpush1.msra.mxu0 %v334
      %1738 = vmatprep.subr.mxu0 %v341
      %1739 = vmatpush1.msra.mxu0 %v340
      %1740 = vmatprep.subr.mxu0 %v347
      %1741 = vmatpush1.msra.mxu0 %v346
      %1742 = vmatprep.subr.mxu0 %v353
      %1743 = vmatpush1.msra.mxu0 %v352
      %1744 = vmatprep.subr.mxu0 %v359
      %1745 = vmatpush1.msra.mxu0 %v358
      %1746 = vmatprep.subr.mxu0 %v365
      %1747 = vmatpush1.msra.mxu0 %v364
      %1748 = vmatprep.subr.mxu0 %v371
      %1749 = vmatpush1.msra.mxu0 %v370
      %1750 = vmatprep.subr.mxu0 %v377
      %1751 = vmatpush1.msra.mxu0 %v376
      %1752 = vmatprep.subr.mxu0 %v383
      %1753 = vmatpush1.msra.mxu0 %v382
      %1754 = vmatprep.subr.mxu0 %v389
      %1755 = vmatpush1.msra.mxu0 %v388
      %1756 = vmatprep.subr.mxu0 %v395
      %1757 = vmatpush1.msra.mxu0 %v394
      %1758 = vmatprep.mubr.f32.mxu0 %v1691
      %1759 = vmatmul.mubr.f32.gmra.mrb[0].mxu0 %v1687
      %v1760 = vpop.f32.mrb[0].mxu0
      %v1761 = vadd.f32 %v420, %v1760
      %v1762 = vpop.f32.mrb[0].mxu0
      %v1763 = vadd.f32 %v424, %v1762
      %1764 = vdwg.mxu0
      %1765 = vmatprep.subr.mxu0 %v211
      %1766 = vmatpush1.msra.mxu0 %v210
      %1767 = vmatprep.subr.mxu0 %v217
      %1768 = vmatpush1.msra.mxu0 %v216
      %1769 = vmatprep.subr.mxu0 %v223
      %1770 = vmatpush1.msra.mxu0 %v222
      %1771 = vmatprep.subr.mxu0 %v229
      %1772 = vmatpush1.msra.mxu0 %v228
      %1773 = vmatprep.subr.mxu0 %v235
      %1774 = vmatpush1.msra.mxu0 %v234
      %1775 = vmatprep.subr.mxu0 %v241
      %1776 = vmatpush1.msra.mxu0 %v240
      %1777 = vmatprep.subr.mxu0 %v247
      %1778 = vmatpush1.msra.mxu0 %v246
      %1779 = vmatprep.subr.mxu0 %v253
      %1780 = vmatpush1.msra.mxu0 %v252
      %1781 = vmatprep.subr.mxu0 %v259
      %1782 = vmatpush1.msra.mxu0 %v258
      %1783 = vmatprep.subr.mxu0 %v265
      %1784 = vmatpush1.msra.mxu0 %v264
      %1785 = vmatprep.subr.mxu0 %v271
      %1786 = vmatpush1.msra.mxu0 %v270
      %1787 = vmatprep.subr.mxu0 %v277
      %1788 = vmatpush1.msra.mxu0 %v276
      %1789 = vmatprep.subr.mxu0 %v283
      %1790 = vmatpush1.msra.mxu0 %v282
      %1791 = vmatprep.subr.mxu0 %v289
      %1792 = vmatpush1.msra.mxu0 %v288
      %1793 = vmatprep.subr.mxu0 %v295
      %1794 = vmatpush1.msra.mxu0 %v294
      %1795 = vmatprep.subr.mxu0 %v301
      %1796 = vmatpush1.msra.mxu0 %v300
      %1797 = vmatprep.subr.mxu0 %v307
      %1798 = vmatpush1.msra.mxu0 %v306
      %1799 = vmatprep.subr.mxu0 %v313
      %1800 = vmatpush1.msra.mxu0 %v312
      %1801 = vmatprep.subr.mxu0 %v319
      %1802 = vmatpush1.msra.mxu0 %v318
      %1803 = vmatprep.subr.mxu0 %v325
      %1804 = vmatpush1.msra.mxu0 %v324
      %1805 = vmatprep.subr.mxu0 %v331
      %1806 = vmatpush1.msra.mxu0 %v330
      %1807 = vmatprep.subr.mxu0 %v337
      %1808 = vmatpush1.msra.mxu0 %v336
      %1809 = vmatprep.subr.mxu0 %v343
      %1810 = vmatpush1.msra.mxu0 %v342
      %1811 = vmatprep.subr.mxu0 %v349
      %1812 = vmatpush1.msra.mxu0 %v348
      %1813 = vmatprep.subr.mxu0 %v355
      %1814 = vmatpush1.msra.mxu0 %v354
      %1815 = vmatprep.subr.mxu0 %v361
      %1816 = vmatpush1.msra.mxu0 %v360
      %1817 = vmatprep.subr.mxu0 %v367
      %1818 = vmatpush1.msra.mxu0 %v366
      %1819 = vmatprep.subr.mxu0 %v373
      %1820 = vmatpush1.msra.mxu0 %v372
      %1821 = vmatprep.subr.mxu0 %v379
      %1822 = vmatpush1.msra.mxu0 %v378
      %1823 = vmatprep.subr.mxu0 %v385
      %1824 = vmatpush1.msra.mxu0 %v384
      %1825 = vmatprep.subr.mxu0 %v391
      %1826 = vmatpush1.msra.mxu0 %v390
      %1827 = vmatprep.subr.mxu0 %v397
      %1828 = vmatpush1.msra.mxu0 %v396
      %1829 = vmatprep.mubr.f32.mxu0 %v1691
      %1830 = vmatmul.mubr.f32.gmra.mrb[0].mxu0 %v1687
      %v1831 = vpop.f32.mrb[0].mxu0
      %v1832 = vadd.f32 %v428, %v1831
      %v1833 = vpop.f32.mrb[0].mxu0
      %v1834 = vadd.f32 %v432, %v1833
      %1835 = vdwg.mxu0
      %1836 = vmatprep.subr.mxu0 %v213
      %1837 = vmatpush1.msra.mxu0 %v212
      %1838 = vmatprep.subr.mxu0 %v219
      %1839 = vmatpush1.msra.mxu0 %v218
      %1840 = vmatprep.subr.mxu0 %v225
      %1841 = vmatpush1.msra.mxu0 %v224
      %1842 = vmatprep.subr.mxu0 %v231
      %1843 = vmatpush1.msra.mxu0 %v230
      %1844 = vmatprep.subr.mxu0 %v237
      %1845 = vmatpush1.msra.mxu0 %v236
      %1846 = vmatprep.subr.mxu0 %v243
      %1847 = vmatpush1.msra.mxu0 %v242
      %1848 = vmatprep.subr.mxu0 %v249
      %1849 = vmatpush1.msra.mxu0 %v248
      %1850 = vmatprep.subr.mxu0 %v255
      %1851 = vmatpush1.msra.mxu0 %v254
      %1852 = vmatprep.subr.mxu0 %v261
      %1853 = vmatpush1.msra.mxu0 %v260
      %1854 = vmatprep.subr.mxu0 %v267
      %1855 = vmatpush1.msra.mxu0 %v266
      %1856 = vmatprep.subr.mxu0 %v273
      %1857 = vmatpush1.msra.mxu0 %v272
      %1858 = vmatprep.subr.mxu0 %v279
      %1859 = vmatpush1.msra.mxu0 %v278
      %1860 = vmatprep.subr.mxu0 %v285
      %1861 = vmatpush1.msra.mxu0 %v284
      %1862 = vmatprep.subr.mxu0 %v291
      %1863 = vmatpush1.msra.mxu0 %v290
      %1864 = vmatprep.subr.mxu0 %v297
      %1865 = vmatpush1.msra.mxu0 %v296
      %1866 = vmatprep.subr.mxu0 %v303
      %1867 = vmatpush1.msra.mxu0 %v302
      %1868 = vmatprep.subr.mxu0 %v309
      %1869 = vmatpush1.msra.mxu0 %v308
      %1870 = vmatprep.subr.mxu0 %v315
      %1871 = vmatpush1.msra.mxu0 %v314
      %1872 = vmatprep.subr.mxu0 %v321
      %1873 = vmatpush1.msra.mxu0 %v320
      %1874 = vmatprep.subr.mxu0 %v327
      %1875 = vmatpush1.msra.mxu0 %v326
      %1876 = vmatprep.subr.mxu0 %v333
      %1877 = vmatpush1.msra.mxu0 %v332
      %1878 = vmatprep.subr.mxu0 %v339
      %1879 = vmatpush1.msra.mxu0 %v338
      %1880 = vmatprep.subr.mxu0 %v345
      %1881 = vmatpush1.msra.mxu0 %v344
      %1882 = vmatprep.subr.mxu0 %v351
      %1883 = vmatpush1.msra.mxu0 %v350
      %1884 = vmatprep.subr.mxu0 %v357
      %1885 = vmatpush1.msra.mxu0 %v356
      %1886 = vmatprep.subr.mxu0 %v363
      %1887 = vmatpush1.msra.mxu0 %v362
      %1888 = vmatprep.subr.mxu0 %v369
      %1889 = vmatpush1.msra.mxu0 %v368
      %1890 = vmatprep.subr.mxu0 %v375
      %1891 = vmatpush1.msra.mxu0 %v374
      %1892 = vmatprep.subr.mxu0 %v381
      %1893 = vmatpush1.msra.mxu0 %v380
      %1894 = vmatprep.subr.mxu0 %v387
      %1895 = vmatpush1.msra.mxu0 %v386
      %1896 = vmatprep.subr.mxu0 %v393
      %1897 = vmatpush1.msra.mxu0 %v392
      %1898 = vmatprep.subr.mxu0 %v399
      %1899 = vmatpush1.msra.mxu0 %v398
      %1900 = vmatprep.mubr.f32.mxu0 %v1691
      %1901 = vmatmul.mubr.f32.gmra.mrb[0].mxu0 %v1687
      %v1902 = vpop.f32.mrb[0].mxu0
      %v1903 = vadd.f32 %v436, %v1902
      %v1904 = vpop.f32.mrb[0].mxu0
      %v1905 = vadd.f32 %v440, %v1904
      %1906 = vdwg.mxu0
      %v1909 = vcombine.low %v1761, %v1763
      %v1911 = vunpack.c.l.s4 1966171168
      %v1912 = vunpack.c.0.s8 %v1911
      %v1913 = vlaneseq
      %v1914 = vshrl.u32 %v1913, 7
      %v1915 = vsub.s32 %v1912, %v1914
      %v1916 = vrot.slane %v1909, %v1915
      %v1918 = vunpack.c.l.s4 1966171168
      %v1919 = vunpack.c.0.s8 %v1918
      %v1920 = vlaneseq
      %v1921 = vshrl.u32 %v1920, 7
      %v1922 = vsub.s32 %v1919, %v1921
      %v1923 = vrot.slane %v1916, %v1922
      %v1925 = vadd.f32 %v1682, %v1923
      %v1926 = vxor.u32 %v1925, 2147483648
      %v1927 = vmul.f32 %v1926, 1.442695
      %v1928 = vpow.pop %v1927
      %v1929 = vadd.f32 %v1928, 1.0
      %v1930 = vrcp.pop %v1929
      %v1931 = vmul.f32 1.0, %v1930
      %v1933 = vrot.slane %v1682, 2
      %v1937 = vcombine.low %v1832, %v1834
      %v1939 = vunpack.c.l.s4 1966171168
      %v1940 = vunpack.c.0.s8 %v1939
      %v1941 = vlaneseq
      %v1942 = vshrl.u32 %v1941, 7
      %v1943 = vsub.s32 %v1940, %v1942
      %v1944 = vrot.slane %v1937, %v1943
      %v1946 = vunpack.c.l.s4 1966171168
      %v1947 = vunpack.c.0.s8 %v1946
      %v1948 = vlaneseq
      %v1949 = vshrl.u32 %v1948, 7
      %v1950 = vsub.s32 %v1947, %v1949
      %v1951 = vrot.slane %v1944, %v1950
      %v1953 = vadd.f32 %v1933, %v1951
      %v1954 = vxor.u32 %v1953, 2147483648
      %v1955 = vmul.f32 %v1954, 1.442695
      %v1956 = vpow.pop %v1955
      %v1957 = vadd.f32 %v1956, 1.0
      %v1958 = vrcp.pop %v1957
      %v1959 = vmul.f32 1.0, %v1958
      %v1962 = vcombine.low %v1903, %v1905
      %v1964 = vunpack.c.l.s4 1966171168
      %v1965 = vunpack.c.0.s8 %v1964
      %v1966 = vlaneseq
      %v1967 = vshrl.u32 %v1966, 7
      %v1968 = vsub.s32 %v1965, %v1967
      %v1969 = vrot.slane %v1962, %v1968
      %v1971 = vunpack.c.l.s4 1966171168
      %v1972 = vunpack.c.0.s8 %v1971
      %v1973 = vlaneseq
      %v1974 = vshrl.u32 %v1973, 7
      %v1975 = vsub.s32 %v1972, %v1974
      %v1976 = vrot.slane %v1969, %v1975
      %v1978 = vmul.f32 %v1931, %v1976
      %v1979 = vrot.slane %v1682, 4
      %v1981 = vadd.f32 %v1979, %v1978
      %v1982 = vtanh.pop %v1981
      %v1983 = vsub.f32 1.0, %v1959
      %v1984 = vmul.f32 %v1983, %v1982
      %v1985 = vmul.f32 %v1959, %v1675
      %v1986 = vadd.f32 %v1984, %v1985
      %s1987 = scalar_lea.vmem %s197, 4
      %1988 = vst.msk [vmem:[%s1987] ss:$8 sm:$0x3] %vm743, %v1986
      %1989 = vst.msk [vmem:[%s1987] ss:$8 sm:$0x0] %vm743, %v1986
      %s1990 = scalar_lea.vmem %s192, 5
      %v1991 = vld [vmem:[%s1990] ss:$8 sm:$0xf]
      %v1992 = vld [vmem:[%s1990] ss:$8 sm:$0x30]
      %v1993 = vor.u32 %v1991, %v1992
      %v1995 = vlaneseq
      %v1996 = vshrl.u32 %v1995, 7
      %v1997 = vsub.s32 0, %v1996
      %v1998 = vrot.slane %v1986, %v1997
      %v1999 = vlaneseq
      %v2000 = vshrl.u32 %v1999, 7
      %v2001 = vsub.s32 1, %v2000
      %v2002 = vrot.slane %v1986, %v2001
      %2005 = vmatprep.subr.mxu0 %v209
      %2006 = vmatpush1.msra.mxu0 %v208
      %2007 = vmatprep.subr.mxu0 %v215
      %2008 = vmatpush1.msra.mxu0 %v214
      %2009 = vmatprep.subr.mxu0 %v221
      %2010 = vmatpush1.msra.mxu0 %v220
      %2011 = vmatprep.subr.mxu0 %v227
      %2012 = vmatpush1.msra.mxu0 %v226
      %2013 = vmatprep.subr.mxu0 %v233
      %2014 = vmatpush1.msra.mxu0 %v232
      %2015 = vmatprep.subr.mxu0 %v239
      %2016 = vmatpush1.msra.mxu0 %v238
      %2017 = vmatprep.subr.mxu0 %v245
      %2018 = vmatpush1.msra.mxu0 %v244
      %2019 = vmatprep.subr.mxu0 %v251
      %2020 = vmatpush1.msra.mxu0 %v250
      %2021 = vmatprep.subr.mxu0 %v257
      %2022 = vmatpush1.msra.mxu0 %v256
      %2023 = vmatprep.subr.mxu0 %v263
      %2024 = vmatpush1.msra.mxu0 %v262
      %2025 = vmatprep.subr.mxu0 %v269
      %2026 = vmatpush1.msra.mxu0 %v268
      %2027 = vmatprep.subr.mxu0 %v275
      %2028 = vmatpush1.msra.mxu0 %v274
      %2029 = vmatprep.subr.mxu0 %v281
      %2030 = vmatpush1.msra.mxu0 %v280
      %2031 = vmatprep.subr.mxu0 %v287
      %2032 = vmatpush1.msra.mxu0 %v286
      %2033 = vmatprep.subr.mxu0 %v293
      %2034 = vmatpush1.msra.mxu0 %v292
      %2035 = vmatprep.subr.mxu0 %v299
      %2036 = vmatpush1.msra.mxu0 %v298
      %2037 = vmatprep.subr.mxu0 %v305
      %2038 = vmatpush1.msra.mxu0 %v304
      %2039 = vmatprep.subr.mxu0 %v311
      %2040 = vmatpush1.msra.mxu0 %v310
      %2041 = vmatprep.subr.mxu0 %v317
      %2042 = vmatpush1.msra.mxu0 %v316
      %2043 = vmatprep.subr.mxu0 %v323
      %2044 = vmatpush1.msra.mxu0 %v322
      %2045 = vmatprep.subr.mxu0 %v329
      %2046 = vmatpush1.msra.mxu0 %v328
      %2047 = vmatprep.subr.mxu0 %v335
      %2048 = vmatpush1.msra.mxu0 %v334
      %2049 = vmatprep.subr.mxu0 %v341
      %2050 = vmatpush1.msra.mxu0 %v340
      %2051 = vmatprep.subr.mxu0 %v347
      %2052 = vmatpush1.msra.mxu0 %v346
      %2053 = vmatprep.subr.mxu0 %v353
      %2054 = vmatpush1.msra.mxu0 %v352
      %2055 = vmatprep.subr.mxu0 %v359
      %2056 = vmatpush1.msra.mxu0 %v358
      %2057 = vmatprep.subr.mxu0 %v365
      %2058 = vmatpush1.msra.mxu0 %v364
      %2059 = vmatprep.subr.mxu0 %v371
      %2060 = vmatpush1.msra.mxu0 %v370
      %2061 = vmatprep.subr.mxu0 %v377
      %2062 = vmatpush1.msra.mxu0 %v376
      %2063 = vmatprep.subr.mxu0 %v383
      %2064 = vmatpush1.msra.mxu0 %v382
      %2065 = vmatprep.subr.mxu0 %v389
      %2066 = vmatpush1.msra.mxu0 %v388
      %2067 = vmatprep.subr.mxu0 %v395
      %2068 = vmatpush1.msra.mxu0 %v394
      %2069 = vmatprep.mubr.f32.mxu0 %v2002
      %2070 = vmatmul.mubr.f32.gmra.mrb[0].mxu0 %v1998
      %v2071 = vpop.f32.mrb[0].mxu0
      %v2072 = vadd.f32 %v420, %v2071
      %v2073 = vpop.f32.mrb[0].mxu0
      %v2074 = vadd.f32 %v424, %v2073
      %2075 = vdwg.mxu0
      %2076 = vmatprep.subr.mxu0 %v211
      %2077 = vmatpush1.msra.mxu0 %v210
      %2078 = vmatprep.subr.mxu0 %v217
      %2079 = vmatpush1.msra.mxu0 %v216
      %2080 = vmatprep.subr.mxu0 %v223
      %2081 = vmatpush1.msra.mxu0 %v222
      %2082 = vmatprep.subr.mxu0 %v229
      %2083 = vmatpush1.msra.mxu0 %v228
      %2084 = vmatprep.subr.mxu0 %v235
      %2085 = vmatpush1.msra.mxu0 %v234
      %2086 = vmatprep.subr.mxu0 %v241
      %2087 = vmatpush1.msra.mxu0 %v240
      %2088 = vmatprep.subr.mxu0 %v247
      %2089 = vmatpush1.msra.mxu0 %v246
      %2090 = vmatprep.subr.mxu0 %v253
      %2091 = vmatpush1.msra.mxu0 %v252
      %2092 = vmatprep.subr.mxu0 %v259
      %2093 = vmatpush1.msra.mxu0 %v258
      %2094 = vmatprep.subr.mxu0 %v265
      %2095 = vmatpush1.msra.mxu0 %v264
      %2096 = vmatprep.subr.mxu0 %v271
      %2097 = vmatpush1.msra.mxu0 %v270
      %2098 = vmatprep.subr.mxu0 %v277
      %2099 = vmatpush1.msra.mxu0 %v276
      %2100 = vmatprep.subr.mxu0 %v283
      %2101 = vmatpush1.msra.mxu0 %v282
      %2102 = vmatprep.subr.mxu0 %v289
      %2103 = vmatpush1.msra.mxu0 %v288
      %2104 = vmatprep.subr.mxu0 %v295
      %2105 = vmatpush1.msra.mxu0 %v294
      %2106 = vmatprep.subr.mxu0 %v301
      %2107 = vmatpush1.msra.mxu0 %v300
      %2108 = vmatprep.subr.mxu0 %v307
      %2109 = vmatpush1.msra.mxu0 %v306
      %2110 = vmatprep.subr.mxu0 %v313
      %2111 = vmatpush1.msra.mxu0 %v312
      %2112 = vmatprep.subr.mxu0 %v319
      %2113 = vmatpush1.msra.mxu0 %v318
      %2114 = vmatprep.subr.mxu0 %v325
      %2115 = vmatpush1.msra.mxu0 %v324
      %2116 = vmatprep.subr.mxu0 %v331
      %2117 = vmatpush1.msra.mxu0 %v330
      %2118 = vmatprep.subr.mxu0 %v337
      %2119 = vmatpush1.msra.mxu0 %v336
      %2120 = vmatprep.subr.mxu0 %v343
      %2121 = vmatpush1.msra.mxu0 %v342
      %2122 = vmatprep.subr.mxu0 %v349
      %2123 = vmatpush1.msra.mxu0 %v348
      %2124 = vmatprep.subr.mxu0 %v355
      %2125 = vmatpush1.msra.mxu0 %v354
      %2126 = vmatprep.subr.mxu0 %v361
      %2127 = vmatpush1.msra.mxu0 %v360
      %2128 = vmatprep.subr.mxu0 %v367
      %2129 = vmatpush1.msra.mxu0 %v366
      %2130 = vmatprep.subr.mxu0 %v373
      %2131 = vmatpush1.msra.mxu0 %v372
      %2132 = vmatprep.subr.mxu0 %v379
      %2133 = vmatpush1.msra.mxu0 %v378
      %2134 = vmatprep.subr.mxu0 %v385
      %2135 = vmatpush1.msra.mxu0 %v384
      %2136 = vmatprep.subr.mxu0 %v391
      %2137 = vmatpush1.msra.mxu0 %v390
      %2138 = vmatprep.subr.mxu0 %v397
      %2139 = vmatpush1.msra.mxu0 %v396
      %2140 = vmatprep.mubr.f32.mxu0 %v2002
      %2141 = vmatmul.mubr.f32.gmra.mrb[0].mxu0 %v1998
      %v2142 = vpop.f32.mrb[0].mxu0
      %v2143 = vadd.f32 %v428, %v2142
      %v2144 = vpop.f32.mrb[0].mxu0
      %v2145 = vadd.f32 %v432, %v2144
      %2146 = vdwg.mxu0
      %2147 = vmatprep.subr.mxu0 %v213
      %2148 = vmatpush1.msra.mxu0 %v212
      %2149 = vmatprep.subr.mxu0 %v219
      %2150 = vmatpush1.msra.mxu0 %v218
      %2151 = vmatprep.subr.mxu0 %v225
      %2152 = vmatpush1.msra.mxu0 %v224
      %2153 = vmatprep.subr.mxu0 %v231
      %2154 = vmatpush1.msra.mxu0 %v230
      %2155 = vmatprep.subr.mxu0 %v237
      %2156 = vmatpush1.msra.mxu0 %v236
      %2157 = vmatprep.subr.mxu0 %v243
      %2158 = vmatpush1.msra.mxu0 %v242
      %2159 = vmatprep.subr.mxu0 %v249
      %2160 = vmatpush1.msra.mxu0 %v248
      %2161 = vmatprep.subr.mxu0 %v255
      %2162 = vmatpush1.msra.mxu0 %v254
      %2163 = vmatprep.subr.mxu0 %v261
      %2164 = vmatpush1.msra.mxu0 %v260
      %2165 = vmatprep.subr.mxu0 %v267
      %2166 = vmatpush1.msra.mxu0 %v266
      %2167 = vmatprep.subr.mxu0 %v273
      %2168 = vmatpush1.msra.mxu0 %v272
      %2169 = vmatprep.subr.mxu0 %v279
      %2170 = vmatpush1.msra.mxu0 %v278
      %2171 = vmatprep.subr.mxu0 %v285
      %2172 = vmatpush1.msra.mxu0 %v284
      %2173 = vmatprep.subr.mxu0 %v291
      %2174 = vmatpush1.msra.mxu0 %v290
      %2175 = vmatprep.subr.mxu0 %v297
      %2176 = vmatpush1.msra.mxu0 %v296
      %2177 = vmatprep.subr.mxu0 %v303
      %2178 = vmatpush1.msra.mxu0 %v302
      %2179 = vmatprep.subr.mxu0 %v309
      %2180 = vmatpush1.msra.mxu0 %v308
      %2181 = vmatprep.subr.mxu0 %v315
      %2182 = vmatpush1.msra.mxu0 %v314
      %2183 = vmatprep.subr.mxu0 %v321
      %2184 = vmatpush1.msra.mxu0 %v320
      %2185 = vmatprep.subr.mxu0 %v327
      %2186 = vmatpush1.msra.mxu0 %v326
      %2187 = vmatprep.subr.mxu0 %v333
      %2188 = vmatpush1.msra.mxu0 %v332
      %2189 = vmatprep.subr.mxu0 %v339
      %2190 = vmatpush1.msra.mxu0 %v338
      %2191 = vmatprep.subr.mxu0 %v345
      %2192 = vmatpush1.msra.mxu0 %v344
      %2193 = vmatprep.subr.mxu0 %v351
      %2194 = vmatpush1.msra.mxu0 %v350
      %2195 = vmatprep.subr.mxu0 %v357
      %2196 = vmatpush1.msra.mxu0 %v356
      %2197 = vmatprep.subr.mxu0 %v363
      %2198 = vmatpush1.msra.mxu0 %v362
      %2199 = vmatprep.subr.mxu0 %v369
      %2200 = vmatpush1.msra.mxu0 %v368
      %2201 = vmatprep.subr.mxu0 %v375
      %2202 = vmatpush1.msra.mxu0 %v374
      %2203 = vmatprep.subr.mxu0 %v381
      %2204 = vmatpush1.msra.mxu0 %v380
      %2205 = vmatprep.subr.mxu0 %v387
      %2206 = vmatpush1.msra.mxu0 %v386
      %2207 = vmatprep.subr.mxu0 %v393
      %2208 = vmatpush1.msra.mxu0 %v392
      %2209 = vmatprep.subr.mxu0 %v399
      %2210 = vmatpush1.msra.mxu0 %v398
      %2211 = vmatprep.mubr.f32.mxu0 %v2002
      %2212 = vmatmul.mubr.f32.gmra.mrb[0].mxu0 %v1998
      %v2213 = vpop.f32.mrb[0].mxu0
      %v2214 = vadd.f32 %v436, %v2213
      %v2215 = vpop.f32.mrb[0].mxu0
      %v2216 = vadd.f32 %v440, %v2215
      %2217 = vdwg.mxu0
      %v2220 = vcombine.low %v2072, %v2074
      %v2222 = vunpack.c.l.s4 1966171168
      %v2223 = vunpack.c.0.s8 %v2222
      %v2224 = vlaneseq
      %v2225 = vshrl.u32 %v2224, 7
      %v2226 = vsub.s32 %v2223, %v2225
      %v2227 = vrot.slane %v2220, %v2226
      %v2229 = vunpack.c.l.s4 1966171168
      %v2230 = vunpack.c.0.s8 %v2229
      %v2231 = vlaneseq
      %v2232 = vshrl.u32 %v2231, 7
      %v2233 = vsub.s32 %v2230, %v2232
      %v2234 = vrot.slane %v2227, %v2233
      %v2236 = vadd.f32 %v1993, %v2234
      %v2237 = vxor.u32 %v2236, 2147483648
      %v2238 = vmul.f32 %v2237, 1.442695
      %v2239 = vpow.pop %v2238
      %v2240 = vadd.f32 %v2239, 1.0
      %v2241 = vrcp.pop %v2240
      %v2242 = vmul.f32 1.0, %v2241
      %v2244 = vrot.slane %v1993, 2
      %v2248 = vcombine.low %v2143, %v2145
      %v2250 = vunpack.c.l.s4 1966171168
      %v2251 = vunpack.c.0.s8 %v2250
      %v2252 = vlaneseq
      %v2253 = vshrl.u32 %v2252, 7
      %v2254 = vsub.s32 %v2251, %v2253
      %v2255 = vrot.slane %v2248, %v2254
      %v2257 = vunpack.c.l.s4 1966171168
      %v2258 = vunpack.c.0.s8 %v2257
      %v2259 = vlaneseq
      %v2260 = vshrl.u32 %v2259, 7
      %v2261 = vsub.s32 %v2258, %v2260
      %v2262 = vrot.slane %v2255, %v2261
      %v2264 = vadd.f32 %v2244, %v2262
      %v2265 = vxor.u32 %v2264, 2147483648
      %v2266 = vmul.f32 %v2265, 1.442695
      %v2267 = vpow.pop %v2266
      %v2268 = vadd.f32 %v2267, 1.0
      %v2269 = vrcp.pop %v2268
      %v2270 = vmul.f32 1.0, %v2269
      %v2273 = vcombine.low %v2214, %v2216
      %v2275 = vunpack.c.l.s4 1966171168
      %v2276 = vunpack.c.0.s8 %v2275
      %v2277 = vlaneseq
      %v2278 = vshrl.u32 %v2277, 7
      %v2279 = vsub.s32 %v2276, %v2278
      %v2280 = vrot.slane %v2273, %v2279
      %v2282 = vunpack.c.l.s4 1966171168
      %v2283 = vunpack.c.0.s8 %v2282
      %v2284 = vlaneseq
      %v2285 = vshrl.u32 %v2284, 7
      %v2286 = vsub.s32 %v2283, %v2285
      %v2287 = vrot.slane %v2280, %v2286
      %v2289 = vmul.f32 %v2242, %v2287
      %v2290 = vrot.slane %v1993, 4
      %v2292 = vadd.f32 %v2290, %v2289
      %v2293 = vtanh.pop %v2292
      %v2294 = vsub.f32 1.0, %v2270
      %v2295 = vmul.f32 %v2294, %v2293
      %v2296 = vmul.f32 %v2270, %v1986
      %v2297 = vadd.f32 %v2295, %v2296
      %s2298 = scalar_lea.vmem %s197, 5
      %2299 = vst.msk [vmem:[%s2298] ss:$8 sm:$0x3] %vm743, %v2297
      %2300 = vst.msk [vmem:[%s2298] ss:$8 sm:$0x0] %vm743, %v2297
      %s2301 = scalar_lea.vmem %s192, 6
      %v2302 = vld [vmem:[%s2301] ss:$8 sm:$0xf]
      %v2303 = vld [vmem:[%s2301] ss:$8 sm:$0x30]
      %v2304 = vor.u32 %v2302, %v2303
      %v2306 = vlaneseq
      %v2307 = vshrl.u32 %v2306, 7
      %v2308 = vsub.s32 0, %v2307
      %v2309 = vrot.slane %v2297, %v2308
      %v2310 = vlaneseq
      %v2311 = vshrl.u32 %v2310, 7
      %v2312 = vsub.s32 1, %v2311
      %v2313 = vrot.slane %v2297, %v2312
      %2316 = vmatprep.subr.mxu0 %v209
      %2317 = vmatpush1.msra.mxu0 %v208
      %2318 = vmatprep.subr.mxu0 %v215
      %2319 = vmatpush1.msra.mxu0 %v214
      %2320 = vmatprep.subr.mxu0 %v221
      %2321 = vmatpush1.msra.mxu0 %v220
      %2322 = vmatprep.subr.mxu0 %v227
      %2323 = vmatpush1.msra.mxu0 %v226
      %2324 = vmatprep.subr.mxu0 %v233
      %2325 = vmatpush1.msra.mxu0 %v232
      %2326 = vmatprep.subr.mxu0 %v239
      %2327 = vmatpush1.msra.mxu0 %v238
      %2328 = vmatprep.subr.mxu0 %v245
      %2329 = vmatpush1.msra.mxu0 %v244
      %2330 = vmatprep.subr.mxu0 %v251
      %2331 = vmatpush1.msra.mxu0 %v250
      %2332 = vmatprep.subr.mxu0 %v257
      %2333 = vmatpush1.msra.mxu0 %v256
      %2334 = vmatprep.subr.mxu0 %v263
      %2335 = vmatpush1.msra.mxu0 %v262
      %2336 = vmatprep.subr.mxu0 %v269
      %2337 = vmatpush1.msra.mxu0 %v268
      %2338 = vmatprep.subr.mxu0 %v275
      %2339 = vmatpush1.msra.mxu0 %v274
      %2340 = vmatprep.subr.mxu0 %v281
      %2341 = vmatpush1.msra.mxu0 %v280
      %2342 = vmatprep.subr.mxu0 %v287
      %2343 = vmatpush1.msra.mxu0 %v286
      %2344 = vmatprep.subr.mxu0 %v293
      %2345 = vmatpush1.msra.mxu0 %v292
      %2346 = vmatprep.subr.mxu0 %v299
      %2347 = vmatpush1.msra.mxu0 %v298
      %2348 = vmatprep.subr.mxu0 %v305
      %2349 = vmatpush1.msra.mxu0 %v304
      %2350 = vmatprep.subr.mxu0 %v311
      %2351 = vmatpush1.msra.mxu0 %v310
      %2352 = vmatprep.subr.mxu0 %v317
      %2353 = vmatpush1.msra.mxu0 %v316
      %2354 = vmatprep.subr.mxu0 %v323
      %2355 = vmatpush1.msra.mxu0 %v322
      %2356 = vmatprep.subr.mxu0 %v329
      %2357 = vmatpush1.msra.mxu0 %v328
      %2358 = vmatprep.subr.mxu0 %v335
      %2359 = vmatpush1.msra.mxu0 %v334
      %2360 = vmatprep.subr.mxu0 %v341
      %2361 = vmatpush1.msra.mxu0 %v340
      %2362 = vmatprep.subr.mxu0 %v347
      %2363 = vmatpush1.msra.mxu0 %v346
      %2364 = vmatprep.subr.mxu0 %v353
      %2365 = vmatpush1.msra.mxu0 %v352
      %2366 = vmatprep.subr.mxu0 %v359
      %2367 = vmatpush1.msra.mxu0 %v358
      %2368 = vmatprep.subr.mxu0 %v365
      %2369 = vmatpush1.msra.mxu0 %v364
      %2370 = vmatprep.subr.mxu0 %v371
      %2371 = vmatpush1.msra.mxu0 %v370
      %2372 = vmatprep.subr.mxu0 %v377
      %2373 = vmatpush1.msra.mxu0 %v376
      %2374 = vmatprep.subr.mxu0 %v383
      %2375 = vmatpush1.msra.mxu0 %v382
      %2376 = vmatprep.subr.mxu0 %v389
      %2377 = vmatpush1.msra.mxu0 %v388
      %2378 = vmatprep.subr.mxu0 %v395
      %2379 = vmatpush1.msra.mxu0 %v394
      %2380 = vmatprep.mubr.f32.mxu0 %v2313
      %2381 = vmatmul.mubr.f32.gmra.mrb[0].mxu0 %v2309
      %v2382 = vpop.f32.mrb[0].mxu0
      %v2383 = vadd.f32 %v420, %v2382
      %v2384 = vpop.f32.mrb[0].mxu0
      %v2385 = vadd.f32 %v424, %v2384
      %2386 = vdwg.mxu0
      %2387 = vmatprep.subr.mxu0 %v211
      %2388 = vmatpush1.msra.mxu0 %v210
      %2389 = vmatprep.subr.mxu0 %v217
      %2390 = vmatpush1.msra.mxu0 %v216
      %2391 = vmatprep.subr.mxu0 %v223
      %2392 = vmatpush1.msra.mxu0 %v222
      %2393 = vmatprep.subr.mxu0 %v229
      %2394 = vmatpush1.msra.mxu0 %v228
      %2395 = vmatprep.subr.mxu0 %v235
      %2396 = vmatpush1.msra.mxu0 %v234
      %2397 = vmatprep.subr.mxu0 %v241
      %2398 = vmatpush1.msra.mxu0 %v240
      %2399 = vmatprep.subr.mxu0 %v247
      %2400 = vmatpush1.msra.mxu0 %v246
      %2401 = vmatprep.subr.mxu0 %v253
      %2402 = vmatpush1.msra.mxu0 %v252
      %2403 = vmatprep.subr.mxu0 %v259
      %2404 = vmatpush1.msra.mxu0 %v258
      %2405 = vmatprep.subr.mxu0 %v265
      %2406 = vmatpush1.msra.mxu0 %v264
      %2407 = vmatprep.subr.mxu0 %v271
      %2408 = vmatpush1.msra.mxu0 %v270
      %2409 = vmatprep.subr.mxu0 %v277
      %2410 = vmatpush1.msra.mxu0 %v276
      %2411 = vmatprep.subr.mxu0 %v283
      %2412 = vmatpush1.msra.mxu0 %v282
      %2413 = vmatprep.subr.mxu0 %v289
      %2414 = vmatpush1.msra.mxu0 %v288
      %2415 = vmatprep.subr.mxu0 %v295
      %2416 = vmatpush1.msra.mxu0 %v294
      %2417 = vmatprep.subr.mxu0 %v301
      %2418 = vmatpush1.msra.mxu0 %v300
      %2419 = vmatprep.subr.mxu0 %v307
      %2420 = vmatpush1.msra.mxu0 %v306
      %2421 = vmatprep.subr.mxu0 %v313
      %2422 = vmatpush1.msra.mxu0 %v312
      %2423 = vmatprep.subr.mxu0 %v319
      %2424 = vmatpush1.msra.mxu0 %v318
      %2425 = vmatprep.subr.mxu0 %v325
      %2426 = vmatpush1.msra.mxu0 %v324
      %2427 = vmatprep.subr.mxu0 %v331
      %2428 = vmatpush1.msra.mxu0 %v330
      %2429 = vmatprep.subr.mxu0 %v337
      %2430 = vmatpush1.msra.mxu0 %v336
      %2431 = vmatprep.subr.mxu0 %v343
      %2432 = vmatpush1.msra.mxu0 %v342
      %2433 = vmatprep.subr.mxu0 %v349
      %2434 = vmatpush1.msra.mxu0 %v348
      %2435 = vmatprep.subr.mxu0 %v355
      %2436 = vmatpush1.msra.mxu0 %v354
      %2437 = vmatprep.subr.mxu0 %v361
      %2438 = vmatpush1.msra.mxu0 %v360
      %2439 = vmatprep.subr.mxu0 %v367
      %2440 = vmatpush1.msra.mxu0 %v366
      %2441 = vmatprep.subr.mxu0 %v373
      %2442 = vmatpush1.msra.mxu0 %v372
      %2443 = vmatprep.subr.mxu0 %v379
      %2444 = vmatpush1.msra.mxu0 %v378
      %2445 = vmatprep.subr.mxu0 %v385
      %2446 = vmatpush1.msra.mxu0 %v384
      %2447 = vmatprep.subr.mxu0 %v391
      %2448 = vmatpush1.msra.mxu0 %v390
      %2449 = vmatprep.subr.mxu0 %v397
      %2450 = vmatpush1.msra.mxu0 %v396
      %2451 = vmatprep.mubr.f32.mxu0 %v2313
      %2452 = vmatmul.mubr.f32.gmra.mrb[0].mxu0 %v2309
      %v2453 = vpop.f32.mrb[0].mxu0
      %v2454 = vadd.f32 %v428, %v2453
      %v2455 = vpop.f32.mrb[0].mxu0
      %v2456 = vadd.f32 %v432, %v2455
      %2457 = vdwg.mxu0
      %2458 = vmatprep.subr.mxu0 %v213
      %2459 = vmatpush1.msra.mxu0 %v212
      %2460 = vmatprep.subr.mxu0 %v219
      %2461 = vmatpush1.msra.mxu0 %v218
      %2462 = vmatprep.subr.mxu0 %v225
      %2463 = vmatpush1.msra.mxu0 %v224
      %2464 = vmatprep.subr.mxu0 %v231
      %2465 = vmatpush1.msra.mxu0 %v230
      %2466 = vmatprep.subr.mxu0 %v237
      %2467 = vmatpush1.msra.mxu0 %v236
      %2468 = vmatprep.subr.mxu0 %v243
      %2469 = vmatpush1.msra.mxu0 %v242
      %2470 = vmatprep.subr.mxu0 %v249
      %2471 = vmatpush1.msra.mxu0 %v248
      %2472 = vmatprep.subr.mxu0 %v255
      %2473 = vmatpush1.msra.mxu0 %v254
      %2474 = vmatprep.subr.mxu0 %v261
      %2475 = vmatpush1.msra.mxu0 %v260
      %2476 = vmatprep.subr.mxu0 %v267
      %2477 = vmatpush1.msra.mxu0 %v266
      %2478 = vmatprep.subr.mxu0 %v273
      %2479 = vmatpush1.msra.mxu0 %v272
      %2480 = vmatprep.subr.mxu0 %v279
      %2481 = vmatpush1.msra.mxu0 %v278
      %2482 = vmatprep.subr.mxu0 %v285
      %2483 = vmatpush1.msra.mxu0 %v284
      %2484 = vmatprep.subr.mxu0 %v291
      %2485 = vmatpush1.msra.mxu0 %v290
      %2486 = vmatprep.subr.mxu0 %v297
      %2487 = vmatpush1.msra.mxu0 %v296
      %2488 = vmatprep.subr.mxu0 %v303
      %2489 = vmatpush1.msra.mxu0 %v302
      %2490 = vmatprep.subr.mxu0 %v309
      %2491 = vmatpush1.msra.mxu0 %v308
      %2492 = vmatprep.subr.mxu0 %v315
      %2493 = vmatpush1.msra.mxu0 %v314
      %2494 = vmatprep.subr.mxu0 %v321
      %2495 = vmatpush1.msra.mxu0 %v320
      %2496 = vmatprep.subr.mxu0 %v327
      %2497 = vmatpush1.msra.mxu0 %v326
      %2498 = vmatprep.subr.mxu0 %v333
      %2499 = vmatpush1.msra.mxu0 %v332
      %2500 = vmatprep.subr.mxu0 %v339
      %2501 = vmatpush1.msra.mxu0 %v338
      %2502 = vmatprep.subr.mxu0 %v345
      %2503 = vmatpush1.msra.mxu0 %v344
      %2504 = vmatprep.subr.mxu0 %v351
      %2505 = vmatpush1.msra.mxu0 %v350
      %2506 = vmatprep.subr.mxu0 %v357
      %2507 = vmatpush1.msra.mxu0 %v356
      %2508 = vmatprep.subr.mxu0 %v363
      %2509 = vmatpush1.msra.mxu0 %v362
      %2510 = vmatprep.subr.mxu0 %v369
      %2511 = vmatpush1.msra.mxu0 %v368
      %2512 = vmatprep.subr.mxu0 %v375
      %2513 = vmatpush1.msra.mxu0 %v374
      %2514 = vmatprep.subr.mxu0 %v381
      %2515 = vmatpush1.msra.mxu0 %v380
      %2516 = vmatprep.subr.mxu0 %v387
      %2517 = vmatpush1.msra.mxu0 %v386
      %2518 = vmatprep.subr.mxu0 %v393
      %2519 = vmatpush1.msra.mxu0 %v392
      %2520 = vmatprep.subr.mxu0 %v399
      %2521 = vmatpush1.msra.mxu0 %v398
      %2522 = vmatprep.mubr.f32.mxu0 %v2313
      %2523 = vmatmul.mubr.f32.gmra.mrb[0].mxu0 %v2309
      %v2524 = vpop.f32.mrb[0].mxu0
      %v2525 = vadd.f32 %v436, %v2524
      %v2526 = vpop.f32.mrb[0].mxu0
      %v2527 = vadd.f32 %v440, %v2526
      %2528 = vdwg.mxu0
      %v2531 = vcombine.low %v2383, %v2385
      %v2533 = vunpack.c.l.s4 1966171168
      %v2534 = vunpack.c.0.s8 %v2533
      %v2535 = vlaneseq
      %v2536 = vshrl.u32 %v2535, 7
      %v2537 = vsub.s32 %v2534, %v2536
      %v2538 = vrot.slane %v2531, %v2537
      %v2540 = vunpack.c.l.s4 1966171168
      %v2541 = vunpack.c.0.s8 %v2540
      %v2542 = vlaneseq
      %v2543 = vshrl.u32 %v2542, 7
      %v2544 = vsub.s32 %v2541, %v2543
      %v2545 = vrot.slane %v2538, %v2544
      %v2547 = vadd.f32 %v2304, %v2545
      %v2548 = vxor.u32 %v2547, 2147483648
      %v2549 = vmul.f32 %v2548, 1.442695
      %v2550 = vpow.pop %v2549
      %v2551 = vadd.f32 %v2550, 1.0
      %v2552 = vrcp.pop %v2551
      %v2553 = vmul.f32 1.0, %v2552
      %v2555 = vrot.slane %v2304, 2
      %v2559 = vcombine.low %v2454, %v2456
      %v2561 = vunpack.c.l.s4 1966171168
      %v2562 = vunpack.c.0.s8 %v2561
      %v2563 = vlaneseq
      %v2564 = vshrl.u32 %v2563, 7
      %v2565 = vsub.s32 %v2562, %v2564
      %v2566 = vrot.slane %v2559, %v2565
      %v2568 = vunpack.c.l.s4 1966171168
      %v2569 = vunpack.c.0.s8 %v2568
      %v2570 = vlaneseq
      %v2571 = vshrl.u32 %v2570, 7
      %v2572 = vsub.s32 %v2569, %v2571
      %v2573 = vrot.slane %v2566, %v2572
      %v2575 = vadd.f32 %v2555, %v2573
      %v2576 = vxor.u32 %v2575, 2147483648
      %v2577 = vmul.f32 %v2576, 1.442695
      %v2578 = vpow.pop %v2577
      %v2579 = vadd.f32 %v2578, 1.0
      %v2580 = vrcp.pop %v2579
      %v2581 = vmul.f32 1.0, %v2580
      %v2584 = vcombine.low %v2525, %v2527
      %v2586 = vunpack.c.l.s4 1966171168
      %v2587 = vunpack.c.0.s8 %v2586
      %v2588 = vlaneseq
      %v2589 = vshrl.u32 %v2588, 7
      %v2590 = vsub.s32 %v2587, %v2589
      %v2591 = vrot.slane %v2584, %v2590
      %v2593 = vunpack.c.l.s4 1966171168
      %v2594 = vunpack.c.0.s8 %v2593
      %v2595 = vlaneseq
      %v2596 = vshrl.u32 %v2595, 7
      %v2597 = vsub.s32 %v2594, %v2596
      %v2598 = vrot.slane %v2591, %v2597
      %v2600 = vmul.f32 %v2553, %v2598
      %v2601 = vrot.slane %v2304, 4
      %v2603 = vadd.f32 %v2601, %v2600
      %v2604 = vtanh.pop %v2603
      %v2605 = vsub.f32 1.0, %v2581
      %v2606 = vmul.f32 %v2605, %v2604
      %v2607 = vmul.f32 %v2581, %v2297
      %v2608 = vadd.f32 %v2606, %v2607
      %s2609 = scalar_lea.vmem %s197, 6
      %2610 = vst.msk [vmem:[%s2609] ss:$8 sm:$0x3] %vm743, %v2608
      %2611 = vst.msk [vmem:[%s2609] ss:$8 sm:$0x0] %vm743, %v2608
      %s2612 = scalar_lea.vmem %s192, 7
      %v2613 = vld [vmem:[%s2612] ss:$8 sm:$0xf]
      %v2614 = vld [vmem:[%s2612] ss:$8 sm:$0x30]
      %v2615 = vor.u32 %v2613, %v2614
      %v2617 = vlaneseq
      %v2618 = vshrl.u32 %v2617, 7
      %v2619 = vsub.s32 0, %v2618
      %v2620 = vrot.slane %v2608, %v2619
      %v2621 = vlaneseq
      %v2622 = vshrl.u32 %v2621, 7
      %v2623 = vsub.s32 1, %v2622
      %v2624 = vrot.slane %v2608, %v2623
      %2627 = vmatprep.subr.mxu0 %v209
      %2628 = vmatpush1.msra.mxu0 %v208
      %2629 = vmatprep.subr.mxu0 %v215
      %2630 = vmatpush1.msra.mxu0 %v214
      %2631 = vmatprep.subr.mxu0 %v221
      %2632 = vmatpush1.msra.mxu0 %v220
      %2633 = vmatprep.subr.mxu0 %v227
      %2634 = vmatpush1.msra.mxu0 %v226
      %2635 = vmatprep.subr.mxu0 %v233
      %2636 = vmatpush1.msra.mxu0 %v232
      %2637 = vmatprep.subr.mxu0 %v239
      %2638 = vmatpush1.msra.mxu0 %v238
      %2639 = vmatprep.subr.mxu0 %v245
      %2640 = vmatpush1.msra.mxu0 %v244
      %2641 = vmatprep.subr.mxu0 %v251
      %2642 = vmatpush1.msra.mxu0 %v250
      %2643 = vmatprep.subr.mxu0 %v257
      %2644 = vmatpush1.msra.mxu0 %v256
      %2645 = vmatprep.subr.mxu0 %v263
      %2646 = vmatpush1.msra.mxu0 %v262
      %2647 = vmatprep.subr.mxu0 %v269
      %2648 = vmatpush1.msra.mxu0 %v268
      %2649 = vmatprep.subr.mxu0 %v275
      %2650 = vmatpush1.msra.mxu0 %v274
      %2651 = vmatprep.subr.mxu0 %v281
      %2652 = vmatpush1.msra.mxu0 %v280
      %2653 = vmatprep.subr.mxu0 %v287
      %2654 = vmatpush1.msra.mxu0 %v286
      %2655 = vmatprep.subr.mxu0 %v293
      %2656 = vmatpush1.msra.mxu0 %v292
      %2657 = vmatprep.subr.mxu0 %v299
      %2658 = vmatpush1.msra.mxu0 %v298
      %2659 = vmatprep.subr.mxu0 %v305
      %2660 = vmatpush1.msra.mxu0 %v304
      %2661 = vmatprep.subr.mxu0 %v311
      %2662 = vmatpush1.msra.mxu0 %v310
      %2663 = vmatprep.subr.mxu0 %v317
      %2664 = vmatpush1.msra.mxu0 %v316
      %2665 = vmatprep.subr.mxu0 %v323
      %2666 = vmatpush1.msra.mxu0 %v322
      %2667 = vmatprep.subr.mxu0 %v329
      %2668 = vmatpush1.msra.mxu0 %v328
      %2669 = vmatprep.subr.mxu0 %v335
      %2670 = vmatpush1.msra.mxu0 %v334
      %2671 = vmatprep.subr.mxu0 %v341
      %2672 = vmatpush1.msra.mxu0 %v340
      %2673 = vmatprep.subr.mxu0 %v347
      %2674 = vmatpush1.msra.mxu0 %v346
      %2675 = vmatprep.subr.mxu0 %v353
      %2676 = vmatpush1.msra.mxu0 %v352
      %2677 = vmatprep.subr.mxu0 %v359
      %2678 = vmatpush1.msra.mxu0 %v358
      %2679 = vmatprep.subr.mxu0 %v365
      %2680 = vmatpush1.msra.mxu0 %v364
      %2681 = vmatprep.subr.mxu0 %v371
      %2682 = vmatpush1.msra.mxu0 %v370
      %2683 = vmatprep.subr.mxu0 %v377
      %2684 = vmatpush1.msra.mxu0 %v376
      %2685 = vmatprep.subr.mxu0 %v383
      %2686 = vmatpush1.msra.mxu0 %v382
      %2687 = vmatprep.subr.mxu0 %v389
      %2688 = vmatpush1.msra.mxu0 %v388
      %2689 = vmatprep.subr.mxu0 %v395
      %2690 = vmatpush1.msra.mxu0 %v394
      %2691 = vmatprep.mubr.f32.mxu0 %v2624
      %2692 = vmatmul.mubr.f32.gmra.mrb[0].mxu0 %v2620
      %v2693 = vpop.f32.mrb[0].mxu0
      %v2694 = vadd.f32 %v420, %v2693
      %v2695 = vpop.f32.mrb[0].mxu0
      %v2696 = vadd.f32 %v424, %v2695
      %2697 = vdwg.mxu0
      %2698 = vmatprep.subr.mxu0 %v211
      %2699 = vmatpush1.msra.mxu0 %v210
      %2700 = vmatprep.subr.mxu0 %v217
      %2701 = vmatpush1.msra.mxu0 %v216
      %2702 = vmatprep.subr.mxu0 %v223
      %2703 = vmatpush1.msra.mxu0 %v222
      %2704 = vmatprep.subr.mxu0 %v229
      %2705 = vmatpush1.msra.mxu0 %v228
      %2706 = vmatprep.subr.mxu0 %v235
      %2707 = vmatpush1.msra.mxu0 %v234
      %2708 = vmatprep.subr.mxu0 %v241
      %2709 = vmatpush1.msra.mxu0 %v240
      %2710 = vmatprep.subr.mxu0 %v247
      %2711 = vmatpush1.msra.mxu0 %v246
      %2712 = vmatprep.subr.mxu0 %v253
      %2713 = vmatpush1.msra.mxu0 %v252
      %2714 = vmatprep.subr.mxu0 %v259
      %2715 = vmatpush1.msra.mxu0 %v258
      %2716 = vmatprep.subr.mxu0 %v265
      %2717 = vmatpush1.msra.mxu0 %v264
      %2718 = vmatprep.subr.mxu0 %v271
      %2719 = vmatpush1.msra.mxu0 %v270
      %2720 = vmatprep.subr.mxu0 %v277
      %2721 = vmatpush1.msra.mxu0 %v276
      %2722 = vmatprep.subr.mxu0 %v283
      %2723 = vmatpush1.msra.mxu0 %v282
      %2724 = vmatprep.subr.mxu0 %v289
      %2725 = vmatpush1.msra.mxu0 %v288
      %2726 = vmatprep.subr.mxu0 %v295
      %2727 = vmatpush1.msra.mxu0 %v294
      %2728 = vmatprep.subr.mxu0 %v301
      %2729 = vmatpush1.msra.mxu0 %v300
      %2730 = vmatprep.subr.mxu0 %v307
      %2731 = vmatpush1.msra.mxu0 %v306
      %2732 = vmatprep.subr.mxu0 %v313
      %2733 = vmatpush1.msra.mxu0 %v312
      %2734 = vmatprep.subr.mxu0 %v319
      %2735 = vmatpush1.msra.mxu0 %v318
      %2736 = vmatprep.subr.mxu0 %v325
      %2737 = vmatpush1.msra.mxu0 %v324
      %2738 = vmatprep.subr.mxu0 %v331
      %2739 = vmatpush1.msra.mxu0 %v330
      %2740 = vmatprep.subr.mxu0 %v337
      %2741 = vmatpush1.msra.mxu0 %v336
      %2742 = vmatprep.subr.mxu0 %v343
      %2743 = vmatpush1.msra.mxu0 %v342
      %2744 = vmatprep.subr.mxu0 %v349
      %2745 = vmatpush1.msra.mxu0 %v348
      %2746 = vmatprep.subr.mxu0 %v355
      %2747 = vmatpush1.msra.mxu0 %v354
      %2748 = vmatprep.subr.mxu0 %v361
      %2749 = vmatpush1.msra.mxu0 %v360
      %2750 = vmatprep.subr.mxu0 %v367
      %2751 = vmatpush1.msra.mxu0 %v366
      %2752 = vmatprep.subr.mxu0 %v373
      %2753 = vmatpush1.msra.mxu0 %v372
      %2754 = vmatprep.subr.mxu0 %v379
      %2755 = vmatpush1.msra.mxu0 %v378
      %2756 = vmatprep.subr.mxu0 %v385
      %2757 = vmatpush1.msra.mxu0 %v384
      %2758 = vmatprep.subr.mxu0 %v391
      %2759 = vmatpush1.msra.mxu0 %v390
      %2760 = vmatprep.subr.mxu0 %v397
      %2761 = vmatpush1.msra.mxu0 %v396
      %2762 = vmatprep.mubr.f32.mxu0 %v2624
      %2763 = vmatmul.mubr.f32.gmra.mrb[0].mxu0 %v2620
      %v2764 = vpop.f32.mrb[0].mxu0
      %v2765 = vadd.f32 %v428, %v2764
      %v2766 = vpop.f32.mrb[0].mxu0
      %v2767 = vadd.f32 %v432, %v2766
      %2768 = vdwg.mxu0
      %2769 = vmatprep.subr.mxu0 %v213
      %2770 = vmatpush1.msra.mxu0 %v212
      %2771 = vmatprep.subr.mxu0 %v219
      %2772 = vmatpush1.msra.mxu0 %v218
      %2773 = vmatprep.subr.mxu0 %v225
      %2774 = vmatpush1.msra.mxu0 %v224
      %2775 = vmatprep.subr.mxu0 %v231
      %2776 = vmatpush1.msra.mxu0 %v230
      %2777 = vmatprep.subr.mxu0 %v237
      %2778 = vmatpush1.msra.mxu0 %v236
      %2779 = vmatprep.subr.mxu0 %v243
      %2780 = vmatpush1.msra.mxu0 %v242
      %2781 = vmatprep.subr.mxu0 %v249
      %2782 = vmatpush1.msra.mxu0 %v248
      %2783 = vmatprep.subr.mxu0 %v255
      %2784 = vmatpush1.msra.mxu0 %v254
      %2785 = vmatprep.subr.mxu0 %v261
      %2786 = vmatpush1.msra.mxu0 %v260
      %2787 = vmatprep.subr.mxu0 %v267
      %2788 = vmatpush1.msra.mxu0 %v266
      %2789 = vmatprep.subr.mxu0 %v273
      %2790 = vmatpush1.msra.mxu0 %v272
      %2791 = vmatprep.subr.mxu0 %v279
      %2792 = vmatpush1.msra.mxu0 %v278
      %2793 = vmatprep.subr.mxu0 %v285
      %2794 = vmatpush1.msra.mxu0 %v284
      %2795 = vmatprep.subr.mxu0 %v291
      %2796 = vmatpush1.msra.mxu0 %v290
      %2797 = vmatprep.subr.mxu0 %v297
      %2798 = vmatpush1.msra.mxu0 %v296
      %2799 = vmatprep.subr.mxu0 %v303
      %2800 = vmatpush1.msra.mxu0 %v302
      %2801 = vmatprep.subr.mxu0 %v309
      %2802 = vmatpush1.msra.mxu0 %v308
      %2803 = vmatprep.subr.mxu0 %v315
      %2804 = vmatpush1.msra.mxu0 %v314
      %2805 = vmatprep.subr.mxu0 %v321
      %2806 = vmatpush1.msra.mxu0 %v320
      %2807 = vmatprep.subr.mxu0 %v327
      %2808 = vmatpush1.msra.mxu0 %v326
      %2809 = vmatprep.subr.mxu0 %v333
      %2810 = vmatpush1.msra.mxu0 %v332
      %2811 = vmatprep.subr.mxu0 %v339
      %2812 = vmatpush1.msra.mxu0 %v338
      %2813 = vmatprep.subr.mxu0 %v345
      %2814 = vmatpush1.msra.mxu0 %v344
      %2815 = vmatprep.subr.mxu0 %v351
      %2816 = vmatpush1.msra.mxu0 %v350
      %2817 = vmatprep.subr.mxu0 %v357
      %2818 = vmatpush1.msra.mxu0 %v356
      %2819 = vmatprep.subr.mxu0 %v363
      %2820 = vmatpush1.msra.mxu0 %v362
      %2821 = vmatprep.subr.mxu0 %v369
      %2822 = vmatpush1.msra.mxu0 %v368
      %2823 = vmatprep.subr.mxu0 %v375
      %2824 = vmatpush1.msra.mxu0 %v374
      %2825 = vmatprep.subr.mxu0 %v381
      %2826 = vmatpush1.msra.mxu0 %v380
      %2827 = vmatprep.subr.mxu0 %v387
      %2828 = vmatpush1.msra.mxu0 %v386
      %2829 = vmatprep.subr.mxu0 %v393
      %2830 = vmatpush1.msra.mxu0 %v392
      %2831 = vmatprep.subr.mxu0 %v399
      %2832 = vmatpush1.msra.mxu0 %v398
      %2833 = vmatprep.mubr.f32.mxu0 %v2624
      %2834 = vmatmul.mubr.f32.gmra.mrb[0].mxu0 %v2620
      %v2835 = vpop.f32.mrb[0].mxu0
      %v2836 = vadd.f32 %v436, %v2835
      %v2837 = vpop.f32.mrb[0].mxu0
      %v2838 = vadd.f32 %v440, %v2837
      %2839 = vdwg.mxu0
      %v2842 = vcombine.low %v2694, %v2696
      %v2844 = vunpack.c.l.s4 1966171168
      %v2845 = vunpack.c.0.s8 %v2844
      %v2846 = vlaneseq
      %v2847 = vshrl.u32 %v2846, 7
      %v2848 = vsub.s32 %v2845, %v2847
      %v2849 = vrot.slane %v2842, %v2848
      %v2851 = vunpack.c.l.s4 1966171168
      %v2852 = vunpack.c.0.s8 %v2851
      %v2853 = vlaneseq
      %v2854 = vshrl.u32 %v2853, 7
      %v2855 = vsub.s32 %v2852, %v2854
      %v2856 = vrot.slane %v2849, %v2855
      %v2858 = vadd.f32 %v2615, %v2856
      %v2859 = vxor.u32 %v2858, 2147483648
      %v2860 = vmul.f32 %v2859, 1.442695
      %v2861 = vpow.pop %v2860
      %v2862 = vadd.f32 %v2861, 1.0
      %v2863 = vrcp.pop %v2862
      %v2864 = vmul.f32 1.0, %v2863
      %v2866 = vrot.slane %v2615, 2
      %v2870 = vcombine.low %v2765, %v2767
      %v2872 = vunpack.c.l.s4 1966171168
      %v2873 = vunpack.c.0.s8 %v2872
      %v2874 = vlaneseq
      %v2875 = vshrl.u32 %v2874, 7
      %v2876 = vsub.s32 %v2873, %v2875
      %v2877 = vrot.slane %v2870, %v2876
      %v2879 = vunpack.c.l.s4 1966171168
      %v2880 = vunpack.c.0.s8 %v2879
      %v2881 = vlaneseq
      %v2882 = vshrl.u32 %v2881, 7
      %v2883 = vsub.s32 %v2880, %v2882
      %v2884 = vrot.slane %v2877, %v2883
      %v2886 = vadd.f32 %v2866, %v2884
      %v2887 = vxor.u32 %v2886, 2147483648
      %v2888 = vmul.f32 %v2887, 1.442695
      %v2889 = vpow.pop %v2888
      %v2890 = vadd.f32 %v2889, 1.0
      %v2891 = vrcp.pop %v2890
      %v2892 = vmul.f32 1.0, %v2891
      %v2895 = vcombine.low %v2836, %v2838
      %v2897 = vunpack.c.l.s4 1966171168
      %v2898 = vunpack.c.0.s8 %v2897
      %v2899 = vlaneseq
      %v2900 = vshrl.u32 %v2899, 7
      %v2901 = vsub.s32 %v2898, %v2900
      %v2902 = vrot.slane %v2895, %v2901
      %v2904 = vunpack.c.l.s4 1966171168
      %v2905 = vunpack.c.0.s8 %v2904
      %v2906 = vlaneseq
      %v2907 = vshrl.u32 %v2906, 7
      %v2908 = vsub.s32 %v2905, %v2907
      %v2909 = vrot.slane %v2902, %v2908
      %v2911 = vmul.f32 %v2864, %v2909
      %v2912 = vrot.slane %v2615, 4
      %v2914 = vadd.f32 %v2912, %v2911
      %v2915 = vtanh.pop %v2914
      %v2916 = vsub.f32 1.0, %v2892
      %v2917 = vmul.f32 %v2916, %v2915
      %v2918 = vmul.f32 %v2892, %v2608
      %v2919 = vadd.f32 %v2917, %v2918
      %s2920 = scalar_lea.vmem %s197, 7
      %2921 = vst.msk [vmem:[%s2920] ss:$8 sm:$0x3] %vm743, %v2919
      %2922 = vst.msk [vmem:[%s2920] ss:$8 sm:$0x0] %vm743, %v2919
      %2923 = vst.msk [vmem:[#allocation2] sm:$0x3] %vm743, %v2919
      %p2924 = scmp.lt.s32.totalorder %s15, 2
      %s2925 = scalar_select %p2924, %s15, 2
      %s2926 = smul.addr %s2925, 2
      %s2927 = smul.addr %s2926, 8
      %s2928 = scalar_lea.vmem %s4, %s2927
      // Predicated region
      $region41: #{_encoder_gru_sequence_jit.3} parent=35 // pred_check
        %p2929 = pneg %p122
      $region42: #{_encoder_gru_sequence_jit.3} parent=35 // pred_check_branch
        %2931 = sbr.rel (%p2929) target = $region44
      $region43: #{_encoder_gru_sequence_jit.3} parent=35 // pred_region
        _
      $region44: #{_encoder_gru_sequence_jit.3} parent=35 // pred_fallthru
        _
    $region36: #{_encoder_gru_sequence_jit.3} parent=5 // pred_fallthru
      _
    %p2932 = scmp.le.s32.totalorder 2, %s10
    // Predicated region
    $region45: #{_encoder_gru_sequence_jit.3} parent=5 // pred_check
      %p2933 = pneg %p2932
    $region46: #{_encoder_gru_sequence_jit.3} parent=5 // pred_check_branch
      %2935 = sbr.rel (%p2933) target = $region48
    $region47: #{_encoder_gru_sequence_jit.3} parent=5 // pred_region
      %s2936 = ssub.s32 %s10, 2
      // Predicated region
      $region49: #{_encoder_gru_sequence_jit.3} parent=47 // pred_check
        %p2937 = pneg %p128
      $region50: #{_encoder_gru_sequence_jit.3} parent=47 // pred_check_branch
        %2939 = sbr.rel (%p2937) target = $region52
      $region51: #{_encoder_gru_sequence_jit.3} parent=47 // pred_region
        %p2940 = scmp.lt.s32.totalorder %s16, 2
        %s2941 = scalar_select %p2940, %s16, 2
        %s2942 = smul.addr %s2941, 2
        %s2943 = smul.addr %s2942, 8
        %s2944 = scalar_lea.vmem %s4, %s2943
      $region52: #{_encoder_gru_sequence_jit.3} parent=47 // pred_fallthru
        _
    $region48: #{_encoder_gru_sequence_jit.3} parent=5 // pred_fallthru
      _
  $region6: #{_encoder_gru_sequence_jit.3} parent=0 // loop_footer
    %s14 = sadd.s32 1, %s10
  $region7: #{_encoder_gru_sequence_jit.3} parent=0 // loop_footer_branch
    %9 = sbr.rel target = $region3
  $region8: #{_encoder_gru_sequence_jit.3} parent=0 // loop_exit
    _

</llo_original>
